<compile_context>
chip_gen: v7x
topology: tpu7x:2x2x1
jax: 0.10.0
libtpu: 0.0.40
codegen_flags: <defaults>
</compile_context>

<pallas_src>
import functools

import jax
import jax.numpy as jnp
from jax import lax
from jax.experimental import pallas as pl
from jax.experimental.pallas import tpu as pltpu


def _sigmoid(v):
    return 1.0 / (1.0 + jnp.exp(-v))


# ----------------------------- Pallas kernel --------------------------------
def cbam_kernel(x_ref, w1_ref, w2_ref, wsp_ref, bsp_ref, o_ref, *, H, W):
    """x_ref / o_ref: (N, C, H*W) in VMEM (pixels on lanes).
    w1_ref, w2_ref: (C, Cr) in VMEM (channel-attention MLP weights).
    wsp_ref: (2, 49) and bsp_ref: (1,) in SMEM (7x7 spatial-conv weights/bias).
    """
    N, C, P = x_ref.shape
    Cr = w1_ref.shape[1]
    KS = 7
    PADF = 3 * W + 3                       # flat offset of tap (dh, dw) = (-3, -3)

    x = x_ref[...].astype(jnp.float32)     # (N, C, P)

    # ---------------- channel attention ----------------
    avg = jnp.mean(x, axis=2, keepdims=True)   # (N, C, 1)  lane reduction
    mxv = jnp.max(x, axis=2, keepdims=True)    # (N, C, 1)

    def shared_mlp(v):                         # v: (N, C, 1)
        z = None
        for j in range(Cr):                    # Cr = C // ratio (tiny)
            w1j = w1_ref[:, j:j + 1][None]     # (1, C, 1)
            hj = jnp.sum(v * w1j, axis=1, keepdims=True)   # (N, 1, 1)
            hj = jnp.maximum(hj, 0.0)                      # ReLU
            w2j = w2_ref[:, j:j + 1][None]     # (1, C, 1)
            t = hj * w2j                       # (N, C, 1)
            z = t if z is None else z + t
        return z

    ca = _sigmoid(shared_mlp(avg) + shared_mlp(mxv))   # (N, C, 1)
    out1 = x * ca                                      # (N, C, P)

    # ---------------- spatial attention ----------------
    asp = jnp.mean(out1, axis=1, keepdims=True)        # (N, 1, P)  sublane red.
    msp = jnp.max(out1, axis=1, keepdims=True)         # (N, 1, P)
    pa = jnp.pad(asp, ((0, 0), (0, 0), (PADF, PADF)))  # (N, 1, P + 6W + 6)
    pm = jnp.pad(msp, ((0, 0), (0, 0), (PADF, PADF)))

    # Column-validity masks for each horizontal tap offset; vertical (row)
    # offsets are handled entirely by the flat zero padding above.
    w_idx = lax.broadcasted_iota(jnp.int32, (1, 1, P), 2) % W
    col_mask = [
        jnp.where((w_idx + dw >= 0) & (w_idx + dw < W), 1.0, 0.0)
        for dw in range(-3, 4)
    ]

    acc = None
    for dh in range(-3, 4):
        for dw in range(-3, 4):
            k = (dh + 3) * KS + (dw + 3)
            off = PADF + dh * W + dw
            tap = (pa[:, :, off:off + P] * wsp_ref[0, k]
                   + pm[:, :, off:off + P] * wsp_ref[1, k]) * col_mask[dw + 3]
            acc = tap if acc is None else acc + tap

    sa = _sigmoid(acc + bsp_ref[0])                    # (N, 1, P)
    o_ref[...] = (out1 * sa).astype(o_ref.dtype)


# ------------------------------ wrapper --------------------------------------
def cbam_pallas(x_nchw, w1_t, w2_t, wsp_t, bsp):
    """CBAM forward.
    x_nchw: (N, C, H, W)
    w1_t:   (Cr, C)      ChannelAttention conv1 weight (torch layout, squeezed)
    w2_t:   (C, Cr)      ChannelAttention conv2 weight (torch layout, squeezed)
    wsp_t:  (1, 2, 7, 7) SpatialAttention conv weight (torch OIHW)
    bsp:    (1,)         SpatialAttention conv bias
    """
    N, C, H, W = x_nchw.shape
    Cr = w1_t.shape[0]
    assert Cr >= 1 and w1_t.shape == (Cr, C) and w2_t.shape == (C, Cr)
    assert wsp_t.shape == (1, 2, 7, 7) and bsp.shape == (1,)
    P = H * W

    x = x_nchw.reshape(N, C, P)            # free host-side reshape (NCHW is contiguous)
    w1 = jnp.transpose(w1_t)               # (C, Cr)
    w2 = w2_t                              # (C, Cr)
    wsp = wsp_t.reshape(2, 49)             # (in_channel, kh*7 + kw)

    out = pl.pallas_call(
        functools.partial(cbam_kernel, H=H, W=W),
        out_shape=jax.ShapeDtypeStruct((N, C, P), x_nchw.dtype),
        in_specs=[
            pl.BlockSpec(memory_space=pltpu.MemorySpace.VMEM),   # x
            pl.BlockSpec(memory_space=pltpu.MemorySpace.VMEM),   # mlp w1
            pl.BlockSpec(memory_space=pltpu.MemorySpace.VMEM),   # mlp w2
            pl.BlockSpec(memory_space=pltpu.MemorySpace.SMEM),   # 7x7 weights
            pl.BlockSpec(memory_space=pltpu.MemorySpace.SMEM),   # 7x7 bias
        ],
        out_specs=pl.BlockSpec(memory_space=pltpu.MemorySpace.VMEM),
    )(x, w1, w2, wsp, bsp)
    return out.reshape(N, C, H, W)


# --------------------------- pure-JAX reference -------------------------------
def cbam_ref(x, w1_t, w2_t, wsp_t, bsp):
    avg = jnp.mean(x, axis=(2, 3))
    mxv = jnp.max(x, axis=(2, 3))

    def mlp(v):                                     # v: (N, C)
        h = jnp.maximum(jnp.einsum('nc,jc->nj', v, w1_t), 0.0)
        return jnp.einsum('nj,cj->nc', h, w2_t)

    ca = _sigmoid(mlp(avg) + mlp(mxv))[:, :, None, None]
    out1 = x * ca

    asp = jnp.mean(out1, axis=1, keepdims=True)
    msp = jnp.max(out1, axis=1, keepdims=True)
    sp = jnp.concatenate([asp, msp], axis=1)        # (N, 2, H, W)
    conv = lax.conv_general_dilated(
        sp, wsp_t, window_strides=(1, 1), padding=((3, 3), (3, 3)),
        dimension_numbers=('NCHW', 'OIHW', 'NCHW'))
    sa = _sigmoid(conv + bsp.reshape(1, 1, 1, 1))
    return out1 * sa


# --------------------------------- main ---------------------------------------
if __name__ == "__main__":
    # CBAM(channel=32), default ratio=16 -> hidden = 32 // 16 = 2
    N, C, H, W = 2, 32, 16, 16
    ratio = 16
    Cr = C // ratio

    key = jax.random.PRNGKey(0)
    kx, k1, k2, k3, k4 = jax.random.split(key, 5)

    x = jax.random.normal(kx, (N, C, H, W), jnp.float32)
    w1_t = 0.2 * jax.random.normal(k1, (Cr, C), jnp.float32)
    w2_t = 0.2 * jax.random.normal(k2, (C, Cr), jnp.float32)
    wsp_t = 0.2 * jax.random.normal(k3, (1, 2, 7, 7), jnp.float32)
    bsp = 0.2 * jax.random.normal(k4, (1,), jnp.float32)

    out = cbam_pallas(x, w1_t, w2_t, wsp_t, bsp)
    out = jax.block_until_ready(out)

    ref = cbam_ref(x, w1_t, w2_t, wsp_t, bsp)
    if not jnp.allclose(out, ref, atol=1e-4, rtol=1e-4):
        err = float(jnp.max(jnp.abs(out - ref)))
        raise AssertionError(f"Pallas CBAM mismatch vs JAX reference (max abs err {err})")

    print("KERNEL_OK")
</pallas_src>

<mosaic_0001>
module attributes {stable_mosaic.version = 11 : i64} {
  func.func @cbam_kernel(%arg0: memref<2x32x256xf32, #tpu.memory_space<vmem>>, %arg1: memref<32x2xf32, #tpu.memory_space<vmem>>, %arg2: memref<32x2xf32, #tpu.memory_space<vmem>>, %arg3: memref<2x49xf32, #tpu.memory_space<smem>>, %arg4: memref<1xf32, #tpu.memory_space<smem>>, %arg5: memref<2x32x256xf32, #tpu.memory_space<vmem>>) attributes {dimension_semantics = [], scalar_prefetch = 0 : i64, scratch_operands = 0 : i64, tpu.core_type = #tpu.core_type<tc>} {
    %c0 = arith.constant 0 : index
    %c0_0 = arith.constant 0 : index
    %c0_1 = arith.constant 0 : index
    %0 = vector.load %arg0[%c0, %c0_0, %c0_1] : memref<2x32x256xf32, #tpu.memory_space<vmem>>, vector<2x32x256xf32>
    %cst = arith.constant dense<0.000000e+00> : vector<2x32xf32>
    %1 = vector.multi_reduction <add>, %0, %cst [2] : vector<2x32x256xf32> to vector<2x32xf32>
    %2 = vector.shape_cast %1 : vector<2x32xf32> to vector<2x32x1xf32>
    %cst_2 = arith.constant 2.560000e+02 : f32
    %3 = vector.broadcast %cst_2 : f32 to vector<2x32x1xf32>
    %4 = arith.divf %2, %3 : vector<2x32x1xf32>
    %cst_3 = arith.constant dense<0xFF800000> : vector<2x32xf32>
    %5 = vector.multi_reduction <maximumf>, %0, %cst_3 [2] : vector<2x32x256xf32> to vector<2x32xf32>
    %6 = vector.shape_cast %5 : vector<2x32xf32> to vector<2x32x1xf32>
    %c0_4 = arith.constant 0 : index
    %c0_5 = arith.constant 0 : index
    %7 = vector.load %arg1[%c0_4, %c0_5] : memref<32x2xf32, #tpu.memory_space<vmem>>, vector<32x1xf32>
    %8 = vector.shape_cast %7 : vector<32x1xf32> to vector<1x32x1xf32>
    %9 = vector.broadcast %8 : vector<1x32x1xf32> to vector<2x32x1xf32>
    %10 = arith.mulf %4, %9 : vector<2x32x1xf32>
    %cst_6 = arith.constant dense<0.000000e+00> : vector<2x1xf32>
    %11 = vector.multi_reduction <add>, %10, %cst_6 [1] : vector<2x32x1xf32> to vector<2x1xf32>
    %12 = vector.shape_cast %11 : vector<2x1xf32> to vector<2x1x1xf32>
    %cst_7 = arith.constant 0.000000e+00 : f32
    %13 = vector.broadcast %cst_7 : f32 to vector<2x1x1xf32>
    %14 = arith.maximumf %12, %13 : vector<2x1x1xf32>
    %c0_8 = arith.constant 0 : index
    %c0_9 = arith.constant 0 : index
    %15 = vector.load %arg2[%c0_8, %c0_9] : memref<32x2xf32, #tpu.memory_space<vmem>>, vector<32x1xf32>
    %16 = vector.shape_cast %15 : vector<32x1xf32> to vector<1x32x1xf32>
    %17 = vector.broadcast %14 : vector<2x1x1xf32> to vector<2x32x1xf32>
    %18 = vector.broadcast %16 : vector<1x32x1xf32> to vector<2x32x1xf32>
    %19 = arith.mulf %17, %18 : vector<2x32x1xf32>
    %c0_10 = arith.constant 0 : index
    %c1 = arith.constant 1 : index
    %20 = vector.load %arg1[%c0_10, %c1] : memref<32x2xf32, #tpu.memory_space<vmem>>, vector<32x1xf32>
    %21 = vector.shape_cast %20 : vector<32x1xf32> to vector<1x32x1xf32>
    %22 = vector.broadcast %21 : vector<1x32x1xf32> to vector<2x32x1xf32>
    %23 = arith.mulf %4, %22 : vector<2x32x1xf32>
    %cst_11 = arith.constant dense<0.000000e+00> : vector<2x1xf32>
    %24 = vector.multi_reduction <add>, %23, %cst_11 [1] : vector<2x32x1xf32> to vector<2x1xf32>
    %25 = vector.shape_cast %24 : vector<2x1xf32> to vector<2x1x1xf32>
    %cst_12 = arith.constant 0.000000e+00 : f32
    %26 = vector.broadcast %cst_12 : f32 to vector<2x1x1xf32>
    %27 = arith.maximumf %25, %26 : vector<2x1x1xf32>
    %c0_13 = arith.constant 0 : index
    %c1_14 = arith.constant 1 : index
    %28 = vector.load %arg2[%c0_13, %c1_14] : memref<32x2xf32, #tpu.memory_space<vmem>>, vector<32x1xf32>
    %29 = vector.shape_cast %28 : vector<32x1xf32> to vector<1x32x1xf32>
    %30 = vector.broadcast %27 : vector<2x1x1xf32> to vector<2x32x1xf32>
    %31 = vector.broadcast %29 : vector<1x32x1xf32> to vector<2x32x1xf32>
    %32 = arith.mulf %30, %31 : vector<2x32x1xf32>
    %33 = arith.addf %19, %32 : vector<2x32x1xf32>
    %c0_15 = arith.constant 0 : index
    %c0_16 = arith.constant 0 : index
    %34 = vector.load %arg1[%c0_15, %c0_16] : memref<32x2xf32, #tpu.memory_space<vmem>>, vector<32x1xf32>
    %35 = vector.shape_cast %34 : vector<32x1xf32> to vector<1x32x1xf32>
    %36 = vector.broadcast %35 : vector<1x32x1xf32> to vector<2x32x1xf32>
    %37 = arith.mulf %6, %36 : vector<2x32x1xf32>
    %cst_17 = arith.constant dense<0.000000e+00> : vector<2x1xf32>
    %38 = vector.multi_reduction <add>, %37, %cst_17 [1] : vector<2x32x1xf32> to vector<2x1xf32>
    %39 = vector.shape_cast %38 : vector<2x1xf32> to vector<2x1x1xf32>
    %cst_18 = arith.constant 0.000000e+00 : f32
    %40 = vector.broadcast %cst_18 : f32 to vector<2x1x1xf32>
    %41 = arith.maximumf %39, %40 : vector<2x1x1xf32>
    %c0_19 = arith.constant 0 : index
    %c0_20 = arith.constant 0 : index
    %42 = vector.load %arg2[%c0_19, %c0_20] : memref<32x2xf32, #tpu.memory_space<vmem>>, vector<32x1xf32>
    %43 = vector.shape_cast %42 : vector<32x1xf32> to vector<1x32x1xf32>
    %44 = vector.broadcast %41 : vector<2x1x1xf32> to vector<2x32x1xf32>
    %45 = vector.broadcast %43 : vector<1x32x1xf32> to vector<2x32x1xf32>
    %46 = arith.mulf %44, %45 : vector<2x32x1xf32>
    %c0_21 = arith.constant 0 : index
    %c1_22 = arith.constant 1 : index
    %47 = vector.load %arg1[%c0_21, %c1_22] : memref<32x2xf32, #tpu.memory_space<vmem>>, vector<32x1xf32>
    %48 = vector.shape_cast %47 : vector<32x1xf32> to vector<1x32x1xf32>
    %49 = vector.broadcast %48 : vector<1x32x1xf32> to vector<2x32x1xf32>
    %50 = arith.mulf %6, %49 : vector<2x32x1xf32>
    %cst_23 = arith.constant dense<0.000000e+00> : vector<2x1xf32>
    %51 = vector.multi_reduction <add>, %50, %cst_23 [1] : vector<2x32x1xf32> to vector<2x1xf32>
    %52 = vector.shape_cast %51 : vector<2x1xf32> to vector<2x1x1xf32>
    %cst_24 = arith.constant 0.000000e+00 : f32
    %53 = vector.broadcast %cst_24 : f32 to vector<2x1x1xf32>
    %54 = arith.maximumf %52, %53 : vector<2x1x1xf32>
    %c0_25 = arith.constant 0 : index
    %c1_26 = arith.constant 1 : index
    %55 = vector.load %arg2[%c0_25, %c1_26] : memref<32x2xf32, #tpu.memory_space<vmem>>, vector<32x1xf32>
    %56 = vector.shape_cast %55 : vector<32x1xf32> to vector<1x32x1xf32>
    %57 = vector.broadcast %54 : vector<2x1x1xf32> to vector<2x32x1xf32>
    %58 = vector.broadcast %56 : vector<1x32x1xf32> to vector<2x32x1xf32>
    %59 = arith.mulf %57, %58 : vector<2x32x1xf32>
    %60 = arith.addf %46, %59 : vector<2x32x1xf32>
    %61 = arith.addf %33, %60 : vector<2x32x1xf32>
    %cst_27 = arith.constant 0.000000e+00 : f32
    %62 = vector.broadcast %cst_27 : f32 to vector<2x32x1xf32>
    %63 = arith.subf %62, %61 : vector<2x32x1xf32>
    %64 = math.exp %63 : vector<2x32x1xf32>
    %cst_28 = arith.constant 1.000000e+00 : f32
    %65 = vector.broadcast %cst_28 : f32 to vector<2x32x1xf32>
    %66 = arith.addf %65, %64 : vector<2x32x1xf32>
    %cst_29 = arith.constant 1.000000e+00 : f32
    %67 = vector.broadcast %cst_29 : f32 to vector<2x32x1xf32>
    %68 = arith.divf %67, %66 : vector<2x32x1xf32>
    %69 = vector.broadcast %68 : vector<2x32x1xf32> to vector<2x32x256xf32>
    %70 = arith.mulf %0, %69 : vector<2x32x256xf32>
    %cst_30 = arith.constant dense<0.000000e+00> : vector<2x256xf32>
    %71 = vector.multi_reduction <add>, %70, %cst_30 [1] : vector<2x32x256xf32> to vector<2x256xf32>
    %72 = vector.shape_cast %71 : vector<2x256xf32> to vector<2x1x256xf32>
    %cst_31 = arith.constant 3.200000e+01 : f32
    %73 = vector.broadcast %cst_31 : f32 to vector<2x1x256xf32>
    %74 = arith.divf %72, %73 : vector<2x1x256xf32>
    %cst_32 = arith.constant dense<0xFF800000> : vector<2x256xf32>
    %75 = vector.multi_reduction <maximumf>, %70, %cst_32 [1] : vector<2x32x256xf32> to vector<2x256xf32>
    %76 = vector.shape_cast %75 : vector<2x256xf32> to vector<2x1x256xf32>
    %c0_i32 = arith.constant 0 : i32
    %77 = arith.sitofp %c0_i32 : i32 to f32
    %78 = vector.broadcast %77 : f32 to vector<2x1x51xf32>
    %79 = tpu.concatenate %78, %74 in 2 : vector<2x1x51xf32>, vector<2x1x256xf32> -> vector<2x1x307xf32>
    %80 = vector.broadcast %77 : f32 to vector<2x1x51xf32>
    %81 = tpu.concatenate %79, %80 in 2 : vector<2x1x307xf32>, vector<2x1x51xf32> -> vector<2x1x358xf32>
    %c0_i32_33 = arith.constant 0 : i32
    %82 = arith.sitofp %c0_i32_33 : i32 to f32
    %83 = vector.broadcast %82 : f32 to vector<2x1x51xf32>
    %84 = tpu.concatenate %83, %76 in 2 : vector<2x1x51xf32>, vector<2x1x256xf32> -> vector<2x1x307xf32>
    %85 = vector.broadcast %82 : f32 to vector<2x1x51xf32>
    %86 = tpu.concatenate %84, %85 in 2 : vector<2x1x307xf32>, vector<2x1x51xf32> -> vector<2x1x358xf32>
    %87 = tpu.iota {dimensions = array<i32: 2>} : vector<1x1x256xi32>
    %c16_i32 = arith.constant 16 : i32
    %c0_i32_34 = arith.constant 0 : i32
    %88 = arith.cmpi eq, %c16_i32, %c0_i32_34 : i32
    %c1_i32 = arith.constant 1 : i32
    %89 = arith.select %88, %c1_i32, %c16_i32 : i32
    %90 = vector.broadcast %89 : i32 to vector<1x1x256xi32>
    %91 = arith.remsi %87, %90 : vector<1x1x256xi32>
    %c0_i32_35 = arith.constant 0 : i32
    %92 = vector.broadcast %c0_i32_35 : i32 to vector<1x1x256xi32>
    %93 = arith.cmpi ne, %91, %92 : vector<1x1x256xi32>
    %c0_i32_36 = arith.constant 0 : i32
    %94 = vector.broadcast %c0_i32_36 : i32 to vector<1x1x256xi32>
    %95 = arith.cmpi slt, %91, %94 : vector<1x1x256xi32>
    %c0_i32_37 = arith.constant 0 : i32
    %96 = arith.cmpi slt, %89, %c0_i32_37 : i32
    %97 = vector.broadcast %96 : i1 to vector<1x1x256xi1>
    %98 = vector.broadcast %97 : vector<1x1x256xi1> to vector<1x1x256xi1>
    %99 = arith.xori %95, %98 : vector<1x1x256xi1>
    %100 = arith.andi %99, %93 : vector<1x1x256xi1>
    %101 = vector.broadcast %89 : i32 to vector<1x1x256xi32>
    %102 = arith.addi %91, %101 : vector<1x1x256xi32>
    %103 = arith.select %100, %102, %91 : vector<1x1x256xi1>, vector<1x1x256xi32>
    %c-3_i32 = arith.constant -3 : i32
    %104 = vector.broadcast %c-3_i32 : i32 to vector<1x1x256xi32>
    %105 = arith.addi %103, %104 : vector<1x1x256xi32>
    %c0_i32_38 = arith.constant 0 : i32
    %106 = vector.broadcast %c0_i32_38 : i32 to vector<1x1x256xi32>
    %107 = arith.cmpi sge, %105, %106 : vector<1x1x256xi32>
    %c-3_i32_39 = arith.constant -3 : i32
    %108 = vector.broadcast %c-3_i32_39 : i32 to vector<1x1x256xi32>
    %109 = arith.addi %103, %108 : vector<1x1x256xi32>
    %c16_i32_40 = arith.constant 16 : i32
    %110 = vector.broadcast %c16_i32_40 : i32 to vector<1x1x256xi32>
    %111 = arith.cmpi slt, %109, %110 : vector<1x1x256xi32>
    %112 = arith.andi %107, %111 : vector<1x1x256xi1>
    %cst_41 = arith.constant 1.000000e+00 : f32
    %cst_42 = arith.constant 0.000000e+00 : f32
    %113 = vector.broadcast %cst_41 : f32 to vector<1x1x256xf32>
    %114 = vector.broadcast %cst_42 : f32 to vector<1x1x256xf32>
    %115 = arith.select %112, %113, %114 : vector<1x1x256xi1>, vector<1x1x256xf32>
    %c-2_i32 = arith.constant -2 : i32
    %116 = vector.broadcast %c-2_i32 : i32 to vector<1x1x256xi32>
    %117 = arith.addi %103, %116 : vector<1x1x256xi32>
    %c0_i32_43 = arith.constant 0 : i32
    %118 = vector.broadcast %c0_i32_43 : i32 to vector<1x1x256xi32>
    %119 = arith.cmpi sge, %117, %118 : vector<1x1x256xi32>
    %c-2_i32_44 = arith.constant -2 : i32
    %120 = vector.broadcast %c-2_i32_44 : i32 to vector<1x1x256xi32>
    %121 = arith.addi %103, %120 : vector<1x1x256xi32>
    %c16_i32_45 = arith.constant 16 : i32
    %122 = vector.broadcast %c16_i32_45 : i32 to vector<1x1x256xi32>
    %123 = arith.cmpi slt, %121, %122 : vector<1x1x256xi32>
    %124 = arith.andi %119, %123 : vector<1x1x256xi1>
    %cst_46 = arith.constant 1.000000e+00 : f32
    %cst_47 = arith.constant 0.000000e+00 : f32
    %125 = vector.broadcast %cst_46 : f32 to vector<1x1x256xf32>
    %126 = vector.broadcast %cst_47 : f32 to vector<1x1x256xf32>
    %127 = arith.select %124, %125, %126 : vector<1x1x256xi1>, vector<1x1x256xf32>
    %c-1_i32 = arith.constant -1 : i32
    %128 = vector.broadcast %c-1_i32 : i32 to vector<1x1x256xi32>
    %129 = arith.addi %103, %128 : vector<1x1x256xi32>
    %c0_i32_48 = arith.constant 0 : i32
    %130 = vector.broadcast %c0_i32_48 : i32 to vector<1x1x256xi32>
    %131 = arith.cmpi sge, %129, %130 : vector<1x1x256xi32>
    %c-1_i32_49 = arith.constant -1 : i32
    %132 = vector.broadcast %c-1_i32_49 : i32 to vector<1x1x256xi32>
    %133 = arith.addi %103, %132 : vector<1x1x256xi32>
    %c16_i32_50 = arith.constant 16 : i32
    %134 = vector.broadcast %c16_i32_50 : i32 to vector<1x1x256xi32>
    %135 = arith.cmpi slt, %133, %134 : vector<1x1x256xi32>
    %136 = arith.andi %131, %135 : vector<1x1x256xi1>
    %cst_51 = arith.constant 1.000000e+00 : f32
    %cst_52 = arith.constant 0.000000e+00 : f32
    %137 = vector.broadcast %cst_51 : f32 to vector<1x1x256xf32>
    %138 = vector.broadcast %cst_52 : f32 to vector<1x1x256xf32>
    %139 = arith.select %136, %137, %138 : vector<1x1x256xi1>, vector<1x1x256xf32>
    %c0_i32_53 = arith.constant 0 : i32
    %140 = vector.broadcast %c0_i32_53 : i32 to vector<1x1x256xi32>
    %141 = arith.addi %103, %140 : vector<1x1x256xi32>
    %c0_i32_54 = arith.constant 0 : i32
    %142 = vector.broadcast %c0_i32_54 : i32 to vector<1x1x256xi32>
    %143 = arith.cmpi sge, %141, %142 : vector<1x1x256xi32>
    %c0_i32_55 = arith.constant 0 : i32
    %144 = vector.broadcast %c0_i32_55 : i32 to vector<1x1x256xi32>
    %145 = arith.addi %103, %144 : vector<1x1x256xi32>
    %c16_i32_56 = arith.constant 16 : i32
    %146 = vector.broadcast %c16_i32_56 : i32 to vector<1x1x256xi32>
    %147 = arith.cmpi slt, %145, %146 : vector<1x1x256xi32>
    %148 = arith.andi %143, %147 : vector<1x1x256xi1>
    %cst_57 = arith.constant 1.000000e+00 : f32
    %cst_58 = arith.constant 0.000000e+00 : f32
    %149 = vector.broadcast %cst_57 : f32 to vector<1x1x256xf32>
    %150 = vector.broadcast %cst_58 : f32 to vector<1x1x256xf32>
    %151 = arith.select %148, %149, %150 : vector<1x1x256xi1>, vector<1x1x256xf32>
    %c1_i32_59 = arith.constant 1 : i32
    %152 = vector.broadcast %c1_i32_59 : i32 to vector<1x1x256xi32>
    %153 = arith.addi %103, %152 : vector<1x1x256xi32>
    %c0_i32_60 = arith.constant 0 : i32
    %154 = vector.broadcast %c0_i32_60 : i32 to vector<1x1x256xi32>
    %155 = arith.cmpi sge, %153, %154 : vector<1x1x256xi32>
    %c1_i32_61 = arith.constant 1 : i32
    %156 = vector.broadcast %c1_i32_61 : i32 to vector<1x1x256xi32>
    %157 = arith.addi %103, %156 : vector<1x1x256xi32>
    %c16_i32_62 = arith.constant 16 : i32
    %158 = vector.broadcast %c16_i32_62 : i32 to vector<1x1x256xi32>
    %159 = arith.cmpi slt, %157, %158 : vector<1x1x256xi32>
    %160 = arith.andi %155, %159 : vector<1x1x256xi1>
    %cst_63 = arith.constant 1.000000e+00 : f32
    %cst_64 = arith.constant 0.000000e+00 : f32
    %161 = vector.broadcast %cst_63 : f32 to vector<1x1x256xf32>
    %162 = vector.broadcast %cst_64 : f32 to vector<1x1x256xf32>
    %163 = arith.select %160, %161, %162 : vector<1x1x256xi1>, vector<1x1x256xf32>
    %c2_i32 = arith.constant 2 : i32
    %164 = vector.broadcast %c2_i32 : i32 to vector<1x1x256xi32>
    %165 = arith.addi %103, %164 : vector<1x1x256xi32>
    %c0_i32_65 = arith.constant 0 : i32
    %166 = vector.broadcast %c0_i32_65 : i32 to vector<1x1x256xi32>
    %167 = arith.cmpi sge, %165, %166 : vector<1x1x256xi32>
    %c2_i32_66 = arith.constant 2 : i32
    %168 = vector.broadcast %c2_i32_66 : i32 to vector<1x1x256xi32>
    %169 = arith.addi %103, %168 : vector<1x1x256xi32>
    %c16_i32_67 = arith.constant 16 : i32
    %170 = vector.broadcast %c16_i32_67 : i32 to vector<1x1x256xi32>
    %171 = arith.cmpi slt, %169, %170 : vector<1x1x256xi32>
    %172 = arith.andi %167, %171 : vector<1x1x256xi1>
    %cst_68 = arith.constant 1.000000e+00 : f32
    %cst_69 = arith.constant 0.000000e+00 : f32
    %173 = vector.broadcast %cst_68 : f32 to vector<1x1x256xf32>
    %174 = vector.broadcast %cst_69 : f32 to vector<1x1x256xf32>
    %175 = arith.select %172, %173, %174 : vector<1x1x256xi1>, vector<1x1x256xf32>
    %c3_i32 = arith.constant 3 : i32
    %176 = vector.broadcast %c3_i32 : i32 to vector<1x1x256xi32>
    %177 = arith.addi %103, %176 : vector<1x1x256xi32>
    %c0_i32_70 = arith.constant 0 : i32
    %178 = vector.broadcast %c0_i32_70 : i32 to vector<1x1x256xi32>
    %179 = arith.cmpi sge, %177, %178 : vector<1x1x256xi32>
    %c3_i32_71 = arith.constant 3 : i32
    %180 = vector.broadcast %c3_i32_71 : i32 to vector<1x1x256xi32>
    %181 = arith.addi %103, %180 : vector<1x1x256xi32>
    %c16_i32_72 = arith.constant 16 : i32
    %182 = vector.broadcast %c16_i32_72 : i32 to vector<1x1x256xi32>
    %183 = arith.cmpi slt, %181, %182 : vector<1x1x256xi32>
    %184 = arith.andi %179, %183 : vector<1x1x256xi1>
    %cst_73 = arith.constant 1.000000e+00 : f32
    %cst_74 = arith.constant 0.000000e+00 : f32
    %185 = vector.broadcast %cst_73 : f32 to vector<1x1x256xf32>
    %186 = vector.broadcast %cst_74 : f32 to vector<1x1x256xf32>
    %187 = arith.select %184, %185, %186 : vector<1x1x256xi1>, vector<1x1x256xf32>
    %188 = vector.extract_strided_slice %81 {offsets = [0, 0, 0], sizes = [2, 1, 256], strides = [1, 1, 1]} : vector<2x1x358xf32> to vector<2x1x256xf32>
    %c0_75 = arith.constant 0 : index
    %c0_76 = arith.constant 0 : index
    %189 = memref.load %arg3[%c0_75, %c0_76] : memref<2x49xf32, #tpu.memory_space<smem>>
    %190 = vector.broadcast %189 : f32 to vector<2x1x256xf32>
    %191 = arith.mulf %188, %190 : vector<2x1x256xf32>
    %192 = vector.extract_strided_slice %86 {offsets = [0, 0, 0], sizes = [2, 1, 256], strides = [1, 1, 1]} : vector<2x1x358xf32> to vector<2x1x256xf32>
    %c1_77 = arith.constant 1 : index
    %c0_78 = arith.constant 0 : index
    %193 = memref.load %arg3[%c1_77, %c0_78] : memref<2x49xf32, #tpu.memory_space<smem>>
    %194 = vector.broadcast %193 : f32 to vector<2x1x256xf32>
    %195 = arith.mulf %192, %194 : vector<2x1x256xf32>
    %196 = arith.addf %191, %195 : vector<2x1x256xf32>
    %197 = vector.broadcast %115 : vector<1x1x256xf32> to vector<2x1x256xf32>
    %198 = arith.mulf %196, %197 : vector<2x1x256xf32>
    %199 = vector.extract_strided_slice %81 {offsets = [0, 0, 1], sizes = [2, 1, 256], strides = [1, 1, 1]} : vector<2x1x358xf32> to vector<2x1x256xf32>
    %c0_79 = arith.constant 0 : index
    %c1_80 = arith.constant 1 : index
    %200 = memref.load %arg3[%c0_79, %c1_80] : memref<2x49xf32, #tpu.memory_space<smem>>
    %201 = vector.broadcast %200 : f32 to vector<2x1x256xf32>
    %202 = arith.mulf %199, %201 : vector<2x1x256xf32>
    %203 = vector.extract_strided_slice %86 {offsets = [0, 0, 1], sizes = [2, 1, 256], strides = [1, 1, 1]} : vector<2x1x358xf32> to vector<2x1x256xf32>
    %c1_81 = arith.constant 1 : index
    %c1_82 = arith.constant 1 : index
    %204 = memref.load %arg3[%c1_81, %c1_82] : memref<2x49xf32, #tpu.memory_space<smem>>
    %205 = vector.broadcast %204 : f32 to vector<2x1x256xf32>
    %206 = arith.mulf %203, %205 : vector<2x1x256xf32>
    %207 = arith.addf %202, %206 : vector<2x1x256xf32>
    %208 = vector.broadcast %127 : vector<1x1x256xf32> to vector<2x1x256xf32>
    %209 = arith.mulf %207, %208 : vector<2x1x256xf32>
    %210 = arith.addf %198, %209 : vector<2x1x256xf32>
    %211 = vector.extract_strided_slice %81 {offsets = [0, 0, 2], sizes = [2, 1, 256], strides = [1, 1, 1]} : vector<2x1x358xf32> to vector<2x1x256xf32>
    %c0_83 = arith.constant 0 : index
    %c2 = arith.constant 2 : index
    %212 = memref.load %arg3[%c0_83, %c2] : memref<2x49xf32, #tpu.memory_space<smem>>
    %213 = vector.broadcast %212 : f32 to vector<2x1x256xf32>
    %214 = arith.mulf %211, %213 : vector<2x1x256xf32>
    %215 = vector.extract_strided_slice %86 {offsets = [0, 0, 2], sizes = [2, 1, 256], strides = [1, 1, 1]} : vector<2x1x358xf32> to vector<2x1x256xf32>
    %c1_84 = arith.constant 1 : index
    %c2_85 = arith.constant 2 : index
    %216 = memref.load %arg3[%c1_84, %c2_85] : memref<2x49xf32, #tpu.memory_space<smem>>
    %217 = vector.broadcast %216 : f32 to vector<2x1x256xf32>
    %218 = arith.mulf %215, %217 : vector<2x1x256xf32>
    %219 = arith.addf %214, %218 : vector<2x1x256xf32>
    %220 = vector.broadcast %139 : vector<1x1x256xf32> to vector<2x1x256xf32>
    %221 = arith.mulf %219, %220 : vector<2x1x256xf32>
    %222 = arith.addf %210, %221 : vector<2x1x256xf32>
    %223 = vector.extract_strided_slice %81 {offsets = [0, 0, 3], sizes = [2, 1, 256], strides = [1, 1, 1]} : vector<2x1x358xf32> to vector<2x1x256xf32>
    %c0_86 = arith.constant 0 : index
    %c3 = arith.constant 3 : index
    %224 = memref.load %arg3[%c0_86, %c3] : memref<2x49xf32, #tpu.memory_space<smem>>
    %225 = vector.broadcast %224 : f32 to vector<2x1x256xf32>
    %226 = arith.mulf %223, %225 : vector<2x1x256xf32>
    %227 = vector.extract_strided_slice %86 {offsets = [0, 0, 3], sizes = [2, 1, 256], strides = [1, 1, 1]} : vector<2x1x358xf32> to vector<2x1x256xf32>
    %c1_87 = arith.constant 1 : index
    %c3_88 = arith.constant 3 : index
    %228 = memref.load %arg3[%c1_87, %c3_88] : memref<2x49xf32, #tpu.memory_space<smem>>
    %229 = vector.broadcast %228 : f32 to vector<2x1x256xf32>
    %230 = arith.mulf %227, %229 : vector<2x1x256xf32>
    %231 = arith.addf %226, %230 : vector<2x1x256xf32>
    %232 = vector.broadcast %151 : vector<1x1x256xf32> to vector<2x1x256xf32>
    %233 = arith.mulf %231, %232 : vector<2x1x256xf32>
    %234 = arith.addf %222, %233 : vector<2x1x256xf32>
    %235 = vector.extract_strided_slice %81 {offsets = [0, 0, 4], sizes = [2, 1, 256], strides = [1, 1, 1]} : vector<2x1x358xf32> to vector<2x1x256xf32>
    %c0_89 = arith.constant 0 : index
    %c4 = arith.constant 4 : index
    %236 = memref.load %arg3[%c0_89, %c4] : memref<2x49xf32, #tpu.memory_space<smem>>
    %237 = vector.broadcast %236 : f32 to vector<2x1x256xf32>
    %238 = arith.mulf %235, %237 : vector<2x1x256xf32>
    %239 = vector.extract_strided_slice %86 {offsets = [0, 0, 4], sizes = [2, 1, 256], strides = [1, 1, 1]} : vector<2x1x358xf32> to vector<2x1x256xf32>
    %c1_90 = arith.constant 1 : index
    %c4_91 = arith.constant 4 : index
    %240 = memref.load %arg3[%c1_90, %c4_91] : memref<2x49xf32, #tpu.memory_space<smem>>
    %241 = vector.broadcast %240 : f32 to vector<2x1x256xf32>
    %242 = arith.mulf %239, %241 : vector<2x1x256xf32>
    %243 = arith.addf %238, %242 : vector<2x1x256xf32>
    %244 = vector.broadcast %163 : vector<1x1x256xf32> to vector<2x1x256xf32>
    %245 = arith.mulf %243, %244 : vector<2x1x256xf32>
    %246 = arith.addf %234, %245 : vector<2x1x256xf32>
    %247 = vector.extract_strided_slice %81 {offsets = [0, 0, 5], sizes = [2, 1, 256], strides = [1, 1, 1]} : vector<2x1x358xf32> to vector<2x1x256xf32>
    %c0_92 = arith.constant 0 : index
    %c5 = arith.constant 5 : index
    %248 = memref.load %arg3[%c0_92, %c5] : memref<2x49xf32, #tpu.memory_space<smem>>
    %249 = vector.broadcast %248 : f32 to vector<2x1x256xf32>
    %250 = arith.mulf %247, %249 : vector<2x1x256xf32>
    %251 = vector.extract_strided_slice %86 {offsets = [0, 0, 5], sizes = [2, 1, 256], strides = [1, 1, 1]} : vector<2x1x358xf32> to vector<2x1x256xf32>
    %c1_93 = arith.constant 1 : index
    %c5_94 = arith.constant 5 : index
    %252 = memref.load %arg3[%c1_93, %c5_94] : memref<2x49xf32, #tpu.memory_space<smem>>
    %253 = vector.broadcast %252 : f32 to vector<2x1x256xf32>
    %254 = arith.mulf %251, %253 : vector<2x1x256xf32>
    %255 = arith.addf %250, %254 : vector<2x1x256xf32>
    %256 = vector.broadcast %175 : vector<1x1x256xf32> to vector<2x1x256xf32>
    %257 = arith.mulf %255, %256 : vector<2x1x256xf32>
    %258 = arith.addf %246, %257 : vector<2x1x256xf32>
    %259 = vector.extract_strided_slice %81 {offsets = [0, 0, 6], sizes = [2, 1, 256], strides = [1, 1, 1]} : vector<2x1x358xf32> to vector<2x1x256xf32>
    %c0_95 = arith.constant 0 : index
    %c6 = arith.constant 6 : index
    %260 = memref.load %arg3[%c0_95, %c6] : memref<2x49xf32, #tpu.memory_space<smem>>
    %261 = vector.broadcast %260 : f32 to vector<2x1x256xf32>
    %262 = arith.mulf %259, %261 : vector<2x1x256xf32>
    %263 = vector.extract_strided_slice %86 {offsets = [0, 0, 6], sizes = [2, 1, 256], strides = [1, 1, 1]} : vector<2x1x358xf32> to vector<2x1x256xf32>
    %c1_96 = arith.constant 1 : index
    %c6_97 = arith.constant 6 : index
    %264 = memref.load %arg3[%c1_96, %c6_97] : memref<2x49xf32, #tpu.memory_space<smem>>
    %265 = vector.broadcast %264 : f32 to vector<2x1x256xf32>
    %266 = arith.mulf %263, %265 : vector<2x1x256xf32>
    %267 = arith.addf %262, %266 : vector<2x1x256xf32>
    %268 = vector.broadcast %187 : vector<1x1x256xf32> to vector<2x1x256xf32>
    %269 = arith.mulf %267, %268 : vector<2x1x256xf32>
    %270 = arith.addf %258, %269 : vector<2x1x256xf32>
    %271 = vector.extract_strided_slice %81 {offsets = [0, 0, 16], sizes = [2, 1, 256], strides = [1, 1, 1]} : vector<2x1x358xf32> to vector<2x1x256xf32>
    %c0_98 = arith.constant 0 : index
    %c7 = arith.constant 7 : index
    %272 = memref.load %arg3[%c0_98, %c7] : memref<2x49xf32, #tpu.memory_space<smem>>
    %273 = vector.broadcast %272 : f32 to vector<2x1x256xf32>
    %274 = arith.mulf %271, %273 : vector<2x1x256xf32>
    %275 = vector.extract_strided_slice %86 {offsets = [0, 0, 16], sizes = [2, 1, 256], strides = [1, 1, 1]} : vector<2x1x358xf32> to vector<2x1x256xf32>
    %c1_99 = arith.constant 1 : index
    %c7_100 = arith.constant 7 : index
    %276 = memref.load %arg3[%c1_99, %c7_100] : memref<2x49xf32, #tpu.memory_space<smem>>
    %277 = vector.broadcast %276 : f32 to vector<2x1x256xf32>
    %278 = arith.mulf %275, %277 : vector<2x1x256xf32>
    %279 = arith.addf %274, %278 : vector<2x1x256xf32>
    %280 = vector.broadcast %115 : vector<1x1x256xf32> to vector<2x1x256xf32>
    %281 = arith.mulf %279, %280 : vector<2x1x256xf32>
    %282 = arith.addf %270, %281 : vector<2x1x256xf32>
    %283 = vector.extract_strided_slice %81 {offsets = [0, 0, 17], sizes = [2, 1, 256], strides = [1, 1, 1]} : vector<2x1x358xf32> to vector<2x1x256xf32>
    %c0_101 = arith.constant 0 : index
    %c8 = arith.constant 8 : index
    %284 = memref.load %arg3[%c0_101, %c8] : memref<2x49xf32, #tpu.memory_space<smem>>
    %285 = vector.broadcast %284 : f32 to vector<2x1x256xf32>
    %286 = arith.mulf %283, %285 : vector<2x1x256xf32>
    %287 = vector.extract_strided_slice %86 {offsets = [0, 0, 17], sizes = [2, 1, 256], strides = [1, 1, 1]} : vector<2x1x358xf32> to vector<2x1x256xf32>
    %c1_102 = arith.constant 1 : index
    %c8_103 = arith.constant 8 : index
    %288 = memref.load %arg3[%c1_102, %c8_103] : memref<2x49xf32, #tpu.memory_space<smem>>
    %289 = vector.broadcast %288 : f32 to vector<2x1x256xf32>
    %290 = arith.mulf %287, %289 : vector<2x1x256xf32>
    %291 = arith.addf %286, %290 : vector<2x1x256xf32>
    %292 = vector.broadcast %127 : vector<1x1x256xf32> to vector<2x1x256xf32>
    %293 = arith.mulf %291, %292 : vector<2x1x256xf32>
    %294 = arith.addf %282, %293 : vector<2x1x256xf32>
    %295 = vector.extract_strided_slice %81 {offsets = [0, 0, 18], sizes = [2, 1, 256], strides = [1, 1, 1]} : vector<2x1x358xf32> to vector<2x1x256xf32>
    %c0_104 = arith.constant 0 : index
    %c9 = arith.constant 9 : index
    %296 = memref.load %arg3[%c0_104, %c9] : memref<2x49xf32, #tpu.memory_space<smem>>
    %297 = vector.broadcast %296 : f32 to vector<2x1x256xf32>
    %298 = arith.mulf %295, %297 : vector<2x1x256xf32>
    %299 = vector.extract_strided_slice %86 {offsets = [0, 0, 18], sizes = [2, 1, 256], strides = [1, 1, 1]} : vector<2x1x358xf32> to vector<2x1x256xf32>
    %c1_105 = arith.constant 1 : index
    %c9_106 = arith.constant 9 : index
    %300 = memref.load %arg3[%c1_105, %c9_106] : memref<2x49xf32, #tpu.memory_space<smem>>
    %301 = vector.broadcast %300 : f32 to vector<2x1x256xf32>
    %302 = arith.mulf %299, %301 : vector<2x1x256xf32>
    %303 = arith.addf %298, %302 : vector<2x1x256xf32>
    %304 = vector.broadcast %139 : vector<1x1x256xf32> to vector<2x1x256xf32>
    %305 = arith.mulf %303, %304 : vector<2x1x256xf32>
    %306 = arith.addf %294, %305 : vector<2x1x256xf32>
    %307 = vector.extract_strided_slice %81 {offsets = [0, 0, 19], sizes = [2, 1, 256], strides = [1, 1, 1]} : vector<2x1x358xf32> to vector<2x1x256xf32>
    %c0_107 = arith.constant 0 : index
    %c10 = arith.constant 10 : index
    %308 = memref.load %arg3[%c0_107, %c10] : memref<2x49xf32, #tpu.memory_space<smem>>
    %309 = vector.broadcast %308 : f32 to vector<2x1x256xf32>
    %310 = arith.mulf %307, %309 : vector<2x1x256xf32>
    %311 = vector.extract_strided_slice %86 {offsets = [0, 0, 19], sizes = [2, 1, 256], strides = [1, 1, 1]} : vector<2x1x358xf32> to vector<2x1x256xf32>
    %c1_108 = arith.constant 1 : index
    %c10_109 = arith.constant 10 : index
    %312 = memref.load %arg3[%c1_108, %c10_109] : memref<2x49xf32, #tpu.memory_space<smem>>
    %313 = vector.broadcast %312 : f32 to vector<2x1x256xf32>
    %314 = arith.mulf %311, %313 : vector<2x1x256xf32>
    %315 = arith.addf %310, %314 : vector<2x1x256xf32>
    %316 = vector.broadcast %151 : vector<1x1x256xf32> to vector<2x1x256xf32>
    %317 = arith.mulf %315, %316 : vector<2x1x256xf32>
    %318 = arith.addf %306, %317 : vector<2x1x256xf32>
    %319 = vector.extract_strided_slice %81 {offsets = [0, 0, 20], sizes = [2, 1, 256], strides = [1, 1, 1]} : vector<2x1x358xf32> to vector<2x1x256xf32>
    %c0_110 = arith.constant 0 : index
    %c11 = arith.constant 11 : index
    %320 = memref.load %arg3[%c0_110, %c11] : memref<2x49xf32, #tpu.memory_space<smem>>
    %321 = vector.broadcast %320 : f32 to vector<2x1x256xf32>
    %322 = arith.mulf %319, %321 : vector<2x1x256xf32>
    %323 = vector.extract_strided_slice %86 {offsets = [0, 0, 20], sizes = [2, 1, 256], strides = [1, 1, 1]} : vector<2x1x358xf32> to vector<2x1x256xf32>
    %c1_111 = arith.constant 1 : index
    %c11_112 = arith.constant 11 : index
    %324 = memref.load %arg3[%c1_111, %c11_112] : memref<2x49xf32, #tpu.memory_space<smem>>
    %325 = vector.broadcast %324 : f32 to vector<2x1x256xf32>
    %326 = arith.mulf %323, %325 : vector<2x1x256xf32>
    %327 = arith.addf %322, %326 : vector<2x1x256xf32>
    %328 = vector.broadcast %163 : vector<1x1x256xf32> to vector<2x1x256xf32>
    %329 = arith.mulf %327, %328 : vector<2x1x256xf32>
    %330 = arith.addf %318, %329 : vector<2x1x256xf32>
    %331 = vector.extract_strided_slice %81 {offsets = [0, 0, 21], sizes = [2, 1, 256], strides = [1, 1, 1]} : vector<2x1x358xf32> to vector<2x1x256xf32>
    %c0_113 = arith.constant 0 : index
    %c12 = arith.constant 12 : index
    %332 = memref.load %arg3[%c0_113, %c12] : memref<2x49xf32, #tpu.memory_space<smem>>
    %333 = vector.broadcast %332 : f32 to vector<2x1x256xf32>
    %334 = arith.mulf %331, %333 : vector<2x1x256xf32>
    %335 = vector.extract_strided_slice %86 {offsets = [0, 0, 21], sizes = [2, 1, 256], strides = [1, 1, 1]} : vector<2x1x358xf32> to vector<2x1x256xf32>
    %c1_114 = arith.constant 1 : index
    %c12_115 = arith.constant 12 : index
    %336 = memref.load %arg3[%c1_114, %c12_115] : memref<2x49xf32, #tpu.memory_space<smem>>
    %337 = vector.broadcast %336 : f32 to vector<2x1x256xf32>
    %338 = arith.mulf %335, %337 : vector<2x1x256xf32>
    %339 = arith.addf %334, %338 : vector<2x1x256xf32>
    %340 = vector.broadcast %175 : vector<1x1x256xf32> to vector<2x1x256xf32>
    %341 = arith.mulf %339, %340 : vector<2x1x256xf32>
    %342 = arith.addf %330, %341 : vector<2x1x256xf32>
    %343 = vector.extract_strided_slice %81 {offsets = [0, 0, 22], sizes = [2, 1, 256], strides = [1, 1, 1]} : vector<2x1x358xf32> to vector<2x1x256xf32>
    %c0_116 = arith.constant 0 : index
    %c13 = arith.constant 13 : index
    %344 = memref.load %arg3[%c0_116, %c13] : memref<2x49xf32, #tpu.memory_space<smem>>
    %345 = vector.broadcast %344 : f32 to vector<2x1x256xf32>
    %346 = arith.mulf %343, %345 : vector<2x1x256xf32>
    %347 = vector.extract_strided_slice %86 {offsets = [0, 0, 22], sizes = [2, 1, 256], strides = [1, 1, 1]} : vector<2x1x358xf32> to vector<2x1x256xf32>
    %c1_117 = arith.constant 1 : index
    %c13_118 = arith.constant 13 : index
    %348 = memref.load %arg3[%c1_117, %c13_118] : memref<2x49xf32, #tpu.memory_space<smem>>
    %349 = vector.broadcast %348 : f32 to vector<2x1x256xf32>
    %350 = arith.mulf %347, %349 : vector<2x1x256xf32>
    %351 = arith.addf %346, %350 : vector<2x1x256xf32>
    %352 = vector.broadcast %187 : vector<1x1x256xf32> to vector<2x1x256xf32>
    %353 = arith.mulf %351, %352 : vector<2x1x256xf32>
    %354 = arith.addf %342, %353 : vector<2x1x256xf32>
    %355 = vector.extract_strided_slice %81 {offsets = [0, 0, 32], sizes = [2, 1, 256], strides = [1, 1, 1]} : vector<2x1x358xf32> to vector<2x1x256xf32>
    %c0_119 = arith.constant 0 : index
    %c14 = arith.constant 14 : index
    %356 = memref.load %arg3[%c0_119, %c14] : memref<2x49xf32, #tpu.memory_space<smem>>
    %357 = vector.broadcast %356 : f32 to vector<2x1x256xf32>
    %358 = arith.mulf %355, %357 : vector<2x1x256xf32>
    %359 = vector.extract_strided_slice %86 {offsets = [0, 0, 32], sizes = [2, 1, 256], strides = [1, 1, 1]} : vector<2x1x358xf32> to vector<2x1x256xf32>
    %c1_120 = arith.constant 1 : index
    %c14_121 = arith.constant 14 : index
    %360 = memref.load %arg3[%c1_120, %c14_121] : memref<2x49xf32, #tpu.memory_space<smem>>
    %361 = vector.broadcast %360 : f32 to vector<2x1x256xf32>
    %362 = arith.mulf %359, %361 : vector<2x1x256xf32>
    %363 = arith.addf %358, %362 : vector<2x1x256xf32>
    %364 = vector.broadcast %115 : vector<1x1x256xf32> to vector<2x1x256xf32>
    %365 = arith.mulf %363, %364 : vector<2x1x256xf32>
    %366 = arith.addf %354, %365 : vector<2x1x256xf32>
    %367 = vector.extract_strided_slice %81 {offsets = [0, 0, 33], sizes = [2, 1, 256], strides = [1, 1, 1]} : vector<2x1x358xf32> to vector<2x1x256xf32>
    %c0_122 = arith.constant 0 : index
    %c15 = arith.constant 15 : index
    %368 = memref.load %arg3[%c0_122, %c15] : memref<2x49xf32, #tpu.memory_space<smem>>
    %369 = vector.broadcast %368 : f32 to vector<2x1x256xf32>
    %370 = arith.mulf %367, %369 : vector<2x1x256xf32>
    %371 = vector.extract_strided_slice %86 {offsets = [0, 0, 33], sizes = [2, 1, 256], strides = [1, 1, 1]} : vector<2x1x358xf32> to vector<2x1x256xf32>
    %c1_123 = arith.constant 1 : index
    %c15_124 = arith.constant 15 : index
    %372 = memref.load %arg3[%c1_123, %c15_124] : memref<2x49xf32, #tpu.memory_space<smem>>
    %373 = vector.broadcast %372 : f32 to vector<2x1x256xf32>
    %374 = arith.mulf %371, %373 : vector<2x1x256xf32>
    %375 = arith.addf %370, %374 : vector<2x1x256xf32>
    %376 = vector.broadcast %127 : vector<1x1x256xf32> to vector<2x1x256xf32>
    %377 = arith.mulf %375, %376 : vector<2x1x256xf32>
    %378 = arith.addf %366, %377 : vector<2x1x256xf32>
    %379 = vector.extract_strided_slice %81 {offsets = [0, 0, 34], sizes = [2, 1, 256], strides = [1, 1, 1]} : vector<2x1x358xf32> to vector<2x1x256xf32>
    %c0_125 = arith.constant 0 : index
    %c16 = arith.constant 16 : index
    %380 = memref.load %arg3[%c0_125, %c16] : memref<2x49xf32, #tpu.memory_space<smem>>
    %381 = vector.broadcast %380 : f32 to vector<2x1x256xf32>
    %382 = arith.mulf %379, %381 : vector<2x1x256xf32>
    %383 = vector.extract_strided_slice %86 {offsets = [0, 0, 34], sizes = [2, 1, 256], strides = [1, 1, 1]} : vector<2x1x358xf32> to vector<2x1x256xf32>
    %c1_126 = arith.constant 1 : index
    %c16_127 = arith.constant 16 : index
    %384 = memref.load %arg3[%c1_126, %c16_127] : memref<2x49xf32, #tpu.memory_space<smem>>
    %385 = vector.broadcast %384 : f32 to vector<2x1x256xf32>
    %386 = arith.mulf %383, %385 : vector<2x1x256xf32>
    %387 = arith.addf %382, %386 : vector<2x1x256xf32>
    %388 = vector.broadcast %139 : vector<1x1x256xf32> to vector<2x1x256xf32>
    %389 = arith.mulf %387, %388 : vector<2x1x256xf32>
    %390 = arith.addf %378, %389 : vector<2x1x256xf32>
    %391 = vector.extract_strided_slice %81 {offsets = [0, 0, 35], sizes = [2, 1, 256], strides = [1, 1, 1]} : vector<2x1x358xf32> to vector<2x1x256xf32>
    %c0_128 = arith.constant 0 : index
    %c17 = arith.constant 17 : index
    %392 = memref.load %arg3[%c0_128, %c17] : memref<2x49xf32, #tpu.memory_space<smem>>
    %393 = vector.broadcast %392 : f32 to vector<2x1x256xf32>
    %394 = arith.mulf %391, %393 : vector<2x1x256xf32>
    %395 = vector.extract_strided_slice %86 {offsets = [0, 0, 35], sizes = [2, 1, 256], strides = [1, 1, 1]} : vector<2x1x358xf32> to vector<2x1x256xf32>
    %c1_129 = arith.constant 1 : index
    %c17_130 = arith.constant 17 : index
    %396 = memref.load %arg3[%c1_129, %c17_130] : memref<2x49xf32, #tpu.memory_space<smem>>
    %397 = vector.broadcast %396 : f32 to vector<2x1x256xf32>
    %398 = arith.mulf %395, %397 : vector<2x1x256xf32>
    %399 = arith.addf %394, %398 : vector<2x1x256xf32>
    %400 = vector.broadcast %151 : vector<1x1x256xf32> to vector<2x1x256xf32>
    %401 = arith.mulf %399, %400 : vector<2x1x256xf32>
    %402 = arith.addf %390, %401 : vector<2x1x256xf32>
    %403 = vector.extract_strided_slice %81 {offsets = [0, 0, 36], sizes = [2, 1, 256], strides = [1, 1, 1]} : vector<2x1x358xf32> to vector<2x1x256xf32>
    %c0_131 = arith.constant 0 : index
    %c18 = arith.constant 18 : index
    %404 = memref.load %arg3[%c0_131, %c18] : memref<2x49xf32, #tpu.memory_space<smem>>
    %405 = vector.broadcast %404 : f32 to vector<2x1x256xf32>
    %406 = arith.mulf %403, %405 : vector<2x1x256xf32>
    %407 = vector.extract_strided_slice %86 {offsets = [0, 0, 36], sizes = [2, 1, 256], strides = [1, 1, 1]} : vector<2x1x358xf32> to vector<2x1x256xf32>
    %c1_132 = arith.constant 1 : index
    %c18_133 = arith.constant 18 : index
    %408 = memref.load %arg3[%c1_132, %c18_133] : memref<2x49xf32, #tpu.memory_space<smem>>
    %409 = vector.broadcast %408 : f32 to vector<2x1x256xf32>
    %410 = arith.mulf %407, %409 : vector<2x1x256xf32>
    %411 = arith.addf %406, %410 : vector<2x1x256xf32>
    %412 = vector.broadcast %163 : vector<1x1x256xf32> to vector<2x1x256xf32>
    %413 = arith.mulf %411, %412 : vector<2x1x256xf32>
    %414 = arith.addf %402, %413 : vector<2x1x256xf32>
    %415 = vector.extract_strided_slice %81 {offsets = [0, 0, 37], sizes = [2, 1, 256], strides = [1, 1, 1]} : vector<2x1x358xf32> to vector<2x1x256xf32>
    %c0_134 = arith.constant 0 : index
    %c19 = arith.constant 19 : index
    %416 = memref.load %arg3[%c0_134, %c19] : memref<2x49xf32, #tpu.memory_space<smem>>
    %417 = vector.broadcast %416 : f32 to vector<2x1x256xf32>
    %418 = arith.mulf %415, %417 : vector<2x1x256xf32>
    %419 = vector.extract_strided_slice %86 {offsets = [0, 0, 37], sizes = [2, 1, 256], strides = [1, 1, 1]} : vector<2x1x358xf32> to vector<2x1x256xf32>
    %c1_135 = arith.constant 1 : index
    %c19_136 = arith.constant 19 : index
    %420 = memref.load %arg3[%c1_135, %c19_136] : memref<2x49xf32, #tpu.memory_space<smem>>
    %421 = vector.broadcast %420 : f32 to vector<2x1x256xf32>
    %422 = arith.mulf %419, %421 : vector<2x1x256xf32>
    %423 = arith.addf %418, %422 : vector<2x1x256xf32>
    %424 = vector.broadcast %175 : vector<1x1x256xf32> to vector<2x1x256xf32>
    %425 = arith.mulf %423, %424 : vector<2x1x256xf32>
    %426 = arith.addf %414, %425 : vector<2x1x256xf32>
    %427 = vector.extract_strided_slice %81 {offsets = [0, 0, 38], sizes = [2, 1, 256], strides = [1, 1, 1]} : vector<2x1x358xf32> to vector<2x1x256xf32>
    %c0_137 = arith.constant 0 : index
    %c20 = arith.constant 20 : index
    %428 = memref.load %arg3[%c0_137, %c20] : memref<2x49xf32, #tpu.memory_space<smem>>
    %429 = vector.broadcast %428 : f32 to vector<2x1x256xf32>
    %430 = arith.mulf %427, %429 : vector<2x1x256xf32>
    %431 = vector.extract_strided_slice %86 {offsets = [0, 0, 38], sizes = [2, 1, 256], strides = [1, 1, 1]} : vector<2x1x358xf32> to vector<2x1x256xf32>
    %c1_138 = arith.constant 1 : index
    %c20_139 = arith.constant 20 : index
    %432 = memref.load %arg3[%c1_138, %c20_139] : memref<2x49xf32, #tpu.memory_space<smem>>
    %433 = vector.broadcast %432 : f32 to vector<2x1x256xf32>
    %434 = arith.mulf %431, %433 : vector<2x1x256xf32>
    %435 = arith.addf %430, %434 : vector<2x1x256xf32>
    %436 = vector.broadcast %187 : vector<1x1x256xf32> to vector<2x1x256xf32>
    %437 = arith.mulf %435, %436 : vector<2x1x256xf32>
    %438 = arith.addf %426, %437 : vector<2x1x256xf32>
    %439 = vector.extract_strided_slice %81 {offsets = [0, 0, 48], sizes = [2, 1, 256], strides = [1, 1, 1]} : vector<2x1x358xf32> to vector<2x1x256xf32>
    %c0_140 = arith.constant 0 : index
    %c21 = arith.constant 21 : index
    %440 = memref.load %arg3[%c0_140, %c21] : memref<2x49xf32, #tpu.memory_space<smem>>
    %441 = vector.broadcast %440 : f32 to vector<2x1x256xf32>
    %442 = arith.mulf %439, %441 : vector<2x1x256xf32>
    %443 = vector.extract_strided_slice %86 {offsets = [0, 0, 48], sizes = [2, 1, 256], strides = [1, 1, 1]} : vector<2x1x358xf32> to vector<2x1x256xf32>
    %c1_141 = arith.constant 1 : index
    %c21_142 = arith.constant 21 : index
    %444 = memref.load %arg3[%c1_141, %c21_142] : memref<2x49xf32, #tpu.memory_space<smem>>
    %445 = vector.broadcast %444 : f32 to vector<2x1x256xf32>
    %446 = arith.mulf %443, %445 : vector<2x1x256xf32>
    %447 = arith.addf %442, %446 : vector<2x1x256xf32>
    %448 = vector.broadcast %115 : vector<1x1x256xf32> to vector<2x1x256xf32>
    %449 = arith.mulf %447, %448 : vector<2x1x256xf32>
    %450 = arith.addf %438, %449 : vector<2x1x256xf32>
    %451 = vector.extract_strided_slice %81 {offsets = [0, 0, 49], sizes = [2, 1, 256], strides = [1, 1, 1]} : vector<2x1x358xf32> to vector<2x1x256xf32>
    %c0_143 = arith.constant 0 : index
    %c22 = arith.constant 22 : index
    %452 = memref.load %arg3[%c0_143, %c22] : memref<2x49xf32, #tpu.memory_space<smem>>
    %453 = vector.broadcast %452 : f32 to vector<2x1x256xf32>
    %454 = arith.mulf %451, %453 : vector<2x1x256xf32>
    %455 = vector.extract_strided_slice %86 {offsets = [0, 0, 49], sizes = [2, 1, 256], strides = [1, 1, 1]} : vector<2x1x358xf32> to vector<2x1x256xf32>
    %c1_144 = arith.constant 1 : index
    %c22_145 = arith.constant 22 : index
    %456 = memref.load %arg3[%c1_144, %c22_145] : memref<2x49xf32, #tpu.memory_space<smem>>
    %457 = vector.broadcast %456 : f32 to vector<2x1x256xf32>
    %458 = arith.mulf %455, %457 : vector<2x1x256xf32>
    %459 = arith.addf %454, %458 : vector<2x1x256xf32>
    %460 = vector.broadcast %127 : vector<1x1x256xf32> to vector<2x1x256xf32>
    %461 = arith.mulf %459, %460 : vector<2x1x256xf32>
    %462 = arith.addf %450, %461 : vector<2x1x256xf32>
    %463 = vector.extract_strided_slice %81 {offsets = [0, 0, 50], sizes = [2, 1, 256], strides = [1, 1, 1]} : vector<2x1x358xf32> to vector<2x1x256xf32>
    %c0_146 = arith.constant 0 : index
    %c23 = arith.constant 23 : index
    %464 = memref.load %arg3[%c0_146, %c23] : memref<2x49xf32, #tpu.memory_space<smem>>
    %465 = vector.broadcast %464 : f32 to vector<2x1x256xf32>
    %466 = arith.mulf %463, %465 : vector<2x1x256xf32>
    %467 = vector.extract_strided_slice %86 {offsets = [0, 0, 50], sizes = [2, 1, 256], strides = [1, 1, 1]} : vector<2x1x358xf32> to vector<2x1x256xf32>
    %c1_147 = arith.constant 1 : index
    %c23_148 = arith.constant 23 : index
    %468 = memref.load %arg3[%c1_147, %c23_148] : memref<2x49xf32, #tpu.memory_space<smem>>
    %469 = vector.broadcast %468 : f32 to vector<2x1x256xf32>
    %470 = arith.mulf %467, %469 : vector<2x1x256xf32>
    %471 = arith.addf %466, %470 : vector<2x1x256xf32>
    %472 = vector.broadcast %139 : vector<1x1x256xf32> to vector<2x1x256xf32>
    %473 = arith.mulf %471, %472 : vector<2x1x256xf32>
    %474 = arith.addf %462, %473 : vector<2x1x256xf32>
    %475 = vector.extract_strided_slice %81 {offsets = [0, 0, 51], sizes = [2, 1, 256], strides = [1, 1, 1]} : vector<2x1x358xf32> to vector<2x1x256xf32>
    %c0_149 = arith.constant 0 : index
    %c24 = arith.constant 24 : index
    %476 = memref.load %arg3[%c0_149, %c24] : memref<2x49xf32, #tpu.memory_space<smem>>
    %477 = vector.broadcast %476 : f32 to vector<2x1x256xf32>
    %478 = arith.mulf %475, %477 : vector<2x1x256xf32>
    %479 = vector.extract_strided_slice %86 {offsets = [0, 0, 51], sizes = [2, 1, 256], strides = [1, 1, 1]} : vector<2x1x358xf32> to vector<2x1x256xf32>
    %c1_150 = arith.constant 1 : index
    %c24_151 = arith.constant 24 : index
    %480 = memref.load %arg3[%c1_150, %c24_151] : memref<2x49xf32, #tpu.memory_space<smem>>
    %481 = vector.broadcast %480 : f32 to vector<2x1x256xf32>
    %482 = arith.mulf %479, %481 : vector<2x1x256xf32>
    %483 = arith.addf %478, %482 : vector<2x1x256xf32>
    %484 = vector.broadcast %151 : vector<1x1x256xf32> to vector<2x1x256xf32>
    %485 = arith.mulf %483, %484 : vector<2x1x256xf32>
    %486 = arith.addf %474, %485 : vector<2x1x256xf32>
    %487 = vector.extract_strided_slice %81 {offsets = [0, 0, 52], sizes = [2, 1, 256], strides = [1, 1, 1]} : vector<2x1x358xf32> to vector<2x1x256xf32>
    %c0_152 = arith.constant 0 : index
    %c25 = arith.constant 25 : index
    %488 = memref.load %arg3[%c0_152, %c25] : memref<2x49xf32, #tpu.memory_space<smem>>
    %489 = vector.broadcast %488 : f32 to vector<2x1x256xf32>
    %490 = arith.mulf %487, %489 : vector<2x1x256xf32>
    %491 = vector.extract_strided_slice %86 {offsets = [0, 0, 52], sizes = [2, 1, 256], strides = [1, 1, 1]} : vector<2x1x358xf32> to vector<2x1x256xf32>
    %c1_153 = arith.constant 1 : index
    %c25_154 = arith.constant 25 : index
    %492 = memref.load %arg3[%c1_153, %c25_154] : memref<2x49xf32, #tpu.memory_space<smem>>
    %493 = vector.broadcast %492 : f32 to vector<2x1x256xf32>
    %494 = arith.mulf %491, %493 : vector<2x1x256xf32>
    %495 = arith.addf %490, %494 : vector<2x1x256xf32>
    %496 = vector.broadcast %163 : vector<1x1x256xf32> to vector<2x1x256xf32>
    %497 = arith.mulf %495, %496 : vector<2x1x256xf32>
    %498 = arith.addf %486, %497 : vector<2x1x256xf32>
    %499 = vector.extract_strided_slice %81 {offsets = [0, 0, 53], sizes = [2, 1, 256], strides = [1, 1, 1]} : vector<2x1x358xf32> to vector<2x1x256xf32>
    %c0_155 = arith.constant 0 : index
    %c26 = arith.constant 26 : index
    %500 = memref.load %arg3[%c0_155, %c26] : memref<2x49xf32, #tpu.memory_space<smem>>
    %501 = vector.broadcast %500 : f32 to vector<2x1x256xf32>
    %502 = arith.mulf %499, %501 : vector<2x1x256xf32>
    %503 = vector.extract_strided_slice %86 {offsets = [0, 0, 53], sizes = [2, 1, 256], strides = [1, 1, 1]} : vector<2x1x358xf32> to vector<2x1x256xf32>
    %c1_156 = arith.constant 1 : index
    %c26_157 = arith.constant 26 : index
    %504 = memref.load %arg3[%c1_156, %c26_157] : memref<2x49xf32, #tpu.memory_space<smem>>
    %505 = vector.broadcast %504 : f32 to vector<2x1x256xf32>
    %506 = arith.mulf %503, %505 : vector<2x1x256xf32>
    %507 = arith.addf %502, %506 : vector<2x1x256xf32>
    %508 = vector.broadcast %175 : vector<1x1x256xf32> to vector<2x1x256xf32>
    %509 = arith.mulf %507, %508 : vector<2x1x256xf32>
    %510 = arith.addf %498, %509 : vector<2x1x256xf32>
    %511 = vector.extract_strided_slice %81 {offsets = [0, 0, 54], sizes = [2, 1, 256], strides = [1, 1, 1]} : vector<2x1x358xf32> to vector<2x1x256xf32>
    %c0_158 = arith.constant 0 : index
    %c27 = arith.constant 27 : index
    %512 = memref.load %arg3[%c0_158, %c27] : memref<2x49xf32, #tpu.memory_space<smem>>
    %513 = vector.broadcast %512 : f32 to vector<2x1x256xf32>
    %514 = arith.mulf %511, %513 : vector<2x1x256xf32>
    %515 = vector.extract_strided_slice %86 {offsets = [0, 0, 54], sizes = [2, 1, 256], strides = [1, 1, 1]} : vector<2x1x358xf32> to vector<2x1x256xf32>
    %c1_159 = arith.constant 1 : index
    %c27_160 = arith.constant 27 : index
    %516 = memref.load %arg3[%c1_159, %c27_160] : memref<2x49xf32, #tpu.memory_space<smem>>
    %517 = vector.broadcast %516 : f32 to vector<2x1x256xf32>
    %518 = arith.mulf %515, %517 : vector<2x1x256xf32>
    %519 = arith.addf %514, %518 : vector<2x1x256xf32>
    %520 = vector.broadcast %187 : vector<1x1x256xf32> to vector<2x1x256xf32>
    %521 = arith.mulf %519, %520 : vector<2x1x256xf32>
    %522 = arith.addf %510, %521 : vector<2x1x256xf32>
    %523 = vector.extract_strided_slice %81 {offsets = [0, 0, 64], sizes = [2, 1, 256], strides = [1, 1, 1]} : vector<2x1x358xf32> to vector<2x1x256xf32>
    %c0_161 = arith.constant 0 : index
    %c28 = arith.constant 28 : index
    %524 = memref.load %arg3[%c0_161, %c28] : memref<2x49xf32, #tpu.memory_space<smem>>
    %525 = vector.broadcast %524 : f32 to vector<2x1x256xf32>
    %526 = arith.mulf %523, %525 : vector<2x1x256xf32>
    %527 = vector.extract_strided_slice %86 {offsets = [0, 0, 64], sizes = [2, 1, 256], strides = [1, 1, 1]} : vector<2x1x358xf32> to vector<2x1x256xf32>
    %c1_162 = arith.constant 1 : index
    %c28_163 = arith.constant 28 : index
    %528 = memref.load %arg3[%c1_162, %c28_163] : memref<2x49xf32, #tpu.memory_space<smem>>
    %529 = vector.broadcast %528 : f32 to vector<2x1x256xf32>
    %530 = arith.mulf %527, %529 : vector<2x1x256xf32>
    %531 = arith.addf %526, %530 : vector<2x1x256xf32>
    %532 = vector.broadcast %115 : vector<1x1x256xf32> to vector<2x1x256xf32>
    %533 = arith.mulf %531, %532 : vector<2x1x256xf32>
    %534 = arith.addf %522, %533 : vector<2x1x256xf32>
    %535 = vector.extract_strided_slice %81 {offsets = [0, 0, 65], sizes = [2, 1, 256], strides = [1, 1, 1]} : vector<2x1x358xf32> to vector<2x1x256xf32>
    %c0_164 = arith.constant 0 : index
    %c29 = arith.constant 29 : index
    %536 = memref.load %arg3[%c0_164, %c29] : memref<2x49xf32, #tpu.memory_space<smem>>
    %537 = vector.broadcast %536 : f32 to vector<2x1x256xf32>
    %538 = arith.mulf %535, %537 : vector<2x1x256xf32>
    %539 = vector.extract_strided_slice %86 {offsets = [0, 0, 65], sizes = [2, 1, 256], strides = [1, 1, 1]} : vector<2x1x358xf32> to vector<2x1x256xf32>
    %c1_165 = arith.constant 1 : index
    %c29_166 = arith.constant 29 : index
    %540 = memref.load %arg3[%c1_165, %c29_166] : memref<2x49xf32, #tpu.memory_space<smem>>
    %541 = vector.broadcast %540 : f32 to vector<2x1x256xf32>
    %542 = arith.mulf %539, %541 : vector<2x1x256xf32>
    %543 = arith.addf %538, %542 : vector<2x1x256xf32>
    %544 = vector.broadcast %127 : vector<1x1x256xf32> to vector<2x1x256xf32>
    %545 = arith.mulf %543, %544 : vector<2x1x256xf32>
    %546 = arith.addf %534, %545 : vector<2x1x256xf32>
    %547 = vector.extract_strided_slice %81 {offsets = [0, 0, 66], sizes = [2, 1, 256], strides = [1, 1, 1]} : vector<2x1x358xf32> to vector<2x1x256xf32>
    %c0_167 = arith.constant 0 : index
    %c30 = arith.constant 30 : index
    %548 = memref.load %arg3[%c0_167, %c30] : memref<2x49xf32, #tpu.memory_space<smem>>
    %549 = vector.broadcast %548 : f32 to vector<2x1x256xf32>
    %550 = arith.mulf %547, %549 : vector<2x1x256xf32>
    %551 = vector.extract_strided_slice %86 {offsets = [0, 0, 66], sizes = [2, 1, 256], strides = [1, 1, 1]} : vector<2x1x358xf32> to vector<2x1x256xf32>
    %c1_168 = arith.constant 1 : index
    %c30_169 = arith.constant 30 : index
    %552 = memref.load %arg3[%c1_168, %c30_169] : memref<2x49xf32, #tpu.memory_space<smem>>
    %553 = vector.broadcast %552 : f32 to vector<2x1x256xf32>
    %554 = arith.mulf %551, %553 : vector<2x1x256xf32>
    %555 = arith.addf %550, %554 : vector<2x1x256xf32>
    %556 = vector.broadcast %139 : vector<1x1x256xf32> to vector<2x1x256xf32>
    %557 = arith.mulf %555, %556 : vector<2x1x256xf32>
    %558 = arith.addf %546, %557 : vector<2x1x256xf32>
    %559 = vector.extract_strided_slice %81 {offsets = [0, 0, 67], sizes = [2, 1, 256], strides = [1, 1, 1]} : vector<2x1x358xf32> to vector<2x1x256xf32>
    %c0_170 = arith.constant 0 : index
    %c31 = arith.constant 31 : index
    %560 = memref.load %arg3[%c0_170, %c31] : memref<2x49xf32, #tpu.memory_space<smem>>
    %561 = vector.broadcast %560 : f32 to vector<2x1x256xf32>
    %562 = arith.mulf %559, %561 : vector<2x1x256xf32>
    %563 = vector.extract_strided_slice %86 {offsets = [0, 0, 67], sizes = [2, 1, 256], strides = [1, 1, 1]} : vector<2x1x358xf32> to vector<2x1x256xf32>
    %c1_171 = arith.constant 1 : index
    %c31_172 = arith.constant 31 : index
    %564 = memref.load %arg3[%c1_171, %c31_172] : memref<2x49xf32, #tpu.memory_space<smem>>
    %565 = vector.broadcast %564 : f32 to vector<2x1x256xf32>
    %566 = arith.mulf %563, %565 : vector<2x1x256xf32>
    %567 = arith.addf %562, %566 : vector<2x1x256xf32>
    %568 = vector.broadcast %151 : vector<1x1x256xf32> to vector<2x1x256xf32>
    %569 = arith.mulf %567, %568 : vector<2x1x256xf32>
    %570 = arith.addf %558, %569 : vector<2x1x256xf32>
    %571 = vector.extract_strided_slice %81 {offsets = [0, 0, 68], sizes = [2, 1, 256], strides = [1, 1, 1]} : vector<2x1x358xf32> to vector<2x1x256xf32>
    %c0_173 = arith.constant 0 : index
    %c32 = arith.constant 32 : index
    %572 = memref.load %arg3[%c0_173, %c32] : memref<2x49xf32, #tpu.memory_space<smem>>
    %573 = vector.broadcast %572 : f32 to vector<2x1x256xf32>
    %574 = arith.mulf %571, %573 : vector<2x1x256xf32>
    %575 = vector.extract_strided_slice %86 {offsets = [0, 0, 68], sizes = [2, 1, 256], strides = [1, 1, 1]} : vector<2x1x358xf32> to vector<2x1x256xf32>
    %c1_174 = arith.constant 1 : index
    %c32_175 = arith.constant 32 : index
    %576 = memref.load %arg3[%c1_174, %c32_175] : memref<2x49xf32, #tpu.memory_space<smem>>
    %577 = vector.broadcast %576 : f32 to vector<2x1x256xf32>
    %578 = arith.mulf %575, %577 : vector<2x1x256xf32>
    %579 = arith.addf %574, %578 : vector<2x1x256xf32>
    %580 = vector.broadcast %163 : vector<1x1x256xf32> to vector<2x1x256xf32>
    %581 = arith.mulf %579, %580 : vector<2x1x256xf32>
    %582 = arith.addf %570, %581 : vector<2x1x256xf32>
    %583 = vector.extract_strided_slice %81 {offsets = [0, 0, 69], sizes = [2, 1, 256], strides = [1, 1, 1]} : vector<2x1x358xf32> to vector<2x1x256xf32>
    %c0_176 = arith.constant 0 : index
    %c33 = arith.constant 33 : index
    %584 = memref.load %arg3[%c0_176, %c33] : memref<2x49xf32, #tpu.memory_space<smem>>
    %585 = vector.broadcast %584 : f32 to vector<2x1x256xf32>
    %586 = arith.mulf %583, %585 : vector<2x1x256xf32>
    %587 = vector.extract_strided_slice %86 {offsets = [0, 0, 69], sizes = [2, 1, 256], strides = [1, 1, 1]} : vector<2x1x358xf32> to vector<2x1x256xf32>
    %c1_177 = arith.constant 1 : index
    %c33_178 = arith.constant 33 : index
    %588 = memref.load %arg3[%c1_177, %c33_178] : memref<2x49xf32, #tpu.memory_space<smem>>
    %589 = vector.broadcast %588 : f32 to vector<2x1x256xf32>
    %590 = arith.mulf %587, %589 : vector<2x1x256xf32>
    %591 = arith.addf %586, %590 : vector<2x1x256xf32>
    %592 = vector.broadcast %175 : vector<1x1x256xf32> to vector<2x1x256xf32>
    %593 = arith.mulf %591, %592 : vector<2x1x256xf32>
    %594 = arith.addf %582, %593 : vector<2x1x256xf32>
    %595 = vector.extract_strided_slice %81 {offsets = [0, 0, 70], sizes = [2, 1, 256], strides = [1, 1, 1]} : vector<2x1x358xf32> to vector<2x1x256xf32>
    %c0_179 = arith.constant 0 : index
    %c34 = arith.constant 34 : index
    %596 = memref.load %arg3[%c0_179, %c34] : memref<2x49xf32, #tpu.memory_space<smem>>
    %597 = vector.broadcast %596 : f32 to vector<2x1x256xf32>
    %598 = arith.mulf %595, %597 : vector<2x1x256xf32>
    %599 = vector.extract_strided_slice %86 {offsets = [0, 0, 70], sizes = [2, 1, 256], strides = [1, 1, 1]} : vector<2x1x358xf32> to vector<2x1x256xf32>
    %c1_180 = arith.constant 1 : index
    %c34_181 = arith.constant 34 : index
    %600 = memref.load %arg3[%c1_180, %c34_181] : memref<2x49xf32, #tpu.memory_space<smem>>
    %601 = vector.broadcast %600 : f32 to vector<2x1x256xf32>
    %602 = arith.mulf %599, %601 : vector<2x1x256xf32>
    %603 = arith.addf %598, %602 : vector<2x1x256xf32>
    %604 = vector.broadcast %187 : vector<1x1x256xf32> to vector<2x1x256xf32>
    %605 = arith.mulf %603, %604 : vector<2x1x256xf32>
    %606 = arith.addf %594, %605 : vector<2x1x256xf32>
    %607 = vector.extract_strided_slice %81 {offsets = [0, 0, 80], sizes = [2, 1, 256], strides = [1, 1, 1]} : vector<2x1x358xf32> to vector<2x1x256xf32>
    %c0_182 = arith.constant 0 : index
    %c35 = arith.constant 35 : index
    %608 = memref.load %arg3[%c0_182, %c35] : memref<2x49xf32, #tpu.memory_space<smem>>
    %609 = vector.broadcast %608 : f32 to vector<2x1x256xf32>
    %610 = arith.mulf %607, %609 : vector<2x1x256xf32>
    %611 = vector.extract_strided_slice %86 {offsets = [0, 0, 80], sizes = [2, 1, 256], strides = [1, 1, 1]} : vector<2x1x358xf32> to vector<2x1x256xf32>
    %c1_183 = arith.constant 1 : index
    %c35_184 = arith.constant 35 : index
    %612 = memref.load %arg3[%c1_183, %c35_184] : memref<2x49xf32, #tpu.memory_space<smem>>
    %613 = vector.broadcast %612 : f32 to vector<2x1x256xf32>
    %614 = arith.mulf %611, %613 : vector<2x1x256xf32>
    %615 = arith.addf %610, %614 : vector<2x1x256xf32>
    %616 = vector.broadcast %115 : vector<1x1x256xf32> to vector<2x1x256xf32>
    %617 = arith.mulf %615, %616 : vector<2x1x256xf32>
    %618 = arith.addf %606, %617 : vector<2x1x256xf32>
    %619 = vector.extract_strided_slice %81 {offsets = [0, 0, 81], sizes = [2, 1, 256], strides = [1, 1, 1]} : vector<2x1x358xf32> to vector<2x1x256xf32>
    %c0_185 = arith.constant 0 : index
    %c36 = arith.constant 36 : index
    %620 = memref.load %arg3[%c0_185, %c36] : memref<2x49xf32, #tpu.memory_space<smem>>
    %621 = vector.broadcast %620 : f32 to vector<2x1x256xf32>
    %622 = arith.mulf %619, %621 : vector<2x1x256xf32>
    %623 = vector.extract_strided_slice %86 {offsets = [0, 0, 81], sizes = [2, 1, 256], strides = [1, 1, 1]} : vector<2x1x358xf32> to vector<2x1x256xf32>
    %c1_186 = arith.constant 1 : index
    %c36_187 = arith.constant 36 : index
    %624 = memref.load %arg3[%c1_186, %c36_187] : memref<2x49xf32, #tpu.memory_space<smem>>
    %625 = vector.broadcast %624 : f32 to vector<2x1x256xf32>
    %626 = arith.mulf %623, %625 : vector<2x1x256xf32>
    %627 = arith.addf %622, %626 : vector<2x1x256xf32>
    %628 = vector.broadcast %127 : vector<1x1x256xf32> to vector<2x1x256xf32>
    %629 = arith.mulf %627, %628 : vector<2x1x256xf32>
    %630 = arith.addf %618, %629 : vector<2x1x256xf32>
    %631 = vector.extract_strided_slice %81 {offsets = [0, 0, 82], sizes = [2, 1, 256], strides = [1, 1, 1]} : vector<2x1x358xf32> to vector<2x1x256xf32>
    %c0_188 = arith.constant 0 : index
    %c37 = arith.constant 37 : index
    %632 = memref.load %arg3[%c0_188, %c37] : memref<2x49xf32, #tpu.memory_space<smem>>
    %633 = vector.broadcast %632 : f32 to vector<2x1x256xf32>
    %634 = arith.mulf %631, %633 : vector<2x1x256xf32>
    %635 = vector.extract_strided_slice %86 {offsets = [0, 0, 82], sizes = [2, 1, 256], strides = [1, 1, 1]} : vector<2x1x358xf32> to vector<2x1x256xf32>
    %c1_189 = arith.constant 1 : index
    %c37_190 = arith.constant 37 : index
    %636 = memref.load %arg3[%c1_189, %c37_190] : memref<2x49xf32, #tpu.memory_space<smem>>
    %637 = vector.broadcast %636 : f32 to vector<2x1x256xf32>
    %638 = arith.mulf %635, %637 : vector<2x1x256xf32>
    %639 = arith.addf %634, %638 : vector<2x1x256xf32>
    %640 = vector.broadcast %139 : vector<1x1x256xf32> to vector<2x1x256xf32>
    %641 = arith.mulf %639, %640 : vector<2x1x256xf32>
    %642 = arith.addf %630, %641 : vector<2x1x256xf32>
    %643 = vector.extract_strided_slice %81 {offsets = [0, 0, 83], sizes = [2, 1, 256], strides = [1, 1, 1]} : vector<2x1x358xf32> to vector<2x1x256xf32>
    %c0_191 = arith.constant 0 : index
    %c38 = arith.constant 38 : index
    %644 = memref.load %arg3[%c0_191, %c38] : memref<2x49xf32, #tpu.memory_space<smem>>
    %645 = vector.broadcast %644 : f32 to vector<2x1x256xf32>
    %646 = arith.mulf %643, %645 : vector<2x1x256xf32>
    %647 = vector.extract_strided_slice %86 {offsets = [0, 0, 83], sizes = [2, 1, 256], strides = [1, 1, 1]} : vector<2x1x358xf32> to vector<2x1x256xf32>
    %c1_192 = arith.constant 1 : index
    %c38_193 = arith.constant 38 : index
    %648 = memref.load %arg3[%c1_192, %c38_193] : memref<2x49xf32, #tpu.memory_space<smem>>
    %649 = vector.broadcast %648 : f32 to vector<2x1x256xf32>
    %650 = arith.mulf %647, %649 : vector<2x1x256xf32>
    %651 = arith.addf %646, %650 : vector<2x1x256xf32>
    %652 = vector.broadcast %151 : vector<1x1x256xf32> to vector<2x1x256xf32>
    %653 = arith.mulf %651, %652 : vector<2x1x256xf32>
    %654 = arith.addf %642, %653 : vector<2x1x256xf32>
    %655 = vector.extract_strided_slice %81 {offsets = [0, 0, 84], sizes = [2, 1, 256], strides = [1, 1, 1]} : vector<2x1x358xf32> to vector<2x1x256xf32>
    %c0_194 = arith.constant 0 : index
    %c39 = arith.constant 39 : index
    %656 = memref.load %arg3[%c0_194, %c39] : memref<2x49xf32, #tpu.memory_space<smem>>
    %657 = vector.broadcast %656 : f32 to vector<2x1x256xf32>
    %658 = arith.mulf %655, %657 : vector<2x1x256xf32>
    %659 = vector.extract_strided_slice %86 {offsets = [0, 0, 84], sizes = [2, 1, 256], strides = [1, 1, 1]} : vector<2x1x358xf32> to vector<2x1x256xf32>
    %c1_195 = arith.constant 1 : index
    %c39_196 = arith.constant 39 : index
    %660 = memref.load %arg3[%c1_195, %c39_196] : memref<2x49xf32, #tpu.memory_space<smem>>
    %661 = vector.broadcast %660 : f32 to vector<2x1x256xf32>
    %662 = arith.mulf %659, %661 : vector<2x1x256xf32>
    %663 = arith.addf %658, %662 : vector<2x1x256xf32>
    %664 = vector.broadcast %163 : vector<1x1x256xf32> to vector<2x1x256xf32>
    %665 = arith.mulf %663, %664 : vector<2x1x256xf32>
    %666 = arith.addf %654, %665 : vector<2x1x256xf32>
    %667 = vector.extract_strided_slice %81 {offsets = [0, 0, 85], sizes = [2, 1, 256], strides = [1, 1, 1]} : vector<2x1x358xf32> to vector<2x1x256xf32>
    %c0_197 = arith.constant 0 : index
    %c40 = arith.constant 40 : index
    %668 = memref.load %arg3[%c0_197, %c40] : memref<2x49xf32, #tpu.memory_space<smem>>
    %669 = vector.broadcast %668 : f32 to vector<2x1x256xf32>
    %670 = arith.mulf %667, %669 : vector<2x1x256xf32>
    %671 = vector.extract_strided_slice %86 {offsets = [0, 0, 85], sizes = [2, 1, 256], strides = [1, 1, 1]} : vector<2x1x358xf32> to vector<2x1x256xf32>
    %c1_198 = arith.constant 1 : index
    %c40_199 = arith.constant 40 : index
    %672 = memref.load %arg3[%c1_198, %c40_199] : memref<2x49xf32, #tpu.memory_space<smem>>
    %673 = vector.broadcast %672 : f32 to vector<2x1x256xf32>
    %674 = arith.mulf %671, %673 : vector<2x1x256xf32>
    %675 = arith.addf %670, %674 : vector<2x1x256xf32>
    %676 = vector.broadcast %175 : vector<1x1x256xf32> to vector<2x1x256xf32>
    %677 = arith.mulf %675, %676 : vector<2x1x256xf32>
    %678 = arith.addf %666, %677 : vector<2x1x256xf32>
    %679 = vector.extract_strided_slice %81 {offsets = [0, 0, 86], sizes = [2, 1, 256], strides = [1, 1, 1]} : vector<2x1x358xf32> to vector<2x1x256xf32>
    %c0_200 = arith.constant 0 : index
    %c41 = arith.constant 41 : index
    %680 = memref.load %arg3[%c0_200, %c41] : memref<2x49xf32, #tpu.memory_space<smem>>
    %681 = vector.broadcast %680 : f32 to vector<2x1x256xf32>
    %682 = arith.mulf %679, %681 : vector<2x1x256xf32>
    %683 = vector.extract_strided_slice %86 {offsets = [0, 0, 86], sizes = [2, 1, 256], strides = [1, 1, 1]} : vector<2x1x358xf32> to vector<2x1x256xf32>
    %c1_201 = arith.constant 1 : index
    %c41_202 = arith.constant 41 : index
    %684 = memref.load %arg3[%c1_201, %c41_202] : memref<2x49xf32, #tpu.memory_space<smem>>
    %685 = vector.broadcast %684 : f32 to vector<2x1x256xf32>
    %686 = arith.mulf %683, %685 : vector<2x1x256xf32>
    %687 = arith.addf %682, %686 : vector<2x1x256xf32>
    %688 = vector.broadcast %187 : vector<1x1x256xf32> to vector<2x1x256xf32>
    %689 = arith.mulf %687, %688 : vector<2x1x256xf32>
    %690 = arith.addf %678, %689 : vector<2x1x256xf32>
    %691 = vector.extract_strided_slice %81 {offsets = [0, 0, 96], sizes = [2, 1, 256], strides = [1, 1, 1]} : vector<2x1x358xf32> to vector<2x1x256xf32>
    %c0_203 = arith.constant 0 : index
    %c42 = arith.constant 42 : index
    %692 = memref.load %arg3[%c0_203, %c42] : memref<2x49xf32, #tpu.memory_space<smem>>
    %693 = vector.broadcast %692 : f32 to vector<2x1x256xf32>
    %694 = arith.mulf %691, %693 : vector<2x1x256xf32>
    %695 = vector.extract_strided_slice %86 {offsets = [0, 0, 96], sizes = [2, 1, 256], strides = [1, 1, 1]} : vector<2x1x358xf32> to vector<2x1x256xf32>
    %c1_204 = arith.constant 1 : index
    %c42_205 = arith.constant 42 : index
    %696 = memref.load %arg3[%c1_204, %c42_205] : memref<2x49xf32, #tpu.memory_space<smem>>
    %697 = vector.broadcast %696 : f32 to vector<2x1x256xf32>
    %698 = arith.mulf %695, %697 : vector<2x1x256xf32>
    %699 = arith.addf %694, %698 : vector<2x1x256xf32>
    %700 = vector.broadcast %115 : vector<1x1x256xf32> to vector<2x1x256xf32>
    %701 = arith.mulf %699, %700 : vector<2x1x256xf32>
    %702 = arith.addf %690, %701 : vector<2x1x256xf32>
    %703 = vector.extract_strided_slice %81 {offsets = [0, 0, 97], sizes = [2, 1, 256], strides = [1, 1, 1]} : vector<2x1x358xf32> to vector<2x1x256xf32>
    %c0_206 = arith.constant 0 : index
    %c43 = arith.constant 43 : index
    %704 = memref.load %arg3[%c0_206, %c43] : memref<2x49xf32, #tpu.memory_space<smem>>
    %705 = vector.broadcast %704 : f32 to vector<2x1x256xf32>
    %706 = arith.mulf %703, %705 : vector<2x1x256xf32>
    %707 = vector.extract_strided_slice %86 {offsets = [0, 0, 97], sizes = [2, 1, 256], strides = [1, 1, 1]} : vector<2x1x358xf32> to vector<2x1x256xf32>
    %c1_207 = arith.constant 1 : index
    %c43_208 = arith.constant 43 : index
    %708 = memref.load %arg3[%c1_207, %c43_208] : memref<2x49xf32, #tpu.memory_space<smem>>
    %709 = vector.broadcast %708 : f32 to vector<2x1x256xf32>
    %710 = arith.mulf %707, %709 : vector<2x1x256xf32>
    %711 = arith.addf %706, %710 : vector<2x1x256xf32>
    %712 = vector.broadcast %127 : vector<1x1x256xf32> to vector<2x1x256xf32>
    %713 = arith.mulf %711, %712 : vector<2x1x256xf32>
    %714 = arith.addf %702, %713 : vector<2x1x256xf32>
    %715 = vector.extract_strided_slice %81 {offsets = [0, 0, 98], sizes = [2, 1, 256], strides = [1, 1, 1]} : vector<2x1x358xf32> to vector<2x1x256xf32>
    %c0_209 = arith.constant 0 : index
    %c44 = arith.constant 44 : index
    %716 = memref.load %arg3[%c0_209, %c44] : memref<2x49xf32, #tpu.memory_space<smem>>
    %717 = vector.broadcast %716 : f32 to vector<2x1x256xf32>
    %718 = arith.mulf %715, %717 : vector<2x1x256xf32>
    %719 = vector.extract_strided_slice %86 {offsets = [0, 0, 98], sizes = [2, 1, 256], strides = [1, 1, 1]} : vector<2x1x358xf32> to vector<2x1x256xf32>
    %c1_210 = arith.constant 1 : index
    %c44_211 = arith.constant 44 : index
    %720 = memref.load %arg3[%c1_210, %c44_211] : memref<2x49xf32, #tpu.memory_space<smem>>
    %721 = vector.broadcast %720 : f32 to vector<2x1x256xf32>
    %722 = arith.mulf %719, %721 : vector<2x1x256xf32>
    %723 = arith.addf %718, %722 : vector<2x1x256xf32>
    %724 = vector.broadcast %139 : vector<1x1x256xf32> to vector<2x1x256xf32>
    %725 = arith.mulf %723, %724 : vector<2x1x256xf32>
    %726 = arith.addf %714, %725 : vector<2x1x256xf32>
    %727 = vector.extract_strided_slice %81 {offsets = [0, 0, 99], sizes = [2, 1, 256], strides = [1, 1, 1]} : vector<2x1x358xf32> to vector<2x1x256xf32>
    %c0_212 = arith.constant 0 : index
    %c45 = arith.constant 45 : index
    %728 = memref.load %arg3[%c0_212, %c45] : memref<2x49xf32, #tpu.memory_space<smem>>
    %729 = vector.broadcast %728 : f32 to vector<2x1x256xf32>
    %730 = arith.mulf %727, %729 : vector<2x1x256xf32>
    %731 = vector.extract_strided_slice %86 {offsets = [0, 0, 99], sizes = [2, 1, 256], strides = [1, 1, 1]} : vector<2x1x358xf32> to vector<2x1x256xf32>
    %c1_213 = arith.constant 1 : index
    %c45_214 = arith.constant 45 : index
    %732 = memref.load %arg3[%c1_213, %c45_214] : memref<2x49xf32, #tpu.memory_space<smem>>
    %733 = vector.broadcast %732 : f32 to vector<2x1x256xf32>
    %734 = arith.mulf %731, %733 : vector<2x1x256xf32>
    %735 = arith.addf %730, %734 : vector<2x1x256xf32>
    %736 = vector.broadcast %151 : vector<1x1x256xf32> to vector<2x1x256xf32>
    %737 = arith.mulf %735, %736 : vector<2x1x256xf32>
    %738 = arith.addf %726, %737 : vector<2x1x256xf32>
    %739 = vector.extract_strided_slice %81 {offsets = [0, 0, 100], sizes = [2, 1, 256], strides = [1, 1, 1]} : vector<2x1x358xf32> to vector<2x1x256xf32>
    %c0_215 = arith.constant 0 : index
    %c46 = arith.constant 46 : index
    %740 = memref.load %arg3[%c0_215, %c46] : memref<2x49xf32, #tpu.memory_space<smem>>
    %741 = vector.broadcast %740 : f32 to vector<2x1x256xf32>
    %742 = arith.mulf %739, %741 : vector<2x1x256xf32>
    %743 = vector.extract_strided_slice %86 {offsets = [0, 0, 100], sizes = [2, 1, 256], strides = [1, 1, 1]} : vector<2x1x358xf32> to vector<2x1x256xf32>
    %c1_216 = arith.constant 1 : index
    %c46_217 = arith.constant 46 : index
    %744 = memref.load %arg3[%c1_216, %c46_217] : memref<2x49xf32, #tpu.memory_space<smem>>
    %745 = vector.broadcast %744 : f32 to vector<2x1x256xf32>
    %746 = arith.mulf %743, %745 : vector<2x1x256xf32>
    %747 = arith.addf %742, %746 : vector<2x1x256xf32>
    %748 = vector.broadcast %163 : vector<1x1x256xf32> to vector<2x1x256xf32>
    %749 = arith.mulf %747, %748 : vector<2x1x256xf32>
    %750 = arith.addf %738, %749 : vector<2x1x256xf32>
    %751 = vector.extract_strided_slice %81 {offsets = [0, 0, 101], sizes = [2, 1, 256], strides = [1, 1, 1]} : vector<2x1x358xf32> to vector<2x1x256xf32>
    %c0_218 = arith.constant 0 : index
    %c47 = arith.constant 47 : index
    %752 = memref.load %arg3[%c0_218, %c47] : memref<2x49xf32, #tpu.memory_space<smem>>
    %753 = vector.broadcast %752 : f32 to vector<2x1x256xf32>
    %754 = arith.mulf %751, %753 : vector<2x1x256xf32>
    %755 = vector.extract_strided_slice %86 {offsets = [0, 0, 101], sizes = [2, 1, 256], strides = [1, 1, 1]} : vector<2x1x358xf32> to vector<2x1x256xf32>
    %c1_219 = arith.constant 1 : index
    %c47_220 = arith.constant 47 : index
    %756 = memref.load %arg3[%c1_219, %c47_220] : memref<2x49xf32, #tpu.memory_space<smem>>
    %757 = vector.broadcast %756 : f32 to vector<2x1x256xf32>
    %758 = arith.mulf %755, %757 : vector<2x1x256xf32>
    %759 = arith.addf %754, %758 : vector<2x1x256xf32>
    %760 = vector.broadcast %175 : vector<1x1x256xf32> to vector<2x1x256xf32>
    %761 = arith.mulf %759, %760 : vector<2x1x256xf32>
    %762 = arith.addf %750, %761 : vector<2x1x256xf32>
    %763 = vector.extract_strided_slice %81 {offsets = [0, 0, 102], sizes = [2, 1, 256], strides = [1, 1, 1]} : vector<2x1x358xf32> to vector<2x1x256xf32>
    %c0_221 = arith.constant 0 : index
    %c48 = arith.constant 48 : index
    %764 = memref.load %arg3[%c0_221, %c48] : memref<2x49xf32, #tpu.memory_space<smem>>
    %765 = vector.broadcast %764 : f32 to vector<2x1x256xf32>
    %766 = arith.mulf %763, %765 : vector<2x1x256xf32>
    %767 = vector.extract_strided_slice %86 {offsets = [0, 0, 102], sizes = [2, 1, 256], strides = [1, 1, 1]} : vector<2x1x358xf32> to vector<2x1x256xf32>
    %c1_222 = arith.constant 1 : index
    %c48_223 = arith.constant 48 : index
    %768 = memref.load %arg3[%c1_222, %c48_223] : memref<2x49xf32, #tpu.memory_space<smem>>
    %769 = vector.broadcast %768 : f32 to vector<2x1x256xf32>
    %770 = arith.mulf %767, %769 : vector<2x1x256xf32>
    %771 = arith.addf %766, %770 : vector<2x1x256xf32>
    %772 = vector.broadcast %187 : vector<1x1x256xf32> to vector<2x1x256xf32>
    %773 = arith.mulf %771, %772 : vector<2x1x256xf32>
    %774 = arith.addf %762, %773 : vector<2x1x256xf32>
    %c0_224 = arith.constant 0 : index
    %775 = memref.load %arg4[%c0_224] : memref<1xf32, #tpu.memory_space<smem>>
    %776 = vector.broadcast %775 : f32 to vector<2x1x256xf32>
    %777 = arith.addf %774, %776 : vector<2x1x256xf32>
    %cst_225 = arith.constant 0.000000e+00 : f32
    %778 = vector.broadcast %cst_225 : f32 to vector<2x1x256xf32>
    %779 = arith.subf %778, %777 : vector<2x1x256xf32>
    %780 = math.exp %779 : vector<2x1x256xf32>
    %cst_226 = arith.constant 1.000000e+00 : f32
    %781 = vector.broadcast %cst_226 : f32 to vector<2x1x256xf32>
    %782 = arith.addf %781, %780 : vector<2x1x256xf32>
    %cst_227 = arith.constant 1.000000e+00 : f32
    %783 = vector.broadcast %cst_227 : f32 to vector<2x1x256xf32>
    %784 = arith.divf %783, %782 : vector<2x1x256xf32>
    %785 = vector.broadcast %784 : vector<2x1x256xf32> to vector<2x32x256xf32>
    %786 = arith.mulf %70, %785 : vector<2x32x256xf32>
    %c0_228 = arith.constant 0 : index
    %c0_229 = arith.constant 0 : index
    %c0_230 = arith.constant 0 : index
    %787 = vector.load %arg5[%c0_228, %c0_229, %c0_230] : memref<2x32x256xf32, #tpu.memory_space<vmem>>, vector<2x32x256xf32>
    tpu.vector_store %arg5[%c0_228, %c0_229, %c0_230], %786 {strides = array<i32>} : memref<2x32x256xf32, #tpu.memory_space<vmem>>, vector<2x32x256xf32>,
    return
  }
}

</mosaic_0001>

<llo_original>
// kernel: tpu_custom_call.1
$region0: #{tpu_custom_call.1}
  #allocation0 [shape = 'u32[]', space=smem, size = 0x4, offset = 0x4, fixed_abs, tag = 'smem constant byte address 0x4 - core index']
  #allocation1 [shape = 'u32[144,128]{1,0:T(1,128)}', space=vmem, size = 0x12000, scoped, tag = 'internal scratch']
  #allocation2 [shape = 'f32[1]{0:T(128)S(6)}', space=smem, size = 0x200, scoped, tag = 'scoped memory for tpu_custom_call.1']
  %s0 = inlined_call_operand.hbm [shape: f32[2,32,256], index: 0, kind: input, shape index: {}]
  %s1 = inlined_call_operand.vmem [shape: f32[32,2], index: 1, kind: input, shape index: {}]
  %s2 = inlined_call_operand.vmem [shape: f32[32,2], index: 2, kind: input, shape index: {}]
  %s3 = inlined_call_operand.vmem [shape: f32[2,49], index: 3, kind: input, shape index: {}]
  %s4 = inlined_call_operand.<no memory space> [shape: f32[1], index: 4, kind: input, shape index: {}]
  %s5 = inlined_call_operand.hbm [shape: f32[2,32,256], index: 5, kind: output, shape index: {}]
  %s6 = sld [smem:[#allocation0]]
  $region38: #{tpu_custom_call.1} parent=0
    _
  %s8 = ssub.s32 1, %s6
  %s9 = scalar_select 0, %s8, %s6
  %10 = sst [smem:[#allocation2]] %s4
  $region1: #{tpu_custom_call.1} parent=0
    #allocation3 [shape = 'u8[65536]{0}', space=vmem, size = 0x10000, scoped, tag = 'input window, operand 0, single buffered']
    #allocation4 [shape = 's32[1]{0}', space=sflag, size = 0x4, scoped, tag = 'scoped memory for tpu_custom_call.1']
    #allocation5 [shape = 's32[1]{0}', space=sflag, size = 0x4, scoped, tag = 'scoped memory for tpu_custom_call.1']
    #allocation6 [shape = 's32[1]{0}', space=sflag, size = 0x4, scoped, tag = 'scoped memory for tpu_custom_call.1']
    #allocation7 [shape = 'u8[1024]{0}', space=smem, size = 0x400, scoped, tag = 'input window, operand 3, single buffered']
    #allocation8 [shape = 'u8[65536]{0}', space=vmem, size = 0x10000, scoped, tag = 'output window, operand 0, single buffered']
    %11 = vsyncpa [#allocation4], 0
    %12 = vsyncpa [#allocation6], 0
    %13 = vsyncpa [#allocation5], 0
    // Predicated region
    $region2: #{tpu_custom_call.1} parent=1 // pred_check
      _
    $region3: #{tpu_custom_call.1} parent=1 // pred_check_branch
      %15 = sbr.rel (0) target = $region5
    $region4: #{tpu_custom_call.1} parent=1 // pred_region
      %s17 = ssub.s32 2048, 2048
      %18 = vsyncadd [#allocation4], %s17
      %s19 = sshll.u32 [#allocation3], 4
      %s20 = int_to_ptr.vmem [resolvable:$true] %s19
      %25 = dma.hbm_to_vmem [thread:$0]  %s0, 2048, %s20, [#allocation4], 256, 256, 16
    $region5: #{tpu_custom_call.1} parent=1 // pred_fallthru
      _
    // Predicated region
    $region6: #{tpu_custom_call.1} parent=1 // pred_check
      _
    $region7: #{tpu_custom_call.1} parent=1 // pred_check_branch
      %27 = sbr.rel (0) target = $region9
    $region8: #{tpu_custom_call.1} parent=1 // pred_region
      _
    $region9: #{tpu_custom_call.1} parent=1 // pred_fallthru
      _
    // Predicated region
    $region10: #{tpu_custom_call.1} parent=1 // pred_check
      _
    $region11: #{tpu_custom_call.1} parent=1 // pred_check_branch
      %29 = sbr.rel (0) target = $region13
    $region12: #{tpu_custom_call.1} parent=1 // pred_region
      _
    $region13: #{tpu_custom_call.1} parent=1 // pred_fallthru
      _
    // Predicated region
    $region14: #{tpu_custom_call.1} parent=1 // pred_check
      _
    $region15: #{tpu_custom_call.1} parent=1 // pred_check_branch
      %31 = sbr.rel (0) target = $region17
    $region16: #{tpu_custom_call.1} parent=1 // pred_region
      %s33 = ssub.s32 32, 32
      %34 = vsyncadd [#allocation6], %s33
      %s36 = sshll.u32 %s3, 4
      %s37 = int_to_ptr.vmem [resolvable:$true] %s36
      %39 = dma.vmem_to_smem %s37, 32, [#allocation7], [#allocation6]
    $region17: #{tpu_custom_call.1} parent=1 // pred_fallthru
      _
    // Predicated region
    $region18: #{tpu_custom_call.1} parent=1 // pred_check
      _
    $region19: #{tpu_custom_call.1} parent=1 // pred_check_branch
      %41 = sbr.rel (0) target = $region21
    $region20: #{tpu_custom_call.1} parent=1 // pred_region
      _
    $region21: #{tpu_custom_call.1} parent=1 // pred_fallthru
      _
    // Predicated region
    $region22: #{tpu_custom_call.1} parent=1 // pred_check
      _
    $region23: #{tpu_custom_call.1} parent=1 // pred_check_branch
      %43 = sbr.rel (0) target = $region25
    $region24: #{tpu_custom_call.1} parent=1 // pred_region
      %44 = dma.done [#allocation4], 2048
    $region25: #{tpu_custom_call.1} parent=1 // pred_fallthru
      _
    // Predicated region
    $region26: #{tpu_custom_call.1} parent=1 // pred_check
      _
    $region27: #{tpu_custom_call.1} parent=1 // pred_check_branch
      %46 = sbr.rel (0) target = $region29
    $region28: #{tpu_custom_call.1} parent=1 // pred_region
      %47 = dma.done [#allocation6], 32
    $region29: #{tpu_custom_call.1} parent=1 // pred_fallthru
      _
    %48 = sfence
    %v49 = vld [vmem:[#allocation3] sm:$0xff]
    %v50 = vld [vmem:[#allocation3 + $0x8] sm:$0xff]
    %v51 = vld [vmem:[#allocation3 + $0x10] sm:$0xff]
    %v52 = vld [vmem:[#allocation3 + $0x18] sm:$0xff]
    %v53 = vld [vmem:[#allocation3 + $0x20] sm:$0xff]
    %v54 = vld [vmem:[#allocation3 + $0x28] sm:$0xff]
    %v55 = vld [vmem:[#allocation3 + $0x30] sm:$0xff]
    %v56 = vld [vmem:[#allocation3 + $0x38] sm:$0xff]
    %v57 = vld [vmem:[#allocation3 + $0x40] sm:$0xff]
    %v58 = vld [vmem:[#allocation3 + $0x48] sm:$0xff]
    %v59 = vld [vmem:[#allocation3 + $0x50] sm:$0xff]
    %v60 = vld [vmem:[#allocation3 + $0x58] sm:$0xff]
    %v61 = vld [vmem:[#allocation3 + $0x60] sm:$0xff]
    %v62 = vld [vmem:[#allocation3 + $0x68] sm:$0xff]
    %v63 = vld [vmem:[#allocation3 + $0x70] sm:$0xff]
    %v64 = vld [vmem:[#allocation3 + $0x78] sm:$0xff]
    %v65 = vadd.f32 %v49, %v50
    %66 = vadd.xlane.f32.xlu0 %v65
    %v67 = vpop.xlane.xlu0 %66
    %v68 = vadd.f32 %v51, %v52
    %69 = vadd.xlane.f32.xlu0 %v68
    %v70 = vpop.xlane.xlu0 %69
    %v71 = vadd.f32 %v53, %v54
    %72 = vadd.xlane.f32.xlu0 %v71
    %v73 = vpop.xlane.xlu0 %72
    %v74 = vadd.f32 %v55, %v56
    %75 = vadd.xlane.f32.xlu0 %v74
    %v76 = vpop.xlane.xlu0 %75
    %v77 = vadd.f32 %v57, %v58
    %78 = vadd.xlane.f32.xlu0 %v77
    %v79 = vpop.xlane.xlu0 %78
    %v80 = vadd.f32 %v59, %v60
    %81 = vadd.xlane.f32.xlu0 %v80
    %v82 = vpop.xlane.xlu0 %81
    %v83 = vadd.f32 %v61, %v62
    %84 = vadd.xlane.f32.xlu0 %v83
    %v85 = vpop.xlane.xlu0 %84
    %v86 = vadd.f32 %v63, %v64
    %87 = vadd.xlane.f32.xlu0 %v86
    %v88 = vpop.xlane.xlu0 %87
    %v89 = vrcp.pop 256.0
    %v90 = vmul.f32 %v67, %v89
    %v91 = vmul.f32 %v70, %v89
    %v92 = vmul.f32 %v73, %v89
    %v93 = vmul.f32 %v76, %v89
    %v94 = vmul.f32 %v79, %v89
    %v95 = vmul.f32 %v82, %v89
    %v96 = vmul.f32 %v85, %v89
    %v97 = vmul.f32 %v88, %v89
    %v98 = vmax.f32 %v49, %v50
    %99 = vmax.xlane.f32.xlu0 %v98
    %v100 = vpop.xlane.xlu0 %99
    %v101 = vmax.f32 %v51, %v52
    %102 = vmax.xlane.f32.xlu0 %v101
    %v103 = vpop.xlane.xlu0 %102
    %v104 = vmax.f32 %v53, %v54
    %105 = vmax.xlane.f32.xlu0 %v104
    %v106 = vpop.xlane.xlu0 %105
    %v107 = vmax.f32 %v55, %v56
    %108 = vmax.xlane.f32.xlu0 %v107
    %v109 = vpop.xlane.xlu0 %108
    %v110 = vmax.f32 %v57, %v58
    %111 = vmax.xlane.f32.xlu0 %v110
    %v112 = vpop.xlane.xlu0 %111
    %v113 = vmax.f32 %v59, %v60
    %114 = vmax.xlane.f32.xlu0 %v113
    %v115 = vpop.xlane.xlu0 %114
    %v116 = vmax.f32 %v61, %v62
    %117 = vmax.xlane.f32.xlu0 %v116
    %v118 = vpop.xlane.xlu0 %117
    %v119 = vmax.f32 %v63, %v64
    %120 = vmax.xlane.f32.xlu0 %v119
    %v121 = vpop.xlane.xlu0 %120
    %v122 = vld [vmem:[%s1] sm:$0xff]
    %v123 = vld [vmem:[%s1 + $0x8] sm:$0xff]
    %v124 = vld [vmem:[%s1 + $0x10] sm:$0xff]
    %v125 = vld [vmem:[%s1 + $0x18] sm:$0xff]
    %v126 = vmul.f32 %v90, %v122
    %v127 = vmul.f32 %v91, %v123
    %v128 = vmul.f32 %v92, %v124
    %v129 = vmul.f32 %v93, %v125
    %v130 = vmul.f32 %v94, %v122
    %v131 = vmul.f32 %v95, %v123
    %v132 = vmul.f32 %v96, %v124
    %v133 = vmul.f32 %v97, %v125
    %vm134 = vcmask 7168
    %v135 = vsel %vm134, %v126, 0.0
    %v136 = vsel %vm134, %v127, 0.0
    %v137 = vadd.f32 %v135, %v136
    %v138 = vsel %vm134, %v128, 0.0
    %v139 = vadd.f32 %v137, %v138
    %v140 = vsel %vm134, %v129, 0.0
    %v141 = vadd.f32 %v139, %v140
    %v142 = vrot.slane %v141, 4
    %v143 = vadd.f32 %v141, %v142
    %v144 = vrot.slane %v143, 2
    %v145 = vadd.f32 %v143, %v144
    %v146 = vrot.slane %v145, 1
    %v147 = vadd.f32 %v145, %v146
    %v148 = vsel %vm134, %v130, 0.0
    %v149 = vsel %vm134, %v131, 0.0
    %v150 = vadd.f32 %v148, %v149
    %v151 = vsel %vm134, %v132, 0.0
    %v152 = vadd.f32 %v150, %v151
    %v153 = vsel %vm134, %v133, 0.0
    %v154 = vadd.f32 %v152, %v153
    %v155 = vrot.slane %v154, 4
    %v156 = vadd.f32 %v154, %v155
    %v157 = vrot.slane %v156, 2
    %v158 = vadd.f32 %v156, %v157
    %v159 = vrot.slane %v158, 1
    %v160 = vadd.f32 %v158, %v159
    %v161 = vmax.f32 %v147, 0.0
    %v162 = vmax.f32 %v160, 0.0
    %v163 = vld [vmem:[%s2] sm:$0xff]
    %v164 = vld [vmem:[%s2 + $0x8] sm:$0xff]
    %v165 = vld [vmem:[%s2 + $0x10] sm:$0xff]
    %v166 = vld [vmem:[%s2 + $0x18] sm:$0xff]
    %v167 = vmul.f32 %v161, %v163
    %v168 = vmul.f32 %v161, %v164
    %v169 = vmul.f32 %v161, %v165
    %v170 = vmul.f32 %v161, %v166
    %v171 = vmul.f32 %v162, %v163
    %v172 = vmul.f32 %v162, %v164
    %v173 = vmul.f32 %v162, %v165
    %v174 = vmul.f32 %v162, %v166
    %vm175 = vcmask 15368
    %v176 = vsel %vm175, %v126, 0.0
    %v177 = vsel %vm175, %v127, 0.0
    %v178 = vadd.f32 %v176, %v177
    %v179 = vsel %vm175, %v128, 0.0
    %v180 = vadd.f32 %v178, %v179
    %v181 = vsel %vm175, %v129, 0.0
    %v182 = vadd.f32 %v180, %v181
    %v183 = vrot.slane %v182, 4
    %v184 = vadd.f32 %v182, %v183
    %v185 = vrot.slane %v184, 2
    %v186 = vadd.f32 %v184, %v185
    %v187 = vrot.slane %v186, 1
    %v188 = vadd.f32 %v186, %v187
    %v189 = vsel %vm175, %v130, 0.0
    %v190 = vsel %vm175, %v131, 0.0
    %v191 = vadd.f32 %v189, %v190
    %v192 = vsel %vm175, %v132, 0.0
    %v193 = vadd.f32 %v191, %v192
    %v194 = vsel %vm175, %v133, 0.0
    %v195 = vadd.f32 %v193, %v194
    %v196 = vrot.slane %v195, 4
    %v197 = vadd.f32 %v195, %v196
    %v198 = vrot.slane %v197, 2
    %v199 = vadd.f32 %v197, %v198
    %v200 = vrot.slane %v199, 1
    %v201 = vadd.f32 %v199, %v200
    %v202 = vmax.f32 %v188, 0.0
    %v203 = vmax.f32 %v201, 0.0
    %v204 = vmul.f32 %v202, %v163
    %v205 = vmul.f32 %v202, %v164
    %v206 = vmul.f32 %v202, %v165
    %v207 = vmul.f32 %v202, %v166
    %v208 = vmul.f32 %v203, %v163
    %v209 = vmul.f32 %v203, %v164
    %v210 = vmul.f32 %v203, %v165
    %v211 = vmul.f32 %v203, %v166
    %220 = vrot.lane.b32.xlu0 %v204, 127
    %v221 = vpop.permute.xlu0 %220
    %222 = vrot.lane.b32.xlu0 %v205, 127
    %v223 = vpop.permute.xlu0 %222
    %224 = vrot.lane.b32.xlu0 %v206, 127
    %v225 = vpop.permute.xlu0 %224
    %226 = vrot.lane.b32.xlu0 %v207, 127
    %v227 = vpop.permute.xlu0 %226
    %228 = vrot.lane.b32.xlu0 %v208, 127
    %v229 = vpop.permute.xlu0 %228
    %230 = vrot.lane.b32.xlu0 %v209, 127
    %v231 = vpop.permute.xlu0 %230
    %232 = vrot.lane.b32.xlu0 %v210, 127
    %v233 = vpop.permute.xlu0 %232
    %234 = vrot.lane.b32.xlu0 %v211, 127
    %v235 = vpop.permute.xlu0 %234
    %v244 = vadd.f32 %v167, %v221
    %v245 = vadd.f32 %v168, %v223
    %v246 = vadd.f32 %v169, %v225
    %v247 = vadd.f32 %v170, %v227
    %v248 = vadd.f32 %v171, %v229
    %v249 = vadd.f32 %v172, %v231
    %v250 = vadd.f32 %v173, %v233
    %v251 = vadd.f32 %v174, %v235
    %v252 = vmul.f32 %v100, %v122
    %v253 = vmul.f32 %v103, %v123
    %v254 = vmul.f32 %v106, %v124
    %v255 = vmul.f32 %v109, %v125
    %v256 = vmul.f32 %v112, %v122
    %v257 = vmul.f32 %v115, %v123
    %v258 = vmul.f32 %v118, %v124
    %v259 = vmul.f32 %v121, %v125
    %v260 = vsel %vm134, %v252, 0.0
    %v261 = vsel %vm134, %v253, 0.0
    %v262 = vadd.f32 %v260, %v261
    %v263 = vsel %vm134, %v254, 0.0
    %v264 = vadd.f32 %v262, %v263
    %v265 = vsel %vm134, %v255, 0.0
    %v266 = vadd.f32 %v264, %v265
    %v267 = vrot.slane %v266, 4
    %v268 = vadd.f32 %v266, %v267
    %v269 = vrot.slane %v268, 2
    %v270 = vadd.f32 %v268, %v269
    %v271 = vrot.slane %v270, 1
    %v272 = vadd.f32 %v270, %v271
    %v273 = vsel %vm134, %v256, 0.0
    %v274 = vsel %vm134, %v257, 0.0
    %v275 = vadd.f32 %v273, %v274
    %v276 = vsel %vm134, %v258, 0.0
    %v277 = vadd.f32 %v275, %v276
    %v278 = vsel %vm134, %v259, 0.0
    %v279 = vadd.f32 %v277, %v278
    %v280 = vrot.slane %v279, 4
    %v281 = vadd.f32 %v279, %v280
    %v282 = vrot.slane %v281, 2
    %v283 = vadd.f32 %v281, %v282
    %v284 = vrot.slane %v283, 1
    %v285 = vadd.f32 %v283, %v284
    %v286 = vmax.f32 %v272, 0.0
    %v287 = vmax.f32 %v285, 0.0
    %v288 = vmul.f32 %v286, %v163
    %v289 = vmul.f32 %v286, %v164
    %v290 = vmul.f32 %v286, %v165
    %v291 = vmul.f32 %v286, %v166
    %v292 = vmul.f32 %v287, %v163
    %v293 = vmul.f32 %v287, %v164
    %v294 = vmul.f32 %v287, %v165
    %v295 = vmul.f32 %v287, %v166
    %v296 = vsel %vm175, %v252, 0.0
    %v297 = vsel %vm175, %v253, 0.0
    %v298 = vadd.f32 %v296, %v297
    %v299 = vsel %vm175, %v254, 0.0
    %v300 = vadd.f32 %v298, %v299
    %v301 = vsel %vm175, %v255, 0.0
    %v302 = vadd.f32 %v300, %v301
    %v303 = vrot.slane %v302, 4
    %v304 = vadd.f32 %v302, %v303
    %v305 = vrot.slane %v304, 2
    %v306 = vadd.f32 %v304, %v305
    %v307 = vrot.slane %v306, 1
    %v308 = vadd.f32 %v306, %v307
    %v309 = vsel %vm175, %v256, 0.0
    %v310 = vsel %vm175, %v257, 0.0
    %v311 = vadd.f32 %v309, %v310
    %v312 = vsel %vm175, %v258, 0.0
    %v313 = vadd.f32 %v311, %v312
    %v314 = vsel %vm175, %v259, 0.0
    %v315 = vadd.f32 %v313, %v314
    %v316 = vrot.slane %v315, 4
    %v317 = vadd.f32 %v315, %v316
    %v318 = vrot.slane %v317, 2
    %v319 = vadd.f32 %v317, %v318
    %v320 = vrot.slane %v319, 1
    %v321 = vadd.f32 %v319, %v320
    %v322 = vmax.f32 %v308, 0.0
    %v323 = vmax.f32 %v321, 0.0
    %v324 = vmul.f32 %v322, %v163
    %v325 = vmul.f32 %v322, %v164
    %v326 = vmul.f32 %v322, %v165
    %v327 = vmul.f32 %v322, %v166
    %v328 = vmul.f32 %v323, %v163
    %v329 = vmul.f32 %v323, %v164
    %v330 = vmul.f32 %v323, %v165
    %v331 = vmul.f32 %v323, %v166
    %340 = vrot.lane.b32.xlu0 %v324, 127
    %v341 = vpop.permute.xlu0 %340
    %342 = vrot.lane.b32.xlu0 %v325, 127
    %v343 = vpop.permute.xlu0 %342
    %344 = vrot.lane.b32.xlu0 %v326, 127
    %v345 = vpop.permute.xlu0 %344
    %346 = vrot.lane.b32.xlu0 %v327, 127
    %v347 = vpop.permute.xlu0 %346
    %348 = vrot.lane.b32.xlu0 %v328, 127
    %v349 = vpop.permute.xlu0 %348
    %350 = vrot.lane.b32.xlu0 %v329, 127
    %v351 = vpop.permute.xlu0 %350
    %352 = vrot.lane.b32.xlu0 %v330, 127
    %v353 = vpop.permute.xlu0 %352
    %354 = vrot.lane.b32.xlu0 %v331, 127
    %v355 = vpop.permute.xlu0 %354
    %v364 = vadd.f32 %v288, %v341
    %v365 = vadd.f32 %v289, %v343
    %v366 = vadd.f32 %v290, %v345
    %v367 = vadd.f32 %v291, %v347
    %v368 = vadd.f32 %v292, %v349
    %v369 = vadd.f32 %v293, %v351
    %v370 = vadd.f32 %v294, %v353
    %v371 = vadd.f32 %v295, %v355
    %v372 = vadd.f32 %v244, %v364
    %v373 = vadd.f32 %v245, %v365
    %v374 = vadd.f32 %v246, %v366
    %v375 = vadd.f32 %v247, %v367
    %v376 = vadd.f32 %v248, %v368
    %v377 = vadd.f32 %v249, %v369
    %v378 = vadd.f32 %v250, %v370
    %v379 = vadd.f32 %v251, %v371
    %v380 = vsub.f32 0.0, %v372
    %v381 = vsub.f32 0.0, %v373
    %v382 = vsub.f32 0.0, %v374
    %v383 = vsub.f32 0.0, %v375
    %v384 = vsub.f32 0.0, %v376
    %v385 = vsub.f32 0.0, %v377
    %v386 = vsub.f32 0.0, %v378
    %v387 = vsub.f32 0.0, %v379
    %v388 = vmul.f32 %v380, 1.442695
    %v389 = vpow.pop %v388
    %v390 = vmul.f32 %v381, 1.442695
    %v391 = vpow.pop %v390
    %v392 = vmul.f32 %v382, 1.442695
    %v393 = vpow.pop %v392
    %v394 = vmul.f32 %v383, 1.442695
    %v395 = vpow.pop %v394
    %v396 = vmul.f32 %v384, 1.442695
    %v397 = vpow.pop %v396
    %v398 = vmul.f32 %v385, 1.442695
    %v399 = vpow.pop %v398
    %v400 = vmul.f32 %v386, 1.442695
    %v401 = vpow.pop %v400
    %v402 = vmul.f32 %v387, 1.442695
    %v403 = vpow.pop %v402
    %v404 = vadd.f32 %v389, 1.0
    %v405 = vadd.f32 %v391, 1.0
    %v406 = vadd.f32 %v393, 1.0
    %v407 = vadd.f32 %v395, 1.0
    %v408 = vadd.f32 %v397, 1.0
    %v409 = vadd.f32 %v399, 1.0
    %v410 = vadd.f32 %v401, 1.0
    %v411 = vadd.f32 %v403, 1.0
    %v412 = vrcp.pop %v404
    %v413 = vmul.f32 1.0, %v412
    %v414 = vrcp.pop %v405
    %v415 = vmul.f32 1.0, %v414
    %v416 = vrcp.pop %v406
    %v417 = vmul.f32 1.0, %v416
    %v418 = vrcp.pop %v407
    %v419 = vmul.f32 1.0, %v418
    %v420 = vrcp.pop %v408
    %v421 = vmul.f32 1.0, %v420
    %v422 = vrcp.pop %v409
    %v423 = vmul.f32 1.0, %v422
    %v424 = vrcp.pop %v410
    %v425 = vmul.f32 1.0, %v424
    %v426 = vrcp.pop %v411
    %v427 = vmul.f32 1.0, %v426
    %429 = vset.pattern.permute.xlu0 0
    %430 = vperm.xlu0 %429, %v413
    %v431 = vpop.permute.xlu0 %430
    %434 = vset.pattern.permute.xlu0 0
    %435 = vperm.xlu0 %434, %v415
    %v436 = vpop.permute.xlu0 %435
    %439 = vset.pattern.permute.xlu0 0
    %440 = vperm.xlu0 %439, %v417
    %v441 = vpop.permute.xlu0 %440
    %444 = vset.pattern.permute.xlu0 0
    %445 = vperm.xlu0 %444, %v419
    %v446 = vpop.permute.xlu0 %445
    %449 = vset.pattern.permute.xlu0 0
    %450 = vperm.xlu0 %449, %v421
    %v451 = vpop.permute.xlu0 %450
    %454 = vset.pattern.permute.xlu0 0
    %455 = vperm.xlu0 %454, %v423
    %v456 = vpop.permute.xlu0 %455
    %459 = vset.pattern.permute.xlu0 0
    %460 = vperm.xlu0 %459, %v425
    %v461 = vpop.permute.xlu0 %460
    %464 = vset.pattern.permute.xlu0 0
    %465 = vperm.xlu0 %464, %v427
    %v466 = vpop.permute.xlu0 %465
    %v468 = vmul.f32 %v49, %v431
    %v469 = vmul.f32 %v50, %v431
    %v470 = vmul.f32 %v51, %v436
    %v471 = vmul.f32 %v52, %v436
    %v472 = vmul.f32 %v53, %v441
    %v473 = vmul.f32 %v54, %v441
    %v474 = vmul.f32 %v55, %v446
    %v475 = vmul.f32 %v56, %v446
    %v476 = vmul.f32 %v57, %v451
    %v477 = vmul.f32 %v58, %v451
    %v478 = vmul.f32 %v59, %v456
    %v479 = vmul.f32 %v60, %v456
    %v480 = vmul.f32 %v61, %v461
    %v481 = vmul.f32 %v62, %v461
    %v482 = vmul.f32 %v63, %v466
    %v483 = vmul.f32 %v64, %v466
    %v484 = vadd.f32 %v468, %v470
    %v485 = vadd.f32 %v484, %v472
    %v486 = vadd.f32 %v485, %v474
    %v487 = vrot.slane %v486, 4
    %v488 = vadd.f32 %v486, %v487
    %v489 = vrot.slane %v488, 2
    %v490 = vadd.f32 %v488, %v489
    %v491 = vrot.slane %v490, 1
    %v492 = vadd.f32 %v490, %v491
    %v493 = vadd.f32 %v469, %v471
    %v494 = vadd.f32 %v493, %v473
    %v495 = vadd.f32 %v494, %v475
    %v496 = vrot.slane %v495, 4
    %v497 = vadd.f32 %v495, %v496
    %v498 = vrot.slane %v497, 2
    %v499 = vadd.f32 %v497, %v498
    %v500 = vrot.slane %v499, 1
    %v501 = vadd.f32 %v499, %v500
    %v502 = vadd.f32 %v476, %v478
    %v503 = vadd.f32 %v502, %v480
    %v504 = vadd.f32 %v503, %v482
    %v505 = vrot.slane %v504, 4
    %v506 = vadd.f32 %v504, %v505
    %v507 = vrot.slane %v506, 2
    %v508 = vadd.f32 %v506, %v507
    %v509 = vrot.slane %v508, 1
    %v510 = vadd.f32 %v508, %v509
    %v511 = vadd.f32 %v477, %v479
    %v512 = vadd.f32 %v511, %v481
    %v513 = vadd.f32 %v512, %v483
    %v514 = vrot.slane %v513, 4
    %v515 = vadd.f32 %v513, %v514
    %v516 = vrot.slane %v515, 2
    %v517 = vadd.f32 %v515, %v516
    %v518 = vrot.slane %v517, 1
    %v519 = vadd.f32 %v517, %v518
    %v520 = vrcp.pop 32.0
    %v521 = vmul.f32 %v492, %v520
    %v522 = vmul.f32 %v501, %v520
    %v523 = vmul.f32 %v510, %v520
    %v524 = vmul.f32 %v519, %v520
    %v525 = vmax.f32 %v468, %v470
    %v526 = vmax.f32 %v525, %v472
    %v527 = vmax.f32 %v526, %v474
    %v528 = vrot.slane %v527, 4
    %v529 = vmax.f32 %v527, %v528
    %v530 = vrot.slane %v529, 2
    %v531 = vmax.f32 %v529, %v530
    %v532 = vrot.slane %v531, 1
    %v533 = vmax.f32 %v531, %v532
    %v534 = vmax.f32 %v469, %v471
    %v535 = vmax.f32 %v534, %v473
    %v536 = vmax.f32 %v535, %v475
    %v537 = vrot.slane %v536, 4
    %v538 = vmax.f32 %v536, %v537
    %v539 = vrot.slane %v538, 2
    %v540 = vmax.f32 %v538, %v539
    %v541 = vrot.slane %v540, 1
    %v542 = vmax.f32 %v540, %v541
    %v543 = vmax.f32 %v476, %v478
    %v544 = vmax.f32 %v543, %v480
    %v545 = vmax.f32 %v544, %v482
    %v546 = vrot.slane %v545, 4
    %v547 = vmax.f32 %v545, %v546
    %v548 = vrot.slane %v547, 2
    %v549 = vmax.f32 %v547, %v548
    %v550 = vrot.slane %v549, 1
    %v551 = vmax.f32 %v549, %v550
    %v552 = vmax.f32 %v477, %v479
    %v553 = vmax.f32 %v552, %v481
    %v554 = vmax.f32 %v553, %v483
    %v555 = vrot.slane %v554, 4
    %v556 = vmax.f32 %v554, %v555
    %v557 = vrot.slane %v556, 2
    %v558 = vmax.f32 %v556, %v557
    %v559 = vrot.slane %v558, 1
    %v560 = vmax.f32 %v558, %v559
    %565 = vrot.lane.b32.xlu0 %v521, 51
    %v566 = vpop.permute.xlu0 %565
    %567 = vrot.lane.b32.xlu0 %v522, 51
    %v568 = vpop.permute.xlu0 %567
    %569 = vrot.lane.b32.xlu0 %v523, 51
    %v570 = vpop.permute.xlu0 %569
    %571 = vrot.lane.b32.xlu0 %v524, 51
    %v572 = vpop.permute.xlu0 %571
    %vm573 = vcmask 416768
    %v574 = vsel %vm573, %v566, %v568
    %v575 = vsel %vm573, %v570, %v572
    %v582 = vsel %vm573, 0.0, %v566
    %v583 = vsel %vm573, 0.0, %v570
    %v584 = vsel %vm573, %v568, 0.0
    %v585 = vsel %vm573, %v572, 0.0
    %590 = vrot.lane.b32.xlu0 %v533, 51
    %v591 = vpop.permute.xlu0 %590
    %592 = vrot.lane.b32.xlu0 %v542, 51
    %v593 = vpop.permute.xlu0 %592
    %594 = vrot.lane.b32.xlu0 %v551, 51
    %v595 = vpop.permute.xlu0 %594
    %596 = vrot.lane.b32.xlu0 %v560, 51
    %v597 = vpop.permute.xlu0 %596
    %v598 = vsel %vm573, %v591, %v593
    %v599 = vsel %vm573, %v595, %v597
    %v606 = vsel %vm573, 0.0, %v591
    %v607 = vsel %vm573, 0.0, %v595
    %v608 = vsel %vm573, %v593, 0.0
    %v609 = vsel %vm573, %v597, 0.0
    %v610 = vlaneseq
    %v611 = vand.u32 %v610, 127
    %v612 = vadd.s32 %v611, 128
    %vm613 = vcmp.lt.s32.totalorder %v611, 0
    %v614 = vsub.s32 0, %v611
    %v615 = vsel %vm613, %v614, %v611
    %v616 = vshrl.u32 %v615, 4
    %v617 = vand.u32 %v615, 15
    %v618 = vsub.s32 0, %v617
    %v619 = vsel %vm613, %v618, %v617
    %vm620 = vcmp.lt.s32.totalorder %v612, 0
    %v621 = vsub.s32 0, %v612
    %v622 = vsel %vm620, %v621, %v612
    %v623 = vshrl.u32 %v622, 4
    %v624 = vand.u32 %v622, 15
    %v625 = vsub.s32 0, %v624
    %v626 = vsel %vm620, %v625, %v624
    %vm627 = vcmp.ne.s32.totalorder %v619, 0
    %vm628 = vcmp.ne.s32.totalorder %v626, 0
    %vm629 = vcmp.lt.s32.totalorder %v619, 0
    %vm630 = vcmp.lt.s32.totalorder %v626, 0
    %vm631 = vmand %vm629, %vm627
    %vm632 = vmand %vm630, %vm628
    %v633 = vadd.s32 %v619, 16
    %v634 = vadd.s32 %v626, 16
    %v635 = vsel %vm631, %v633, %v619
    %v636 = vsel %vm632, %v634, %v626
    %v637 = vadd.s32 %v635, 4294967293
    %v638 = vadd.s32 %v636, 4294967293
    %vm639 = vcmp.ge.s32.totalorder %v637, 0
    %vm640 = vcmp.ge.s32.totalorder %v638, 0
    %vm641 = vcmp.lt.s32.totalorder %v637, 16
    %vm642 = vcmp.lt.s32.totalorder %v638, 16
    %vm643 = vmand %vm639, %vm641
    %vm644 = vmand %vm640, %vm642
    %v645 = vsel %vm643, 1.0, 0.0
    %v646 = vsel %vm644, 1.0, 0.0
    %v647 = vadd.s32 %v635, 4294967294
    %v648 = vadd.s32 %v636, 4294967294
    %vm649 = vcmp.ge.s32.totalorder %v647, 0
    %vm650 = vcmp.ge.s32.totalorder %v648, 0
    %vm651 = vcmp.lt.s32.totalorder %v647, 16
    %vm652 = vcmp.lt.s32.totalorder %v648, 16
    %vm653 = vmand %vm649, %vm651
    %vm654 = vmand %vm650, %vm652
    %v655 = vsel %vm653, 1.0, 0.0
    %v656 = vsel %vm654, 1.0, 0.0
    %v657 = vadd.s32 %v635, 4294967295
    %v658 = vadd.s32 %v636, 4294967295
    %vm659 = vcmp.ge.s32.totalorder %v657, 0
    %vm660 = vcmp.ge.s32.totalorder %v658, 0
    %vm661 = vcmp.lt.s32.totalorder %v657, 16
    %vm662 = vcmp.lt.s32.totalorder %v658, 16
    %vm663 = vmand %vm659, %vm661
    %vm664 = vmand %vm660, %vm662
    %v665 = vsel %vm663, 1.0, 0.0
    %v666 = vsel %vm664, 1.0, 0.0
    %vm667 = vcmp.ge.s32.totalorder %v635, 0
    %vm668 = vcmp.ge.s32.totalorder %v636, 0
    %vm669 = vcmp.lt.s32.totalorder %v635, 16
    %vm670 = vcmp.lt.s32.totalorder %v636, 16
    %vm671 = vmand %vm667, %vm669
    %vm672 = vmand %vm668, %vm670
    %v673 = vsel %vm671, 1.0, 0.0
    %v674 = vsel %vm672, 1.0, 0.0
    %v675 = vadd.s32 %v635, 1
    %v676 = vadd.s32 %v636, 1
    %vm677 = vcmp.ge.s32.totalorder %v675, 0
    %vm678 = vcmp.ge.s32.totalorder %v676, 0
    %vm679 = vcmp.lt.s32.totalorder %v675, 16
    %vm680 = vcmp.lt.s32.totalorder %v676, 16
    %vm681 = vmand %vm677, %vm679
    %vm682 = vmand %vm678, %vm680
    %v683 = vsel %vm681, 1.0, 0.0
    %v684 = vsel %vm682, 1.0, 0.0
    %v685 = vadd.s32 %v635, 2
    %v686 = vadd.s32 %v636, 2
    %vm687 = vcmp.ge.s32.totalorder %v685, 0
    %vm688 = vcmp.ge.s32.totalorder %v686, 0
    %vm689 = vcmp.lt.s32.totalorder %v685, 16
    %vm690 = vcmp.lt.s32.totalorder %v686, 16
    %vm691 = vmand %vm687, %vm689
    %vm692 = vmand %vm688, %vm690
    %v693 = vsel %vm691, 1.0, 0.0
    %v694 = vsel %vm692, 1.0, 0.0
    %v695 = vadd.s32 %v635, 3
    %v696 = vadd.s32 %v636, 3
    %vm697 = vcmp.ge.s32.totalorder %v695, 0
    %vm698 = vcmp.ge.s32.totalorder %v696, 0
    %vm699 = vcmp.lt.s32.totalorder %v695, 16
    %vm700 = vcmp.lt.s32.totalorder %v696, 16
    %vm701 = vmand %vm697, %vm699
    %vm702 = vmand %vm698, %vm700
    %v703 = vsel %vm701, 1.0, 0.0
    %v704 = vsel %vm702, 1.0, 0.0
    %s705 = sld [smem:[#allocation7]]
    %v706 = vstv %s705
    %v707 = vmul.f32 %v582, %v706
    %v708 = vmul.f32 %v574, %v706
    %v709 = vmul.f32 %v583, %v706
    %v710 = vmul.f32 %v575, %v706
    %s711 = sld [smem:[#allocation7 + $0x80]]
    %v712 = vstv %s711
    %v713 = vmul.f32 %v606, %v712
    %v714 = vmul.f32 %v598, %v712
    %v715 = vmul.f32 %v607, %v712
    %v716 = vmul.f32 %v599, %v712
    %v717 = vadd.f32 %v707, %v713
    %v718 = vadd.f32 %v708, %v714
    %v719 = vadd.f32 %v709, %v715
    %v720 = vadd.f32 %v710, %v716
    %v721 = vmul.f32 %v717, %v645
    %v722 = vmul.f32 %v718, %v646
    %v723 = vmul.f32 %v719, %v645
    %v724 = vmul.f32 %v720, %v646
    %s725 = sld [smem:[#allocation7 + $0x1]]
    %v726 = vstv %s725
    %v727 = vmul.f32 %v582, %v726
    %v728 = vmul.f32 %v574, %v726
    %v729 = vmul.f32 %v584, %v726
    %v730 = vmul.f32 %v583, %v726
    %v731 = vmul.f32 %v575, %v726
    %v732 = vmul.f32 %v585, %v726
    %s733 = sld [smem:[#allocation7 + $0x81]]
    %v734 = vstv %s733
    %v735 = vmul.f32 %v606, %v734
    %v736 = vmul.f32 %v598, %v734
    %v737 = vmul.f32 %v608, %v734
    %v738 = vmul.f32 %v607, %v734
    %v739 = vmul.f32 %v599, %v734
    %v740 = vmul.f32 %v609, %v734
    %v741 = vadd.f32 %v727, %v735
    %v742 = vadd.f32 %v728, %v736
    %v743 = vadd.f32 %v729, %v737
    %v744 = vadd.f32 %v730, %v738
    %v745 = vadd.f32 %v731, %v739
    %v746 = vadd.f32 %v732, %v740
    %749 = vrot.lane.b32.xlu0 %v655, 1
    %v750 = vpop.permute.xlu0 %749
    %751 = vrot.lane.b32.xlu0 %v656, 1
    %v752 = vpop.permute.xlu0 %751
    %v753 = vsel %vm134, %v750, %v752
    %v757 = vmul.f32 %v741, %v750
    %v758 = vmul.f32 %v742, %v753
    %v759 = vmul.f32 %v743, %v752
    %v760 = vmul.f32 %v744, %v750
    %v761 = vmul.f32 %v745, %v753
    %v762 = vmul.f32 %v746, %v752
    %769 = vrot.lane.b32.xlu0 %v757, 127
    %v770 = vpop.permute.xlu0 %769
    %771 = vrot.lane.b32.xlu0 %v758, 127
    %v772 = vpop.permute.xlu0 %771
    %773 = vrot.lane.b32.xlu0 %v759, 127
    %v774 = vpop.permute.xlu0 %773
    %775 = vrot.lane.b32.xlu0 %v760, 127
    %v776 = vpop.permute.xlu0 %775
    %777 = vrot.lane.b32.xlu0 %v761, 127
    %v778 = vpop.permute.xlu0 %777
    %779 = vrot.lane.b32.xlu0 %v762, 127
    %v780 = vpop.permute.xlu0 %779
    %vm781 = vcmask 1039360
    %v782 = vsel %vm781, %v770, %v772
    %v783 = vsel %vm781, %v772, %v774
    %v784 = vsel %vm781, %v776, %v778
    %v785 = vsel %vm781, %v778, %v780
    %v790 = vadd.f32 %v721, %v782
    %v791 = vadd.f32 %v722, %v783
    %v792 = vadd.f32 %v723, %v784
    %v793 = vadd.f32 %v724, %v785
    %s794 = sld [smem:[#allocation7 + $0x2]]
    %v795 = vstv %s794
    %v796 = vmul.f32 %v582, %v795
    %v797 = vmul.f32 %v574, %v795
    %v798 = vmul.f32 %v584, %v795
    %v799 = vmul.f32 %v583, %v795
    %v800 = vmul.f32 %v575, %v795
    %v801 = vmul.f32 %v585, %v795
    %s802 = sld [smem:[#allocation7 + $0x82]]
    %v803 = vstv %s802
    %v804 = vmul.f32 %v606, %v803
    %v805 = vmul.f32 %v598, %v803
    %v806 = vmul.f32 %v608, %v803
    %v807 = vmul.f32 %v607, %v803
    %v808 = vmul.f32 %v599, %v803
    %v809 = vmul.f32 %v609, %v803
    %v810 = vadd.f32 %v796, %v804
    %v811 = vadd.f32 %v797, %v805
    %v812 = vadd.f32 %v798, %v806
    %v813 = vadd.f32 %v799, %v807
    %v814 = vadd.f32 %v800, %v808
    %v815 = vadd.f32 %v801, %v809
    %818 = vrot.lane.b32.xlu0 %v665, 2
    %v819 = vpop.permute.xlu0 %818
    %820 = vrot.lane.b32.xlu0 %v666, 2
    %v821 = vpop.permute.xlu0 %820
    %vm822 = vcmask 15360
    %v823 = vsel %vm822, %v819, %v821
    %v827 = vmul.f32 %v810, %v819
    %v828 = vmul.f32 %v811, %v823
    %v829 = vmul.f32 %v812, %v821
    %v830 = vmul.f32 %v813, %v819
    %v831 = vmul.f32 %v814, %v823
    %v832 = vmul.f32 %v815, %v821
    %839 = vrot.lane.b32.xlu0 %v827, 126
    %v840 = vpop.permute.xlu0 %839
    %841 = vrot.lane.b32.xlu0 %v828, 126
    %v842 = vpop.permute.xlu0 %841
    %843 = vrot.lane.b32.xlu0 %v829, 126
    %v844 = vpop.permute.xlu0 %843
    %845 = vrot.lane.b32.xlu0 %v830, 126
    %v846 = vpop.permute.xlu0 %845
    %847 = vrot.lane.b32.xlu0 %v831, 126
    %v848 = vpop.permute.xlu0 %847
    %849 = vrot.lane.b32.xlu0 %v832, 126
    %v850 = vpop.permute.xlu0 %849
    %vm851 = vcmask 1031168
    %v852 = vsel %vm851, %v840, %v842
    %v853 = vsel %vm851, %v842, %v844
    %v854 = vsel %vm851, %v846, %v848
    %v855 = vsel %vm851, %v848, %v850
    %v860 = vadd.f32 %v790, %v852
    %v861 = vadd.f32 %v791, %v853
    %v862 = vadd.f32 %v792, %v854
    %v863 = vadd.f32 %v793, %v855
    %s864 = sld [smem:[#allocation7 + $0x3]]
    %v865 = vstv %s864
    %v866 = vmul.f32 %v582, %v865
    %v867 = vmul.f32 %v574, %v865
    %v868 = vmul.f32 %v584, %v865
    %v869 = vmul.f32 %v583, %v865
    %v870 = vmul.f32 %v575, %v865
    %v871 = vmul.f32 %v585, %v865
    %s872 = sld [smem:[#allocation7 + $0x83]]
    %v873 = vstv %s872
    %v874 = vmul.f32 %v606, %v873
    %v875 = vmul.f32 %v598, %v873
    %v876 = vmul.f32 %v608, %v873
    %v877 = vmul.f32 %v607, %v873
    %v878 = vmul.f32 %v599, %v873
    %v879 = vmul.f32 %v609, %v873
    %v880 = vadd.f32 %v866, %v874
    %v881 = vadd.f32 %v867, %v875
    %v882 = vadd.f32 %v868, %v876
    %v883 = vadd.f32 %v869, %v877
    %v884 = vadd.f32 %v870, %v878
    %v885 = vadd.f32 %v871, %v879
    %888 = vrot.lane.b32.xlu0 %v673, 3
    %v889 = vpop.permute.xlu0 %888
    %890 = vrot.lane.b32.xlu0 %v674, 3
    %v891 = vpop.permute.xlu0 %890
    %vm892 = vcmask 23552
    %v893 = vsel %vm892, %v889, %v891
    %v897 = vmul.f32 %v880, %v889
    %v898 = vmul.f32 %v881, %v893
    %v899 = vmul.f32 %v882, %v891
    %v900 = vmul.f32 %v883, %v889
    %v901 = vmul.f32 %v884, %v893
    %v902 = vmul.f32 %v885, %v891
    %909 = vrot.lane.b32.xlu0 %v897, 125
    %v910 = vpop.permute.xlu0 %909
    %911 = vrot.lane.b32.xlu0 %v898, 125
    %v912 = vpop.permute.xlu0 %911
    %913 = vrot.lane.b32.xlu0 %v899, 125
    %v914 = vpop.permute.xlu0 %913
    %915 = vrot.lane.b32.xlu0 %v900, 125
    %v916 = vpop.permute.xlu0 %915
    %917 = vrot.lane.b32.xlu0 %v901, 125
    %v918 = vpop.permute.xlu0 %917
    %919 = vrot.lane.b32.xlu0 %v902, 125
    %v920 = vpop.permute.xlu0 %919
    %vm921 = vcmask 1022976
    %v922 = vsel %vm921, %v910, %v912
    %v923 = vsel %vm921, %v912, %v914
    %v924 = vsel %vm921, %v916, %v918
    %v925 = vsel %vm921, %v918, %v920
    %v930 = vadd.f32 %v860, %v922
    %v931 = vadd.f32 %v861, %v923
    %v932 = vadd.f32 %v862, %v924
    %v933 = vadd.f32 %v863, %v925
    %s934 = sld [smem:[#allocation7 + $0x4]]
    %v935 = vstv %s934
    %v936 = vmul.f32 %v582, %v935
    %v937 = vmul.f32 %v574, %v935
    %v938 = vmul.f32 %v584, %v935
    %v939 = vmul.f32 %v583, %v935
    %v940 = vmul.f32 %v575, %v935
    %v941 = vmul.f32 %v585, %v935
    %s942 = sld [smem:[#allocation7 + $0x84]]
    %v943 = vstv %s942
    %v944 = vmul.f32 %v606, %v943
    %v945 = vmul.f32 %v598, %v943
    %v946 = vmul.f32 %v608, %v943
    %v947 = vmul.f32 %v607, %v943
    %v948 = vmul.f32 %v599, %v943
    %v949 = vmul.f32 %v609, %v943
    %v950 = vadd.f32 %v936, %v944
    %v951 = vadd.f32 %v937, %v945
    %v952 = vadd.f32 %v938, %v946
    %v953 = vadd.f32 %v939, %v947
    %v954 = vadd.f32 %v940, %v948
    %v955 = vadd.f32 %v941, %v949
    %958 = vrot.lane.b32.xlu0 %v683, 4
    %v959 = vpop.permute.xlu0 %958
    %960 = vrot.lane.b32.xlu0 %v684, 4
    %v961 = vpop.permute.xlu0 %960
    %vm962 = vcmask 31744
    %v963 = vsel %vm962, %v959, %v961
    %v967 = vmul.f32 %v950, %v959
    %v968 = vmul.f32 %v951, %v963
    %v969 = vmul.f32 %v952, %v961
    %v970 = vmul.f32 %v953, %v959
    %v971 = vmul.f32 %v954, %v963
    %v972 = vmul.f32 %v955, %v961
    %979 = vrot.lane.b32.xlu0 %v967, 124
    %v980 = vpop.permute.xlu0 %979
    %981 = vrot.lane.b32.xlu0 %v968, 124
    %v982 = vpop.permute.xlu0 %981
    %983 = vrot.lane.b32.xlu0 %v969, 124
    %v984 = vpop.permute.xlu0 %983
    %985 = vrot.lane.b32.xlu0 %v970, 124
    %v986 = vpop.permute.xlu0 %985
    %987 = vrot.lane.b32.xlu0 %v971, 124
    %v988 = vpop.permute.xlu0 %987
    %989 = vrot.lane.b32.xlu0 %v972, 124
    %v990 = vpop.permute.xlu0 %989
    %vm991 = vcmask 1014784
    %v992 = vsel %vm991, %v980, %v982
    %v993 = vsel %vm991, %v982, %v984
    %v994 = vsel %vm991, %v986, %v988
    %v995 = vsel %vm991, %v988, %v990
    %v1000 = vadd.f32 %v930, %v992
    %v1001 = vadd.f32 %v931, %v993
    %v1002 = vadd.f32 %v932, %v994
    %v1003 = vadd.f32 %v933, %v995
    %s1004 = sld [smem:[#allocation7 + $0x5]]
    %v1005 = vstv %s1004
    %v1006 = vmul.f32 %v582, %v1005
    %v1007 = vmul.f32 %v574, %v1005
    %v1008 = vmul.f32 %v584, %v1005
    %v1009 = vmul.f32 %v583, %v1005
    %v1010 = vmul.f32 %v575, %v1005
    %v1011 = vmul.f32 %v585, %v1005
    %s1012 = sld [smem:[#allocation7 + $0x85]]
    %v1013 = vstv %s1012
    %v1014 = vmul.f32 %v606, %v1013
    %v1015 = vmul.f32 %v598, %v1013
    %v1016 = vmul.f32 %v608, %v1013
    %v1017 = vmul.f32 %v607, %v1013
    %v1018 = vmul.f32 %v599, %v1013
    %v1019 = vmul.f32 %v609, %v1013
    %v1020 = vadd.f32 %v1006, %v1014
    %v1021 = vadd.f32 %v1007, %v1015
    %v1022 = vadd.f32 %v1008, %v1016
    %v1023 = vadd.f32 %v1009, %v1017
    %v1024 = vadd.f32 %v1010, %v1018
    %v1025 = vadd.f32 %v1011, %v1019
    %1028 = vrot.lane.b32.xlu0 %v693, 5
    %v1029 = vpop.permute.xlu0 %1028
    %1030 = vrot.lane.b32.xlu0 %v694, 5
    %v1031 = vpop.permute.xlu0 %1030
    %vm1032 = vcmask 39936
    %v1033 = vsel %vm1032, %v1029, %v1031
    %v1037 = vmul.f32 %v1020, %v1029
    %v1038 = vmul.f32 %v1021, %v1033
    %v1039 = vmul.f32 %v1022, %v1031
    %v1040 = vmul.f32 %v1023, %v1029
    %v1041 = vmul.f32 %v1024, %v1033
    %v1042 = vmul.f32 %v1025, %v1031
    %1049 = vrot.lane.b32.xlu0 %v1037, 123
    %v1050 = vpop.permute.xlu0 %1049
    %1051 = vrot.lane.b32.xlu0 %v1038, 123
    %v1052 = vpop.permute.xlu0 %1051
    %1053 = vrot.lane.b32.xlu0 %v1039, 123
    %v1054 = vpop.permute.xlu0 %1053
    %1055 = vrot.lane.b32.xlu0 %v1040, 123
    %v1056 = vpop.permute.xlu0 %1055
    %1057 = vrot.lane.b32.xlu0 %v1041, 123
    %v1058 = vpop.permute.xlu0 %1057
    %1059 = vrot.lane.b32.xlu0 %v1042, 123
    %v1060 = vpop.permute.xlu0 %1059
    %vm1061 = vcmask 1006592
    %v1062 = vsel %vm1061, %v1050, %v1052
    %v1063 = vsel %vm1061, %v1052, %v1054
    %v1064 = vsel %vm1061, %v1056, %v1058
    %v1065 = vsel %vm1061, %v1058, %v1060
    %v1070 = vadd.f32 %v1000, %v1062
    %v1071 = vadd.f32 %v1001, %v1063
    %v1072 = vadd.f32 %v1002, %v1064
    %v1073 = vadd.f32 %v1003, %v1065
    %s1074 = sld [smem:[#allocation7 + $0x6]]
    %v1075 = vstv %s1074
    %v1076 = vmul.f32 %v582, %v1075
    %v1077 = vmul.f32 %v574, %v1075
    %v1078 = vmul.f32 %v584, %v1075
    %v1079 = vmul.f32 %v583, %v1075
    %v1080 = vmul.f32 %v575, %v1075
    %v1081 = vmul.f32 %v585, %v1075
    %s1082 = sld [smem:[#allocation7 + $0x86]]
    %v1083 = vstv %s1082
    %v1084 = vmul.f32 %v606, %v1083
    %v1085 = vmul.f32 %v598, %v1083
    %v1086 = vmul.f32 %v608, %v1083
    %v1087 = vmul.f32 %v607, %v1083
    %v1088 = vmul.f32 %v599, %v1083
    %v1089 = vmul.f32 %v609, %v1083
    %v1090 = vadd.f32 %v1076, %v1084
    %v1091 = vadd.f32 %v1077, %v1085
    %v1092 = vadd.f32 %v1078, %v1086
    %v1093 = vadd.f32 %v1079, %v1087
    %v1094 = vadd.f32 %v1080, %v1088
    %v1095 = vadd.f32 %v1081, %v1089
    %1098 = vrot.lane.b32.xlu0 %v703, 6
    %v1099 = vpop.permute.xlu0 %1098
    %1100 = vrot.lane.b32.xlu0 %v704, 6
    %v1101 = vpop.permute.xlu0 %1100
    %vm1102 = vcmask 48128
    %v1103 = vsel %vm1102, %v1099, %v1101
    %v1107 = vmul.f32 %v1090, %v1099
    %v1108 = vmul.f32 %v1091, %v1103
    %v1109 = vmul.f32 %v1092, %v1101
    %v1110 = vmul.f32 %v1093, %v1099
    %v1111 = vmul.f32 %v1094, %v1103
    %v1112 = vmul.f32 %v1095, %v1101
    %1119 = vrot.lane.b32.xlu0 %v1107, 122
    %v1120 = vpop.permute.xlu0 %1119
    %1121 = vrot.lane.b32.xlu0 %v1108, 122
    %v1122 = vpop.permute.xlu0 %1121
    %1123 = vrot.lane.b32.xlu0 %v1109, 122
    %v1124 = vpop.permute.xlu0 %1123
    %1125 = vrot.lane.b32.xlu0 %v1110, 122
    %v1126 = vpop.permute.xlu0 %1125
    %1127 = vrot.lane.b32.xlu0 %v1111, 122
    %v1128 = vpop.permute.xlu0 %1127
    %1129 = vrot.lane.b32.xlu0 %v1112, 122
    %v1130 = vpop.permute.xlu0 %1129
    %vm1131 = vcmask 998400
    %v1132 = vsel %vm1131, %v1120, %v1122
    %v1133 = vsel %vm1131, %v1122, %v1124
    %v1134 = vsel %vm1131, %v1126, %v1128
    %v1135 = vsel %vm1131, %v1128, %v1130
    %v1140 = vadd.f32 %v1070, %v1132
    %v1141 = vadd.f32 %v1071, %v1133
    %v1142 = vadd.f32 %v1072, %v1134
    %v1143 = vadd.f32 %v1073, %v1135
    %s1144 = sld [smem:[#allocation7 + $0x7]]
    %v1145 = vstv %s1144
    %v1146 = vmul.f32 %v582, %v1145
    %v1147 = vmul.f32 %v574, %v1145
    %v1148 = vmul.f32 %v584, %v1145
    %v1149 = vmul.f32 %v583, %v1145
    %v1150 = vmul.f32 %v575, %v1145
    %v1151 = vmul.f32 %v585, %v1145
    %s1152 = sld [smem:[#allocation7 + $0x87]]
    %v1153 = vstv %s1152
    %v1154 = vmul.f32 %v606, %v1153
    %v1155 = vmul.f32 %v598, %v1153
    %v1156 = vmul.f32 %v608, %v1153
    %v1157 = vmul.f32 %v607, %v1153
    %v1158 = vmul.f32 %v599, %v1153
    %v1159 = vmul.f32 %v609, %v1153
    %v1160 = vadd.f32 %v1146, %v1154
    %v1161 = vadd.f32 %v1147, %v1155
    %v1162 = vadd.f32 %v1148, %v1156
    %v1163 = vadd.f32 %v1149, %v1157
    %v1164 = vadd.f32 %v1150, %v1158
    %v1165 = vadd.f32 %v1151, %v1159
    %1168 = vrot.lane.b32.xlu0 %v645, 16
    %v1169 = vpop.permute.xlu0 %1168
    %1170 = vrot.lane.b32.xlu0 %v646, 16
    %v1171 = vpop.permute.xlu0 %1170
    %vm1172 = vcmask 130048
    %v1173 = vsel %vm1172, %v1169, %v1171
    %v1177 = vmul.f32 %v1160, %v1169
    %v1178 = vmul.f32 %v1161, %v1173
    %v1179 = vmul.f32 %v1162, %v1171
    %v1180 = vmul.f32 %v1163, %v1169
    %v1181 = vmul.f32 %v1164, %v1173
    %v1182 = vmul.f32 %v1165, %v1171
    %1189 = vrot.lane.b32.xlu0 %v1177, 112
    %v1190 = vpop.permute.xlu0 %1189
    %1191 = vrot.lane.b32.xlu0 %v1178, 112
    %v1192 = vpop.permute.xlu0 %1191
    %1193 = vrot.lane.b32.xlu0 %v1179, 112
    %v1194 = vpop.permute.xlu0 %1193
    %1195 = vrot.lane.b32.xlu0 %v1180, 112
    %v1196 = vpop.permute.xlu0 %1195
    %1197 = vrot.lane.b32.xlu0 %v1181, 112
    %v1198 = vpop.permute.xlu0 %1197
    %1199 = vrot.lane.b32.xlu0 %v1182, 112
    %v1200 = vpop.permute.xlu0 %1199
    %vm1201 = vcmask 916480
    %v1202 = vsel %vm1201, %v1190, %v1192
    %v1203 = vsel %vm1201, %v1192, %v1194
    %v1204 = vsel %vm1201, %v1196, %v1198
    %v1205 = vsel %vm1201, %v1198, %v1200
    %v1210 = vadd.f32 %v1140, %v1202
    %v1211 = vadd.f32 %v1141, %v1203
    %v1212 = vadd.f32 %v1142, %v1204
    %v1213 = vadd.f32 %v1143, %v1205
    %s1214 = sld [smem:[#allocation7 + $0x8]]
    %v1215 = vstv %s1214
    %v1216 = vmul.f32 %v582, %v1215
    %v1217 = vmul.f32 %v574, %v1215
    %v1218 = vmul.f32 %v584, %v1215
    %v1219 = vmul.f32 %v583, %v1215
    %v1220 = vmul.f32 %v575, %v1215
    %v1221 = vmul.f32 %v585, %v1215
    %s1222 = sld [smem:[#allocation7 + $0x88]]
    %v1223 = vstv %s1222
    %v1224 = vmul.f32 %v606, %v1223
    %v1225 = vmul.f32 %v598, %v1223
    %v1226 = vmul.f32 %v608, %v1223
    %v1227 = vmul.f32 %v607, %v1223
    %v1228 = vmul.f32 %v599, %v1223
    %v1229 = vmul.f32 %v609, %v1223
    %v1230 = vadd.f32 %v1216, %v1224
    %v1231 = vadd.f32 %v1217, %v1225
    %v1232 = vadd.f32 %v1218, %v1226
    %v1233 = vadd.f32 %v1219, %v1227
    %v1234 = vadd.f32 %v1220, %v1228
    %v1235 = vadd.f32 %v1221, %v1229
    %1236 = vrot.lane.b32.xlu0 %v655, 17
    %v1237 = vpop.permute.xlu0 %1236
    %1238 = vrot.lane.b32.xlu0 %v656, 17
    %v1239 = vpop.permute.xlu0 %1238
    %vm1240 = vcmask 138240
    %v1241 = vsel %vm1240, %v1237, %v1239
    %v1245 = vmul.f32 %v1230, %v1237
    %v1246 = vmul.f32 %v1231, %v1241
    %v1247 = vmul.f32 %v1232, %v1239
    %v1248 = vmul.f32 %v1233, %v1237
    %v1249 = vmul.f32 %v1234, %v1241
    %v1250 = vmul.f32 %v1235, %v1239
    %1257 = vrot.lane.b32.xlu0 %v1245, 111
    %v1258 = vpop.permute.xlu0 %1257
    %1259 = vrot.lane.b32.xlu0 %v1246, 111
    %v1260 = vpop.permute.xlu0 %1259
    %1261 = vrot.lane.b32.xlu0 %v1247, 111
    %v1262 = vpop.permute.xlu0 %1261
    %1263 = vrot.lane.b32.xlu0 %v1248, 111
    %v1264 = vpop.permute.xlu0 %1263
    %1265 = vrot.lane.b32.xlu0 %v1249, 111
    %v1266 = vpop.permute.xlu0 %1265
    %1267 = vrot.lane.b32.xlu0 %v1250, 111
    %v1268 = vpop.permute.xlu0 %1267
    %vm1269 = vcmask 908288
    %v1270 = vsel %vm1269, %v1258, %v1260
    %v1271 = vsel %vm1269, %v1260, %v1262
    %v1272 = vsel %vm1269, %v1264, %v1266
    %v1273 = vsel %vm1269, %v1266, %v1268
    %v1278 = vadd.f32 %v1210, %v1270
    %v1279 = vadd.f32 %v1211, %v1271
    %v1280 = vadd.f32 %v1212, %v1272
    %v1281 = vadd.f32 %v1213, %v1273
    %s1282 = sld [smem:[#allocation7 + $0x9]]
    %v1283 = vstv %s1282
    %v1284 = vmul.f32 %v582, %v1283
    %v1285 = vmul.f32 %v574, %v1283
    %v1286 = vmul.f32 %v584, %v1283
    %v1287 = vmul.f32 %v583, %v1283
    %v1288 = vmul.f32 %v575, %v1283
    %v1289 = vmul.f32 %v585, %v1283
    %s1290 = sld [smem:[#allocation7 + $0x89]]
    %v1291 = vstv %s1290
    %v1292 = vmul.f32 %v606, %v1291
    %v1293 = vmul.f32 %v598, %v1291
    %v1294 = vmul.f32 %v608, %v1291
    %v1295 = vmul.f32 %v607, %v1291
    %v1296 = vmul.f32 %v599, %v1291
    %v1297 = vmul.f32 %v609, %v1291
    %v1298 = vadd.f32 %v1284, %v1292
    %v1299 = vadd.f32 %v1285, %v1293
    %v1300 = vadd.f32 %v1286, %v1294
    %v1301 = vadd.f32 %v1287, %v1295
    %v1302 = vadd.f32 %v1288, %v1296
    %v1303 = vadd.f32 %v1289, %v1297
    %1304 = vrot.lane.b32.xlu0 %v665, 18
    %v1305 = vpop.permute.xlu0 %1304
    %1306 = vrot.lane.b32.xlu0 %v666, 18
    %v1307 = vpop.permute.xlu0 %1306
    %vm1308 = vcmask 146432
    %v1309 = vsel %vm1308, %v1305, %v1307
    %v1313 = vmul.f32 %v1298, %v1305
    %v1314 = vmul.f32 %v1299, %v1309
    %v1315 = vmul.f32 %v1300, %v1307
    %v1316 = vmul.f32 %v1301, %v1305
    %v1317 = vmul.f32 %v1302, %v1309
    %v1318 = vmul.f32 %v1303, %v1307
    %1325 = vrot.lane.b32.xlu0 %v1313, 110
    %v1326 = vpop.permute.xlu0 %1325
    %1327 = vrot.lane.b32.xlu0 %v1314, 110
    %v1328 = vpop.permute.xlu0 %1327
    %1329 = vrot.lane.b32.xlu0 %v1315, 110
    %v1330 = vpop.permute.xlu0 %1329
    %1331 = vrot.lane.b32.xlu0 %v1316, 110
    %v1332 = vpop.permute.xlu0 %1331
    %1333 = vrot.lane.b32.xlu0 %v1317, 110
    %v1334 = vpop.permute.xlu0 %1333
    %1335 = vrot.lane.b32.xlu0 %v1318, 110
    %v1336 = vpop.permute.xlu0 %1335
    %vm1337 = vcmask 900096
    %v1338 = vsel %vm1337, %v1326, %v1328
    %v1339 = vsel %vm1337, %v1328, %v1330
    %v1340 = vsel %vm1337, %v1332, %v1334
    %v1341 = vsel %vm1337, %v1334, %v1336
    %v1346 = vadd.f32 %v1278, %v1338
    %v1347 = vadd.f32 %v1279, %v1339
    %v1348 = vadd.f32 %v1280, %v1340
    %v1349 = vadd.f32 %v1281, %v1341
    %s1350 = sld [smem:[#allocation7 + $0xa]]
    %v1351 = vstv %s1350
    %v1352 = vmul.f32 %v582, %v1351
    %v1353 = vmul.f32 %v574, %v1351
    %v1354 = vmul.f32 %v584, %v1351
    %v1355 = vmul.f32 %v583, %v1351
    %v1356 = vmul.f32 %v575, %v1351
    %v1357 = vmul.f32 %v585, %v1351
    %s1358 = sld [smem:[#allocation7 + $0x8a]]
    %v1359 = vstv %s1358
    %v1360 = vmul.f32 %v606, %v1359
    %v1361 = vmul.f32 %v598, %v1359
    %v1362 = vmul.f32 %v608, %v1359
    %v1363 = vmul.f32 %v607, %v1359
    %v1364 = vmul.f32 %v599, %v1359
    %v1365 = vmul.f32 %v609, %v1359
    %v1366 = vadd.f32 %v1352, %v1360
    %v1367 = vadd.f32 %v1353, %v1361
    %v1368 = vadd.f32 %v1354, %v1362
    %v1369 = vadd.f32 %v1355, %v1363
    %v1370 = vadd.f32 %v1356, %v1364
    %v1371 = vadd.f32 %v1357, %v1365
    %1372 = vrot.lane.b32.xlu0 %v673, 19
    %v1373 = vpop.permute.xlu0 %1372
    %1374 = vrot.lane.b32.xlu0 %v674, 19
    %v1375 = vpop.permute.xlu0 %1374
    %vm1376 = vcmask 154624
    %v1377 = vsel %vm1376, %v1373, %v1375
    %v1381 = vmul.f32 %v1366, %v1373
    %v1382 = vmul.f32 %v1367, %v1377
    %v1383 = vmul.f32 %v1368, %v1375
    %v1384 = vmul.f32 %v1369, %v1373
    %v1385 = vmul.f32 %v1370, %v1377
    %v1386 = vmul.f32 %v1371, %v1375
    %1393 = vrot.lane.b32.xlu0 %v1381, 109
    %v1394 = vpop.permute.xlu0 %1393
    %1395 = vrot.lane.b32.xlu0 %v1382, 109
    %v1396 = vpop.permute.xlu0 %1395
    %1397 = vrot.lane.b32.xlu0 %v1383, 109
    %v1398 = vpop.permute.xlu0 %1397
    %1399 = vrot.lane.b32.xlu0 %v1384, 109
    %v1400 = vpop.permute.xlu0 %1399
    %1401 = vrot.lane.b32.xlu0 %v1385, 109
    %v1402 = vpop.permute.xlu0 %1401
    %1403 = vrot.lane.b32.xlu0 %v1386, 109
    %v1404 = vpop.permute.xlu0 %1403
    %vm1405 = vcmask 891904
    %v1406 = vsel %vm1405, %v1394, %v1396
    %v1407 = vsel %vm1405, %v1396, %v1398
    %v1408 = vsel %vm1405, %v1400, %v1402
    %v1409 = vsel %vm1405, %v1402, %v1404
    %v1414 = vadd.f32 %v1346, %v1406
    %v1415 = vadd.f32 %v1347, %v1407
    %v1416 = vadd.f32 %v1348, %v1408
    %v1417 = vadd.f32 %v1349, %v1409
    %s1418 = sld [smem:[#allocation7 + $0xb]]
    %v1419 = vstv %s1418
    %v1420 = vmul.f32 %v582, %v1419
    %v1421 = vmul.f32 %v574, %v1419
    %v1422 = vmul.f32 %v584, %v1419
    %v1423 = vmul.f32 %v583, %v1419
    %v1424 = vmul.f32 %v575, %v1419
    %v1425 = vmul.f32 %v585, %v1419
    %s1426 = sld [smem:[#allocation7 + $0x8b]]
    %v1427 = vstv %s1426
    %v1428 = vmul.f32 %v606, %v1427
    %v1429 = vmul.f32 %v598, %v1427
    %v1430 = vmul.f32 %v608, %v1427
    %v1431 = vmul.f32 %v607, %v1427
    %v1432 = vmul.f32 %v599, %v1427
    %v1433 = vmul.f32 %v609, %v1427
    %v1434 = vadd.f32 %v1420, %v1428
    %v1435 = vadd.f32 %v1421, %v1429
    %v1436 = vadd.f32 %v1422, %v1430
    %v1437 = vadd.f32 %v1423, %v1431
    %v1438 = vadd.f32 %v1424, %v1432
    %v1439 = vadd.f32 %v1425, %v1433
    %1440 = vrot.lane.b32.xlu0 %v683, 20
    %v1441 = vpop.permute.xlu0 %1440
    %1442 = vrot.lane.b32.xlu0 %v684, 20
    %v1443 = vpop.permute.xlu0 %1442
    %vm1444 = vcmask 162816
    %v1445 = vsel %vm1444, %v1441, %v1443
    %v1449 = vmul.f32 %v1434, %v1441
    %v1450 = vmul.f32 %v1435, %v1445
    %v1451 = vmul.f32 %v1436, %v1443
    %v1452 = vmul.f32 %v1437, %v1441
    %v1453 = vmul.f32 %v1438, %v1445
    %v1454 = vmul.f32 %v1439, %v1443
    %1461 = vrot.lane.b32.xlu0 %v1449, 108
    %v1462 = vpop.permute.xlu0 %1461
    %1463 = vrot.lane.b32.xlu0 %v1450, 108
    %v1464 = vpop.permute.xlu0 %1463
    %1465 = vrot.lane.b32.xlu0 %v1451, 108
    %v1466 = vpop.permute.xlu0 %1465
    %1467 = vrot.lane.b32.xlu0 %v1452, 108
    %v1468 = vpop.permute.xlu0 %1467
    %1469 = vrot.lane.b32.xlu0 %v1453, 108
    %v1470 = vpop.permute.xlu0 %1469
    %1471 = vrot.lane.b32.xlu0 %v1454, 108
    %v1472 = vpop.permute.xlu0 %1471
    %vm1473 = vcmask 883712
    %v1474 = vsel %vm1473, %v1462, %v1464
    %v1475 = vsel %vm1473, %v1464, %v1466
    %v1476 = vsel %vm1473, %v1468, %v1470
    %v1477 = vsel %vm1473, %v1470, %v1472
    %v1482 = vadd.f32 %v1414, %v1474
    %v1483 = vadd.f32 %v1415, %v1475
    %v1484 = vadd.f32 %v1416, %v1476
    %v1485 = vadd.f32 %v1417, %v1477
    %s1486 = sld [smem:[#allocation7 + $0xc]]
    %v1487 = vstv %s1486
    %v1488 = vmul.f32 %v582, %v1487
    %v1489 = vmul.f32 %v574, %v1487
    %v1490 = vmul.f32 %v584, %v1487
    %v1491 = vmul.f32 %v583, %v1487
    %v1492 = vmul.f32 %v575, %v1487
    %v1493 = vmul.f32 %v585, %v1487
    %s1494 = sld [smem:[#allocation7 + $0x8c]]
    %v1495 = vstv %s1494
    %v1496 = vmul.f32 %v606, %v1495
    %v1497 = vmul.f32 %v598, %v1495
    %v1498 = vmul.f32 %v608, %v1495
    %v1499 = vmul.f32 %v607, %v1495
    %v1500 = vmul.f32 %v599, %v1495
    %v1501 = vmul.f32 %v609, %v1495
    %v1502 = vadd.f32 %v1488, %v1496
    %v1503 = vadd.f32 %v1489, %v1497
    %v1504 = vadd.f32 %v1490, %v1498
    %v1505 = vadd.f32 %v1491, %v1499
    %v1506 = vadd.f32 %v1492, %v1500
    %v1507 = vadd.f32 %v1493, %v1501
    %1508 = vrot.lane.b32.xlu0 %v693, 21
    %v1509 = vpop.permute.xlu0 %1508
    %1510 = vrot.lane.b32.xlu0 %v694, 21
    %v1511 = vpop.permute.xlu0 %1510
    %vm1512 = vcmask 171008
    %v1513 = vsel %vm1512, %v1509, %v1511
    %v1517 = vmul.f32 %v1502, %v1509
    %v1518 = vmul.f32 %v1503, %v1513
    %v1519 = vmul.f32 %v1504, %v1511
    %v1520 = vmul.f32 %v1505, %v1509
    %v1521 = vmul.f32 %v1506, %v1513
    %v1522 = vmul.f32 %v1507, %v1511
    %1529 = vrot.lane.b32.xlu0 %v1517, 107
    %v1530 = vpop.permute.xlu0 %1529
    %1531 = vrot.lane.b32.xlu0 %v1518, 107
    %v1532 = vpop.permute.xlu0 %1531
    %1533 = vrot.lane.b32.xlu0 %v1519, 107
    %v1534 = vpop.permute.xlu0 %1533
    %1535 = vrot.lane.b32.xlu0 %v1520, 107
    %v1536 = vpop.permute.xlu0 %1535
    %1537 = vrot.lane.b32.xlu0 %v1521, 107
    %v1538 = vpop.permute.xlu0 %1537
    %1539 = vrot.lane.b32.xlu0 %v1522, 107
    %v1540 = vpop.permute.xlu0 %1539
    %vm1541 = vcmask 875520
    %v1542 = vsel %vm1541, %v1530, %v1532
    %v1543 = vsel %vm1541, %v1532, %v1534
    %v1544 = vsel %vm1541, %v1536, %v1538
    %v1545 = vsel %vm1541, %v1538, %v1540
    %v1550 = vadd.f32 %v1482, %v1542
    %v1551 = vadd.f32 %v1483, %v1543
    %v1552 = vadd.f32 %v1484, %v1544
    %v1553 = vadd.f32 %v1485, %v1545
    %s1554 = sld [smem:[#allocation7 + $0xd]]
    %v1555 = vstv %s1554
    %v1556 = vmul.f32 %v582, %v1555
    %v1557 = vmul.f32 %v574, %v1555
    %v1558 = vmul.f32 %v584, %v1555
    %v1559 = vmul.f32 %v583, %v1555
    %v1560 = vmul.f32 %v575, %v1555
    %v1561 = vmul.f32 %v585, %v1555
    %s1562 = sld [smem:[#allocation7 + $0x8d]]
    %v1563 = vstv %s1562
    %v1564 = vmul.f32 %v606, %v1563
    %v1565 = vmul.f32 %v598, %v1563
    %v1566 = vmul.f32 %v608, %v1563
    %v1567 = vmul.f32 %v607, %v1563
    %v1568 = vmul.f32 %v599, %v1563
    %v1569 = vmul.f32 %v609, %v1563
    %v1570 = vadd.f32 %v1556, %v1564
    %v1571 = vadd.f32 %v1557, %v1565
    %v1572 = vadd.f32 %v1558, %v1566
    %v1573 = vadd.f32 %v1559, %v1567
    %v1574 = vadd.f32 %v1560, %v1568
    %v1575 = vadd.f32 %v1561, %v1569
    %1576 = vrot.lane.b32.xlu0 %v703, 22
    %v1577 = vpop.permute.xlu0 %1576
    %1578 = vrot.lane.b32.xlu0 %v704, 22
    %v1579 = vpop.permute.xlu0 %1578
    %vm1580 = vcmask 179200
    %v1581 = vsel %vm1580, %v1577, %v1579
    %v1585 = vmul.f32 %v1570, %v1577
    %v1586 = vmul.f32 %v1571, %v1581
    %v1587 = vmul.f32 %v1572, %v1579
    %v1588 = vmul.f32 %v1573, %v1577
    %v1589 = vmul.f32 %v1574, %v1581
    %v1590 = vmul.f32 %v1575, %v1579
    %1597 = vrot.lane.b32.xlu0 %v1585, 106
    %v1598 = vpop.permute.xlu0 %1597
    %1599 = vrot.lane.b32.xlu0 %v1586, 106
    %v1600 = vpop.permute.xlu0 %1599
    %1601 = vrot.lane.b32.xlu0 %v1587, 106
    %v1602 = vpop.permute.xlu0 %1601
    %1603 = vrot.lane.b32.xlu0 %v1588, 106
    %v1604 = vpop.permute.xlu0 %1603
    %1605 = vrot.lane.b32.xlu0 %v1589, 106
    %v1606 = vpop.permute.xlu0 %1605
    %1607 = vrot.lane.b32.xlu0 %v1590, 106
    %v1608 = vpop.permute.xlu0 %1607
    %vm1609 = vcmask 867328
    %v1610 = vsel %vm1609, %v1598, %v1600
    %v1611 = vsel %vm1609, %v1600, %v1602
    %v1612 = vsel %vm1609, %v1604, %v1606
    %v1613 = vsel %vm1609, %v1606, %v1608
    %v1618 = vadd.f32 %v1550, %v1610
    %v1619 = vadd.f32 %v1551, %v1611
    %v1620 = vadd.f32 %v1552, %v1612
    %v1621 = vadd.f32 %v1553, %v1613
    %s1622 = sld [smem:[#allocation7 + $0xe]]
    %v1623 = vstv %s1622
    %v1624 = vmul.f32 %v582, %v1623
    %v1625 = vmul.f32 %v574, %v1623
    %v1626 = vmul.f32 %v584, %v1623
    %v1627 = vmul.f32 %v583, %v1623
    %v1628 = vmul.f32 %v575, %v1623
    %v1629 = vmul.f32 %v585, %v1623
    %s1630 = sld [smem:[#allocation7 + $0x8e]]
    %v1631 = vstv %s1630
    %v1632 = vmul.f32 %v606, %v1631
    %v1633 = vmul.f32 %v598, %v1631
    %v1634 = vmul.f32 %v608, %v1631
    %v1635 = vmul.f32 %v607, %v1631
    %v1636 = vmul.f32 %v599, %v1631
    %v1637 = vmul.f32 %v609, %v1631
    %v1638 = vadd.f32 %v1624, %v1632
    %v1639 = vadd.f32 %v1625, %v1633
    %v1640 = vadd.f32 %v1626, %v1634
    %v1641 = vadd.f32 %v1627, %v1635
    %v1642 = vadd.f32 %v1628, %v1636
    %v1643 = vadd.f32 %v1629, %v1637
    %1644 = vrot.lane.b32.xlu0 %v645, 32
    %v1645 = vpop.permute.xlu0 %1644
    %1646 = vrot.lane.b32.xlu0 %v646, 32
    %v1647 = vpop.permute.xlu0 %1646
    %vm1648 = vcmask 261120
    %v1649 = vsel %vm1648, %v1645, %v1647
    %v1653 = vmul.f32 %v1638, %v1645
    %v1654 = vmul.f32 %v1639, %v1649
    %v1655 = vmul.f32 %v1640, %v1647
    %v1656 = vmul.f32 %v1641, %v1645
    %v1657 = vmul.f32 %v1642, %v1649
    %v1658 = vmul.f32 %v1643, %v1647
    %1665 = vrot.lane.b32.xlu0 %v1653, 96
    %v1666 = vpop.permute.xlu0 %1665
    %1667 = vrot.lane.b32.xlu0 %v1654, 96
    %v1668 = vpop.permute.xlu0 %1667
    %1669 = vrot.lane.b32.xlu0 %v1655, 96
    %v1670 = vpop.permute.xlu0 %1669
    %1671 = vrot.lane.b32.xlu0 %v1656, 96
    %v1672 = vpop.permute.xlu0 %1671
    %1673 = vrot.lane.b32.xlu0 %v1657, 96
    %v1674 = vpop.permute.xlu0 %1673
    %1675 = vrot.lane.b32.xlu0 %v1658, 96
    %v1676 = vpop.permute.xlu0 %1675
    %vm1677 = vcmask 785408
    %v1678 = vsel %vm1677, %v1666, %v1668
    %v1679 = vsel %vm1677, %v1668, %v1670
    %v1680 = vsel %vm1677, %v1672, %v1674
    %v1681 = vsel %vm1677, %v1674, %v1676
    %v1686 = vadd.f32 %v1618, %v1678
    %v1687 = vadd.f32 %v1619, %v1679
    %v1688 = vadd.f32 %v1620, %v1680
    %v1689 = vadd.f32 %v1621, %v1681
    %s1690 = sld [smem:[#allocation7 + $0xf]]
    %v1691 = vstv %s1690
    %v1692 = vmul.f32 %v582, %v1691
    %v1693 = vmul.f32 %v574, %v1691
    %v1694 = vmul.f32 %v584, %v1691
    %v1695 = vmul.f32 %v583, %v1691
    %v1696 = vmul.f32 %v575, %v1691
    %v1697 = vmul.f32 %v585, %v1691
    %s1698 = sld [smem:[#allocation7 + $0x8f]]
    %v1699 = vstv %s1698
    %v1700 = vmul.f32 %v606, %v1699
    %v1701 = vmul.f32 %v598, %v1699
    %v1702 = vmul.f32 %v608, %v1699
    %v1703 = vmul.f32 %v607, %v1699
    %v1704 = vmul.f32 %v599, %v1699
    %v1705 = vmul.f32 %v609, %v1699
    %v1706 = vadd.f32 %v1692, %v1700
    %v1707 = vadd.f32 %v1693, %v1701
    %v1708 = vadd.f32 %v1694, %v1702
    %v1709 = vadd.f32 %v1695, %v1703
    %v1710 = vadd.f32 %v1696, %v1704
    %v1711 = vadd.f32 %v1697, %v1705
    %1712 = vrot.lane.b32.xlu0 %v655, 33
    %v1713 = vpop.permute.xlu0 %1712
    %1714 = vrot.lane.b32.xlu0 %v656, 33
    %v1715 = vpop.permute.xlu0 %1714
    %vm1716 = vcmask 269312
    %v1717 = vsel %vm1716, %v1713, %v1715
    %v1721 = vmul.f32 %v1706, %v1713
    %v1722 = vmul.f32 %v1707, %v1717
    %v1723 = vmul.f32 %v1708, %v1715
    %v1724 = vmul.f32 %v1709, %v1713
    %v1725 = vmul.f32 %v1710, %v1717
    %v1726 = vmul.f32 %v1711, %v1715
    %1733 = vrot.lane.b32.xlu0 %v1721, 95
    %v1734 = vpop.permute.xlu0 %1733
    %1735 = vrot.lane.b32.xlu0 %v1722, 95
    %v1736 = vpop.permute.xlu0 %1735
    %1737 = vrot.lane.b32.xlu0 %v1723, 95
    %v1738 = vpop.permute.xlu0 %1737
    %1739 = vrot.lane.b32.xlu0 %v1724, 95
    %v1740 = vpop.permute.xlu0 %1739
    %1741 = vrot.lane.b32.xlu0 %v1725, 95
    %v1742 = vpop.permute.xlu0 %1741
    %1743 = vrot.lane.b32.xlu0 %v1726, 95
    %v1744 = vpop.permute.xlu0 %1743
    %vm1745 = vcmask 777216
    %v1746 = vsel %vm1745, %v1734, %v1736
    %v1747 = vsel %vm1745, %v1736, %v1738
    %v1748 = vsel %vm1745, %v1740, %v1742
    %v1749 = vsel %vm1745, %v1742, %v1744
    %v1754 = vadd.f32 %v1686, %v1746
    %v1755 = vadd.f32 %v1687, %v1747
    %v1756 = vadd.f32 %v1688, %v1748
    %v1757 = vadd.f32 %v1689, %v1749
    %s1758 = sld [smem:[#allocation7 + $0x10]]
    %v1759 = vstv %s1758
    %v1760 = vmul.f32 %v582, %v1759
    %v1761 = vmul.f32 %v574, %v1759
    %v1762 = vmul.f32 %v584, %v1759
    %v1763 = vmul.f32 %v583, %v1759
    %v1764 = vmul.f32 %v575, %v1759
    %v1765 = vmul.f32 %v585, %v1759
    %s1766 = sld [smem:[#allocation7 + $0x90]]
    %v1767 = vstv %s1766
    %v1768 = vmul.f32 %v606, %v1767
    %v1769 = vmul.f32 %v598, %v1767
    %v1770 = vmul.f32 %v608, %v1767
    %v1771 = vmul.f32 %v607, %v1767
    %v1772 = vmul.f32 %v599, %v1767
    %v1773 = vmul.f32 %v609, %v1767
    %v1774 = vadd.f32 %v1760, %v1768
    %v1775 = vadd.f32 %v1761, %v1769
    %v1776 = vadd.f32 %v1762, %v1770
    %v1777 = vadd.f32 %v1763, %v1771
    %v1778 = vadd.f32 %v1764, %v1772
    %v1779 = vadd.f32 %v1765, %v1773
    %1780 = vrot.lane.b32.xlu0 %v665, 34
    %v1781 = vpop.permute.xlu0 %1780
    %1782 = vrot.lane.b32.xlu0 %v666, 34
    %v1783 = vpop.permute.xlu0 %1782
    %vm1784 = vcmask 277504
    %v1785 = vsel %vm1784, %v1781, %v1783
    %v1789 = vmul.f32 %v1774, %v1781
    %v1790 = vmul.f32 %v1775, %v1785
    %v1791 = vmul.f32 %v1776, %v1783
    %v1792 = vmul.f32 %v1777, %v1781
    %v1793 = vmul.f32 %v1778, %v1785
    %v1794 = vmul.f32 %v1779, %v1783
    %1801 = vrot.lane.b32.xlu0 %v1789, 94
    %v1802 = vpop.permute.xlu0 %1801
    %1803 = vrot.lane.b32.xlu0 %v1790, 94
    %v1804 = vpop.permute.xlu0 %1803
    %1805 = vrot.lane.b32.xlu0 %v1791, 94
    %v1806 = vpop.permute.xlu0 %1805
    %1807 = vrot.lane.b32.xlu0 %v1792, 94
    %v1808 = vpop.permute.xlu0 %1807
    %1809 = vrot.lane.b32.xlu0 %v1793, 94
    %v1810 = vpop.permute.xlu0 %1809
    %1811 = vrot.lane.b32.xlu0 %v1794, 94
    %v1812 = vpop.permute.xlu0 %1811
    %vm1813 = vcmask 769024
    %v1814 = vsel %vm1813, %v1802, %v1804
    %v1815 = vsel %vm1813, %v1804, %v1806
    %v1816 = vsel %vm1813, %v1808, %v1810
    %v1817 = vsel %vm1813, %v1810, %v1812
    %v1822 = vadd.f32 %v1754, %v1814
    %v1823 = vadd.f32 %v1755, %v1815
    %v1824 = vadd.f32 %v1756, %v1816
    %v1825 = vadd.f32 %v1757, %v1817
    %s1826 = sld [smem:[#allocation7 + $0x11]]
    %v1827 = vstv %s1826
    %v1828 = vmul.f32 %v582, %v1827
    %v1829 = vmul.f32 %v574, %v1827
    %v1830 = vmul.f32 %v584, %v1827
    %v1831 = vmul.f32 %v583, %v1827
    %v1832 = vmul.f32 %v575, %v1827
    %v1833 = vmul.f32 %v585, %v1827
    %s1834 = sld [smem:[#allocation7 + $0x91]]
    %v1835 = vstv %s1834
    %v1836 = vmul.f32 %v606, %v1835
    %v1837 = vmul.f32 %v598, %v1835
    %v1838 = vmul.f32 %v608, %v1835
    %v1839 = vmul.f32 %v607, %v1835
    %v1840 = vmul.f32 %v599, %v1835
    %v1841 = vmul.f32 %v609, %v1835
    %v1842 = vadd.f32 %v1828, %v1836
    %v1843 = vadd.f32 %v1829, %v1837
    %v1844 = vadd.f32 %v1830, %v1838
    %v1845 = vadd.f32 %v1831, %v1839
    %v1846 = vadd.f32 %v1832, %v1840
    %v1847 = vadd.f32 %v1833, %v1841
    %1848 = vrot.lane.b32.xlu0 %v673, 35
    %v1849 = vpop.permute.xlu0 %1848
    %1850 = vrot.lane.b32.xlu0 %v674, 35
    %v1851 = vpop.permute.xlu0 %1850
    %vm1852 = vcmask 285696
    %v1853 = vsel %vm1852, %v1849, %v1851
    %v1857 = vmul.f32 %v1842, %v1849
    %v1858 = vmul.f32 %v1843, %v1853
    %v1859 = vmul.f32 %v1844, %v1851
    %v1860 = vmul.f32 %v1845, %v1849
    %v1861 = vmul.f32 %v1846, %v1853
    %v1862 = vmul.f32 %v1847, %v1851
    %1869 = vrot.lane.b32.xlu0 %v1857, 93
    %v1870 = vpop.permute.xlu0 %1869
    %1871 = vrot.lane.b32.xlu0 %v1858, 93
    %v1872 = vpop.permute.xlu0 %1871
    %1873 = vrot.lane.b32.xlu0 %v1859, 93
    %v1874 = vpop.permute.xlu0 %1873
    %1875 = vrot.lane.b32.xlu0 %v1860, 93
    %v1876 = vpop.permute.xlu0 %1875
    %1877 = vrot.lane.b32.xlu0 %v1861, 93
    %v1878 = vpop.permute.xlu0 %1877
    %1879 = vrot.lane.b32.xlu0 %v1862, 93
    %v1880 = vpop.permute.xlu0 %1879
    %vm1881 = vcmask 760832
    %v1882 = vsel %vm1881, %v1870, %v1872
    %v1883 = vsel %vm1881, %v1872, %v1874
    %v1884 = vsel %vm1881, %v1876, %v1878
    %v1885 = vsel %vm1881, %v1878, %v1880
    %v1890 = vadd.f32 %v1822, %v1882
    %v1891 = vadd.f32 %v1823, %v1883
    %v1892 = vadd.f32 %v1824, %v1884
    %v1893 = vadd.f32 %v1825, %v1885
    %s1894 = sld [smem:[#allocation7 + $0x12]]
    %v1895 = vstv %s1894
    %v1896 = vmul.f32 %v582, %v1895
    %v1897 = vmul.f32 %v574, %v1895
    %v1898 = vmul.f32 %v584, %v1895
    %v1899 = vmul.f32 %v583, %v1895
    %v1900 = vmul.f32 %v575, %v1895
    %v1901 = vmul.f32 %v585, %v1895
    %s1902 = sld [smem:[#allocation7 + $0x92]]
    %v1903 = vstv %s1902
    %v1904 = vmul.f32 %v606, %v1903
    %v1905 = vmul.f32 %v598, %v1903
    %v1906 = vmul.f32 %v608, %v1903
    %v1907 = vmul.f32 %v607, %v1903
    %v1908 = vmul.f32 %v599, %v1903
    %v1909 = vmul.f32 %v609, %v1903
    %v1910 = vadd.f32 %v1896, %v1904
    %v1911 = vadd.f32 %v1897, %v1905
    %v1912 = vadd.f32 %v1898, %v1906
    %v1913 = vadd.f32 %v1899, %v1907
    %v1914 = vadd.f32 %v1900, %v1908
    %v1915 = vadd.f32 %v1901, %v1909
    %1916 = vrot.lane.b32.xlu0 %v683, 36
    %v1917 = vpop.permute.xlu0 %1916
    %1918 = vrot.lane.b32.xlu0 %v684, 36
    %v1919 = vpop.permute.xlu0 %1918
    %vm1920 = vcmask 293888
    %v1921 = vsel %vm1920, %v1917, %v1919
    %v1925 = vmul.f32 %v1910, %v1917
    %v1926 = vmul.f32 %v1911, %v1921
    %v1927 = vmul.f32 %v1912, %v1919
    %v1928 = vmul.f32 %v1913, %v1917
    %v1929 = vmul.f32 %v1914, %v1921
    %v1930 = vmul.f32 %v1915, %v1919
    %1937 = vrot.lane.b32.xlu0 %v1925, 92
    %v1938 = vpop.permute.xlu0 %1937
    %1939 = vrot.lane.b32.xlu0 %v1926, 92
    %v1940 = vpop.permute.xlu0 %1939
    %1941 = vrot.lane.b32.xlu0 %v1927, 92
    %v1942 = vpop.permute.xlu0 %1941
    %1943 = vrot.lane.b32.xlu0 %v1928, 92
    %v1944 = vpop.permute.xlu0 %1943
    %1945 = vrot.lane.b32.xlu0 %v1929, 92
    %v1946 = vpop.permute.xlu0 %1945
    %1947 = vrot.lane.b32.xlu0 %v1930, 92
    %v1948 = vpop.permute.xlu0 %1947
    %vm1949 = vcmask 752640
    %v1950 = vsel %vm1949, %v1938, %v1940
    %v1951 = vsel %vm1949, %v1940, %v1942
    %v1952 = vsel %vm1949, %v1944, %v1946
    %v1953 = vsel %vm1949, %v1946, %v1948
    %v1958 = vadd.f32 %v1890, %v1950
    %v1959 = vadd.f32 %v1891, %v1951
    %v1960 = vadd.f32 %v1892, %v1952
    %v1961 = vadd.f32 %v1893, %v1953
    %s1962 = sld [smem:[#allocation7 + $0x13]]
    %v1963 = vstv %s1962
    %v1964 = vmul.f32 %v582, %v1963
    %v1965 = vmul.f32 %v574, %v1963
    %v1966 = vmul.f32 %v584, %v1963
    %v1967 = vmul.f32 %v583, %v1963
    %v1968 = vmul.f32 %v575, %v1963
    %v1969 = vmul.f32 %v585, %v1963
    %s1970 = sld [smem:[#allocation7 + $0x93]]
    %v1971 = vstv %s1970
    %v1972 = vmul.f32 %v606, %v1971
    %v1973 = vmul.f32 %v598, %v1971
    %v1974 = vmul.f32 %v608, %v1971
    %v1975 = vmul.f32 %v607, %v1971
    %v1976 = vmul.f32 %v599, %v1971
    %v1977 = vmul.f32 %v609, %v1971
    %v1978 = vadd.f32 %v1964, %v1972
    %v1979 = vadd.f32 %v1965, %v1973
    %v1980 = vadd.f32 %v1966, %v1974
    %v1981 = vadd.f32 %v1967, %v1975
    %v1982 = vadd.f32 %v1968, %v1976
    %v1983 = vadd.f32 %v1969, %v1977
    %1984 = vrot.lane.b32.xlu0 %v693, 37
    %v1985 = vpop.permute.xlu0 %1984
    %1986 = vrot.lane.b32.xlu0 %v694, 37
    %v1987 = vpop.permute.xlu0 %1986
    %vm1988 = vcmask 302080
    %v1989 = vsel %vm1988, %v1985, %v1987
    %v1993 = vmul.f32 %v1978, %v1985
    %v1994 = vmul.f32 %v1979, %v1989
    %v1995 = vmul.f32 %v1980, %v1987
    %v1996 = vmul.f32 %v1981, %v1985
    %v1997 = vmul.f32 %v1982, %v1989
    %v1998 = vmul.f32 %v1983, %v1987
    %2005 = vrot.lane.b32.xlu0 %v1993, 91
    %v2006 = vpop.permute.xlu0 %2005
    %2007 = vrot.lane.b32.xlu0 %v1994, 91
    %v2008 = vpop.permute.xlu0 %2007
    %2009 = vrot.lane.b32.xlu0 %v1995, 91
    %v2010 = vpop.permute.xlu0 %2009
    %2011 = vrot.lane.b32.xlu0 %v1996, 91
    %v2012 = vpop.permute.xlu0 %2011
    %2013 = vrot.lane.b32.xlu0 %v1997, 91
    %v2014 = vpop.permute.xlu0 %2013
    %2015 = vrot.lane.b32.xlu0 %v1998, 91
    %v2016 = vpop.permute.xlu0 %2015
    %vm2017 = vcmask 744448
    %v2018 = vsel %vm2017, %v2006, %v2008
    %v2019 = vsel %vm2017, %v2008, %v2010
    %v2020 = vsel %vm2017, %v2012, %v2014
    %v2021 = vsel %vm2017, %v2014, %v2016
    %v2026 = vadd.f32 %v1958, %v2018
    %v2027 = vadd.f32 %v1959, %v2019
    %v2028 = vadd.f32 %v1960, %v2020
    %v2029 = vadd.f32 %v1961, %v2021
    %s2030 = sld [smem:[#allocation7 + $0x14]]
    %v2031 = vstv %s2030
    %v2032 = vmul.f32 %v582, %v2031
    %v2033 = vmul.f32 %v574, %v2031
    %v2034 = vmul.f32 %v584, %v2031
    %v2035 = vmul.f32 %v583, %v2031
    %v2036 = vmul.f32 %v575, %v2031
    %v2037 = vmul.f32 %v585, %v2031
    %s2038 = sld [smem:[#allocation7 + $0x94]]
    %v2039 = vstv %s2038
    %v2040 = vmul.f32 %v606, %v2039
    %v2041 = vmul.f32 %v598, %v2039
    %v2042 = vmul.f32 %v608, %v2039
    %v2043 = vmul.f32 %v607, %v2039
    %v2044 = vmul.f32 %v599, %v2039
    %v2045 = vmul.f32 %v609, %v2039
    %v2046 = vadd.f32 %v2032, %v2040
    %v2047 = vadd.f32 %v2033, %v2041
    %v2048 = vadd.f32 %v2034, %v2042
    %v2049 = vadd.f32 %v2035, %v2043
    %v2050 = vadd.f32 %v2036, %v2044
    %v2051 = vadd.f32 %v2037, %v2045
    %2052 = vrot.lane.b32.xlu0 %v703, 38
    %v2053 = vpop.permute.xlu0 %2052
    %2054 = vrot.lane.b32.xlu0 %v704, 38
    %v2055 = vpop.permute.xlu0 %2054
    %vm2056 = vcmask 310272
    %v2057 = vsel %vm2056, %v2053, %v2055
    %v2061 = vmul.f32 %v2046, %v2053
    %v2062 = vmul.f32 %v2047, %v2057
    %v2063 = vmul.f32 %v2048, %v2055
    %v2064 = vmul.f32 %v2049, %v2053
    %v2065 = vmul.f32 %v2050, %v2057
    %v2066 = vmul.f32 %v2051, %v2055
    %2073 = vrot.lane.b32.xlu0 %v2061, 90
    %v2074 = vpop.permute.xlu0 %2073
    %2075 = vrot.lane.b32.xlu0 %v2062, 90
    %v2076 = vpop.permute.xlu0 %2075
    %2077 = vrot.lane.b32.xlu0 %v2063, 90
    %v2078 = vpop.permute.xlu0 %2077
    %2079 = vrot.lane.b32.xlu0 %v2064, 90
    %v2080 = vpop.permute.xlu0 %2079
    %2081 = vrot.lane.b32.xlu0 %v2065, 90
    %v2082 = vpop.permute.xlu0 %2081
    %2083 = vrot.lane.b32.xlu0 %v2066, 90
    %v2084 = vpop.permute.xlu0 %2083
    %vm2085 = vcmask 736256
    %v2086 = vsel %vm2085, %v2074, %v2076
    %v2087 = vsel %vm2085, %v2076, %v2078
    %v2088 = vsel %vm2085, %v2080, %v2082
    %v2089 = vsel %vm2085, %v2082, %v2084
    %v2094 = vadd.f32 %v2026, %v2086
    %v2095 = vadd.f32 %v2027, %v2087
    %v2096 = vadd.f32 %v2028, %v2088
    %v2097 = vadd.f32 %v2029, %v2089
    %s2098 = sld [smem:[#allocation7 + $0x15]]
    %v2099 = vstv %s2098
    %v2100 = vmul.f32 %v582, %v2099
    %v2101 = vmul.f32 %v574, %v2099
    %v2102 = vmul.f32 %v584, %v2099
    %v2103 = vmul.f32 %v583, %v2099
    %v2104 = vmul.f32 %v575, %v2099
    %v2105 = vmul.f32 %v585, %v2099
    %s2106 = sld [smem:[#allocation7 + $0x95]]
    %v2107 = vstv %s2106
    %v2108 = vmul.f32 %v606, %v2107
    %v2109 = vmul.f32 %v598, %v2107
    %v2110 = vmul.f32 %v608, %v2107
    %v2111 = vmul.f32 %v607, %v2107
    %v2112 = vmul.f32 %v599, %v2107
    %v2113 = vmul.f32 %v609, %v2107
    %v2114 = vadd.f32 %v2100, %v2108
    %v2115 = vadd.f32 %v2101, %v2109
    %v2116 = vadd.f32 %v2102, %v2110
    %v2117 = vadd.f32 %v2103, %v2111
    %v2118 = vadd.f32 %v2104, %v2112
    %v2119 = vadd.f32 %v2105, %v2113
    %2120 = vrot.lane.b32.xlu0 %v645, 48
    %v2121 = vpop.permute.xlu0 %2120
    %2122 = vrot.lane.b32.xlu0 %v646, 48
    %v2123 = vpop.permute.xlu0 %2122
    %vm2124 = vcmask 392192
    %v2125 = vsel %vm2124, %v2121, %v2123
    %v2129 = vmul.f32 %v2114, %v2121
    %v2130 = vmul.f32 %v2115, %v2125
    %v2131 = vmul.f32 %v2116, %v2123
    %v2132 = vmul.f32 %v2117, %v2121
    %v2133 = vmul.f32 %v2118, %v2125
    %v2134 = vmul.f32 %v2119, %v2123
    %2141 = vrot.lane.b32.xlu0 %v2129, 80
    %v2142 = vpop.permute.xlu0 %2141
    %2143 = vrot.lane.b32.xlu0 %v2130, 80
    %v2144 = vpop.permute.xlu0 %2143
    %2145 = vrot.lane.b32.xlu0 %v2131, 80
    %v2146 = vpop.permute.xlu0 %2145
    %2147 = vrot.lane.b32.xlu0 %v2132, 80
    %v2148 = vpop.permute.xlu0 %2147
    %2149 = vrot.lane.b32.xlu0 %v2133, 80
    %v2150 = vpop.permute.xlu0 %2149
    %2151 = vrot.lane.b32.xlu0 %v2134, 80
    %v2152 = vpop.permute.xlu0 %2151
    %vm2153 = vcmask 654336
    %v2154 = vsel %vm2153, %v2142, %v2144
    %v2155 = vsel %vm2153, %v2144, %v2146
    %v2156 = vsel %vm2153, %v2148, %v2150
    %v2157 = vsel %vm2153, %v2150, %v2152
    %v2162 = vadd.f32 %v2094, %v2154
    %v2163 = vadd.f32 %v2095, %v2155
    %v2164 = vadd.f32 %v2096, %v2156
    %v2165 = vadd.f32 %v2097, %v2157
    %s2166 = sld [smem:[#allocation7 + $0x16]]
    %v2167 = vstv %s2166
    %v2168 = vmul.f32 %v582, %v2167
    %v2169 = vmul.f32 %v574, %v2167
    %v2170 = vmul.f32 %v584, %v2167
    %v2171 = vmul.f32 %v583, %v2167
    %v2172 = vmul.f32 %v575, %v2167
    %v2173 = vmul.f32 %v585, %v2167
    %s2174 = sld [smem:[#allocation7 + $0x96]]
    %v2175 = vstv %s2174
    %v2176 = vmul.f32 %v606, %v2175
    %v2177 = vmul.f32 %v598, %v2175
    %v2178 = vmul.f32 %v608, %v2175
    %v2179 = vmul.f32 %v607, %v2175
    %v2180 = vmul.f32 %v599, %v2175
    %v2181 = vmul.f32 %v609, %v2175
    %v2182 = vadd.f32 %v2168, %v2176
    %v2183 = vadd.f32 %v2169, %v2177
    %v2184 = vadd.f32 %v2170, %v2178
    %v2185 = vadd.f32 %v2171, %v2179
    %v2186 = vadd.f32 %v2172, %v2180
    %v2187 = vadd.f32 %v2173, %v2181
    %2188 = vrot.lane.b32.xlu0 %v655, 49
    %v2189 = vpop.permute.xlu0 %2188
    %2190 = vrot.lane.b32.xlu0 %v656, 49
    %v2191 = vpop.permute.xlu0 %2190
    %vm2192 = vcmask 400384
    %v2193 = vsel %vm2192, %v2189, %v2191
    %v2197 = vmul.f32 %v2182, %v2189
    %v2198 = vmul.f32 %v2183, %v2193
    %v2199 = vmul.f32 %v2184, %v2191
    %v2200 = vmul.f32 %v2185, %v2189
    %v2201 = vmul.f32 %v2186, %v2193
    %v2202 = vmul.f32 %v2187, %v2191
    %2209 = vrot.lane.b32.xlu0 %v2197, 79
    %v2210 = vpop.permute.xlu0 %2209
    %2211 = vrot.lane.b32.xlu0 %v2198, 79
    %v2212 = vpop.permute.xlu0 %2211
    %2213 = vrot.lane.b32.xlu0 %v2199, 79
    %v2214 = vpop.permute.xlu0 %2213
    %2215 = vrot.lane.b32.xlu0 %v2200, 79
    %v2216 = vpop.permute.xlu0 %2215
    %2217 = vrot.lane.b32.xlu0 %v2201, 79
    %v2218 = vpop.permute.xlu0 %2217
    %2219 = vrot.lane.b32.xlu0 %v2202, 79
    %v2220 = vpop.permute.xlu0 %2219
    %vm2221 = vcmask 646144
    %v2222 = vsel %vm2221, %v2210, %v2212
    %v2223 = vsel %vm2221, %v2212, %v2214
    %v2224 = vsel %vm2221, %v2216, %v2218
    %v2225 = vsel %vm2221, %v2218, %v2220
    %v2230 = vadd.f32 %v2162, %v2222
    %v2231 = vadd.f32 %v2163, %v2223
    %v2232 = vadd.f32 %v2164, %v2224
    %v2233 = vadd.f32 %v2165, %v2225
    %s2234 = sld [smem:[#allocation7 + $0x17]]
    %v2235 = vstv %s2234
    %v2236 = vmul.f32 %v582, %v2235
    %v2237 = vmul.f32 %v574, %v2235
    %v2238 = vmul.f32 %v584, %v2235
    %v2239 = vmul.f32 %v583, %v2235
    %v2240 = vmul.f32 %v575, %v2235
    %v2241 = vmul.f32 %v585, %v2235
    %s2242 = sld [smem:[#allocation7 + $0x97]]
    %v2243 = vstv %s2242
    %v2244 = vmul.f32 %v606, %v2243
    %v2245 = vmul.f32 %v598, %v2243
    %v2246 = vmul.f32 %v608, %v2243
    %v2247 = vmul.f32 %v607, %v2243
    %v2248 = vmul.f32 %v599, %v2243
    %v2249 = vmul.f32 %v609, %v2243
    %v2250 = vadd.f32 %v2236, %v2244
    %v2251 = vadd.f32 %v2237, %v2245
    %v2252 = vadd.f32 %v2238, %v2246
    %v2253 = vadd.f32 %v2239, %v2247
    %v2254 = vadd.f32 %v2240, %v2248
    %v2255 = vadd.f32 %v2241, %v2249
    %2256 = vrot.lane.b32.xlu0 %v665, 50
    %v2257 = vpop.permute.xlu0 %2256
    %2258 = vrot.lane.b32.xlu0 %v666, 50
    %v2259 = vpop.permute.xlu0 %2258
    %vm2260 = vcmask 408576
    %v2261 = vsel %vm2260, %v2257, %v2259
    %v2265 = vmul.f32 %v2250, %v2257
    %v2266 = vmul.f32 %v2251, %v2261
    %v2267 = vmul.f32 %v2252, %v2259
    %v2268 = vmul.f32 %v2253, %v2257
    %v2269 = vmul.f32 %v2254, %v2261
    %v2270 = vmul.f32 %v2255, %v2259
    %2277 = vrot.lane.b32.xlu0 %v2265, 78
    %v2278 = vpop.permute.xlu0 %2277
    %2279 = vrot.lane.b32.xlu0 %v2266, 78
    %v2280 = vpop.permute.xlu0 %2279
    %2281 = vrot.lane.b32.xlu0 %v2267, 78
    %v2282 = vpop.permute.xlu0 %2281
    %2283 = vrot.lane.b32.xlu0 %v2268, 78
    %v2284 = vpop.permute.xlu0 %2283
    %2285 = vrot.lane.b32.xlu0 %v2269, 78
    %v2286 = vpop.permute.xlu0 %2285
    %2287 = vrot.lane.b32.xlu0 %v2270, 78
    %v2288 = vpop.permute.xlu0 %2287
    %vm2289 = vcmask 637952
    %v2290 = vsel %vm2289, %v2278, %v2280
    %v2291 = vsel %vm2289, %v2280, %v2282
    %v2292 = vsel %vm2289, %v2284, %v2286
    %v2293 = vsel %vm2289, %v2286, %v2288
    %v2298 = vadd.f32 %v2230, %v2290
    %v2299 = vadd.f32 %v2231, %v2291
    %v2300 = vadd.f32 %v2232, %v2292
    %v2301 = vadd.f32 %v2233, %v2293
    %s2302 = sld [smem:[#allocation7 + $0x18]]
    %v2303 = vstv %s2302
    %v2304 = vmul.f32 %v582, %v2303
    %v2305 = vmul.f32 %v574, %v2303
    %v2306 = vmul.f32 %v584, %v2303
    %v2307 = vmul.f32 %v583, %v2303
    %v2308 = vmul.f32 %v575, %v2303
    %v2309 = vmul.f32 %v585, %v2303
    %s2310 = sld [smem:[#allocation7 + $0x98]]
    %v2311 = vstv %s2310
    %v2312 = vmul.f32 %v606, %v2311
    %v2313 = vmul.f32 %v598, %v2311
    %v2314 = vmul.f32 %v608, %v2311
    %v2315 = vmul.f32 %v607, %v2311
    %v2316 = vmul.f32 %v599, %v2311
    %v2317 = vmul.f32 %v609, %v2311
    %v2318 = vadd.f32 %v2304, %v2312
    %v2319 = vadd.f32 %v2305, %v2313
    %v2320 = vadd.f32 %v2306, %v2314
    %v2321 = vadd.f32 %v2307, %v2315
    %v2322 = vadd.f32 %v2308, %v2316
    %v2323 = vadd.f32 %v2309, %v2317
    %2324 = vrot.lane.b32.xlu0 %v673, 51
    %v2325 = vpop.permute.xlu0 %2324
    %2326 = vrot.lane.b32.xlu0 %v674, 51
    %v2327 = vpop.permute.xlu0 %2326
    %v2328 = vsel %vm573, %v2325, %v2327
    %v2332 = vmul.f32 %v2318, %v2325
    %v2333 = vmul.f32 %v2319, %v2328
    %v2334 = vmul.f32 %v2320, %v2327
    %v2335 = vmul.f32 %v2321, %v2325
    %v2336 = vmul.f32 %v2322, %v2328
    %v2337 = vmul.f32 %v2323, %v2327
    %2344 = vrot.lane.b32.xlu0 %v2332, 77
    %v2345 = vpop.permute.xlu0 %2344
    %2346 = vrot.lane.b32.xlu0 %v2333, 77
    %v2347 = vpop.permute.xlu0 %2346
    %2348 = vrot.lane.b32.xlu0 %v2334, 77
    %v2349 = vpop.permute.xlu0 %2348
    %2350 = vrot.lane.b32.xlu0 %v2335, 77
    %v2351 = vpop.permute.xlu0 %2350
    %2352 = vrot.lane.b32.xlu0 %v2336, 77
    %v2353 = vpop.permute.xlu0 %2352
    %2354 = vrot.lane.b32.xlu0 %v2337, 77
    %v2355 = vpop.permute.xlu0 %2354
    %vm2356 = vcmask 629760
    %v2357 = vsel %vm2356, %v2345, %v2347
    %v2358 = vsel %vm2356, %v2347, %v2349
    %v2359 = vsel %vm2356, %v2351, %v2353
    %v2360 = vsel %vm2356, %v2353, %v2355
    %v2365 = vadd.f32 %v2298, %v2357
    %v2366 = vadd.f32 %v2299, %v2358
    %v2367 = vadd.f32 %v2300, %v2359
    %v2368 = vadd.f32 %v2301, %v2360
    %s2369 = sld [smem:[#allocation7 + $0x19]]
    %v2370 = vstv %s2369
    %v2371 = vmul.f32 %v582, %v2370
    %v2372 = vmul.f32 %v574, %v2370
    %v2373 = vmul.f32 %v584, %v2370
    %v2374 = vmul.f32 %v583, %v2370
    %v2375 = vmul.f32 %v575, %v2370
    %v2376 = vmul.f32 %v585, %v2370
    %s2377 = sld [smem:[#allocation7 + $0x99]]
    %v2378 = vstv %s2377
    %v2379 = vmul.f32 %v606, %v2378
    %v2380 = vmul.f32 %v598, %v2378
    %v2381 = vmul.f32 %v608, %v2378
    %v2382 = vmul.f32 %v607, %v2378
    %v2383 = vmul.f32 %v599, %v2378
    %v2384 = vmul.f32 %v609, %v2378
    %v2385 = vadd.f32 %v2371, %v2379
    %v2386 = vadd.f32 %v2372, %v2380
    %v2387 = vadd.f32 %v2373, %v2381
    %v2388 = vadd.f32 %v2374, %v2382
    %v2389 = vadd.f32 %v2375, %v2383
    %v2390 = vadd.f32 %v2376, %v2384
    %2391 = vrot.lane.b32.xlu0 %v683, 52
    %v2392 = vpop.permute.xlu0 %2391
    %2393 = vrot.lane.b32.xlu0 %v684, 52
    %v2394 = vpop.permute.xlu0 %2393
    %vm2395 = vcmask 424960
    %v2396 = vsel %vm2395, %v2392, %v2394
    %v2400 = vmul.f32 %v2385, %v2392
    %v2401 = vmul.f32 %v2386, %v2396
    %v2402 = vmul.f32 %v2387, %v2394
    %v2403 = vmul.f32 %v2388, %v2392
    %v2404 = vmul.f32 %v2389, %v2396
    %v2405 = vmul.f32 %v2390, %v2394
    %2412 = vrot.lane.b32.xlu0 %v2400, 76
    %v2413 = vpop.permute.xlu0 %2412
    %2414 = vrot.lane.b32.xlu0 %v2401, 76
    %v2415 = vpop.permute.xlu0 %2414
    %2416 = vrot.lane.b32.xlu0 %v2402, 76
    %v2417 = vpop.permute.xlu0 %2416
    %2418 = vrot.lane.b32.xlu0 %v2403, 76
    %v2419 = vpop.permute.xlu0 %2418
    %2420 = vrot.lane.b32.xlu0 %v2404, 76
    %v2421 = vpop.permute.xlu0 %2420
    %2422 = vrot.lane.b32.xlu0 %v2405, 76
    %v2423 = vpop.permute.xlu0 %2422
    %vm2424 = vcmask 621568
    %v2425 = vsel %vm2424, %v2413, %v2415
    %v2426 = vsel %vm2424, %v2415, %v2417
    %v2427 = vsel %vm2424, %v2419, %v2421
    %v2428 = vsel %vm2424, %v2421, %v2423
    %v2433 = vadd.f32 %v2365, %v2425
    %v2434 = vadd.f32 %v2366, %v2426
    %v2435 = vadd.f32 %v2367, %v2427
    %v2436 = vadd.f32 %v2368, %v2428
    %s2437 = sld [smem:[#allocation7 + $0x1a]]
    %v2438 = vstv %s2437
    %v2439 = vmul.f32 %v582, %v2438
    %v2440 = vmul.f32 %v574, %v2438
    %v2441 = vmul.f32 %v584, %v2438
    %v2442 = vmul.f32 %v583, %v2438
    %v2443 = vmul.f32 %v575, %v2438
    %v2444 = vmul.f32 %v585, %v2438
    %s2445 = sld [smem:[#allocation7 + $0x9a]]
    %v2446 = vstv %s2445
    %v2447 = vmul.f32 %v606, %v2446
    %v2448 = vmul.f32 %v598, %v2446
    %v2449 = vmul.f32 %v608, %v2446
    %v2450 = vmul.f32 %v607, %v2446
    %v2451 = vmul.f32 %v599, %v2446
    %v2452 = vmul.f32 %v609, %v2446
    %v2453 = vadd.f32 %v2439, %v2447
    %v2454 = vadd.f32 %v2440, %v2448
    %v2455 = vadd.f32 %v2441, %v2449
    %v2456 = vadd.f32 %v2442, %v2450
    %v2457 = vadd.f32 %v2443, %v2451
    %v2458 = vadd.f32 %v2444, %v2452
    %2459 = vrot.lane.b32.xlu0 %v693, 53
    %v2460 = vpop.permute.xlu0 %2459
    %2461 = vrot.lane.b32.xlu0 %v694, 53
    %v2462 = vpop.permute.xlu0 %2461
    %vm2463 = vcmask 433152
    %v2464 = vsel %vm2463, %v2460, %v2462
    %v2468 = vmul.f32 %v2453, %v2460
    %v2469 = vmul.f32 %v2454, %v2464
    %v2470 = vmul.f32 %v2455, %v2462
    %v2471 = vmul.f32 %v2456, %v2460
    %v2472 = vmul.f32 %v2457, %v2464
    %v2473 = vmul.f32 %v2458, %v2462
    %2480 = vrot.lane.b32.xlu0 %v2468, 75
    %v2481 = vpop.permute.xlu0 %2480
    %2482 = vrot.lane.b32.xlu0 %v2469, 75
    %v2483 = vpop.permute.xlu0 %2482
    %2484 = vrot.lane.b32.xlu0 %v2470, 75
    %v2485 = vpop.permute.xlu0 %2484
    %2486 = vrot.lane.b32.xlu0 %v2471, 75
    %v2487 = vpop.permute.xlu0 %2486
    %2488 = vrot.lane.b32.xlu0 %v2472, 75
    %v2489 = vpop.permute.xlu0 %2488
    %2490 = vrot.lane.b32.xlu0 %v2473, 75
    %v2491 = vpop.permute.xlu0 %2490
    %vm2492 = vcmask 613376
    %v2493 = vsel %vm2492, %v2481, %v2483
    %v2494 = vsel %vm2492, %v2483, %v2485
    %v2495 = vsel %vm2492, %v2487, %v2489
    %v2496 = vsel %vm2492, %v2489, %v2491
    %v2501 = vadd.f32 %v2433, %v2493
    %v2502 = vadd.f32 %v2434, %v2494
    %v2503 = vadd.f32 %v2435, %v2495
    %v2504 = vadd.f32 %v2436, %v2496
    %s2505 = sld [smem:[#allocation7 + $0x1b]]
    %v2506 = vstv %s2505
    %v2507 = vmul.f32 %v582, %v2506
    %v2508 = vmul.f32 %v574, %v2506
    %v2509 = vmul.f32 %v584, %v2506
    %v2510 = vmul.f32 %v583, %v2506
    %v2511 = vmul.f32 %v575, %v2506
    %v2512 = vmul.f32 %v585, %v2506
    %s2513 = sld [smem:[#allocation7 + $0x9b]]
    %v2514 = vstv %s2513
    %v2515 = vmul.f32 %v606, %v2514
    %v2516 = vmul.f32 %v598, %v2514
    %v2517 = vmul.f32 %v608, %v2514
    %v2518 = vmul.f32 %v607, %v2514
    %v2519 = vmul.f32 %v599, %v2514
    %v2520 = vmul.f32 %v609, %v2514
    %v2521 = vadd.f32 %v2507, %v2515
    %v2522 = vadd.f32 %v2508, %v2516
    %v2523 = vadd.f32 %v2509, %v2517
    %v2524 = vadd.f32 %v2510, %v2518
    %v2525 = vadd.f32 %v2511, %v2519
    %v2526 = vadd.f32 %v2512, %v2520
    %2527 = vrot.lane.b32.xlu0 %v703, 54
    %v2528 = vpop.permute.xlu0 %2527
    %2529 = vrot.lane.b32.xlu0 %v704, 54
    %v2530 = vpop.permute.xlu0 %2529
    %vm2531 = vcmask 441344
    %v2532 = vsel %vm2531, %v2528, %v2530
    %v2536 = vmul.f32 %v2521, %v2528
    %v2537 = vmul.f32 %v2522, %v2532
    %v2538 = vmul.f32 %v2523, %v2530
    %v2539 = vmul.f32 %v2524, %v2528
    %v2540 = vmul.f32 %v2525, %v2532
    %v2541 = vmul.f32 %v2526, %v2530
    %2548 = vrot.lane.b32.xlu0 %v2536, 74
    %v2549 = vpop.permute.xlu0 %2548
    %2550 = vrot.lane.b32.xlu0 %v2537, 74
    %v2551 = vpop.permute.xlu0 %2550
    %2552 = vrot.lane.b32.xlu0 %v2538, 74
    %v2553 = vpop.permute.xlu0 %2552
    %2554 = vrot.lane.b32.xlu0 %v2539, 74
    %v2555 = vpop.permute.xlu0 %2554
    %2556 = vrot.lane.b32.xlu0 %v2540, 74
    %v2557 = vpop.permute.xlu0 %2556
    %2558 = vrot.lane.b32.xlu0 %v2541, 74
    %v2559 = vpop.permute.xlu0 %2558
    %vm2560 = vcmask 605184
    %v2561 = vsel %vm2560, %v2549, %v2551
    %v2562 = vsel %vm2560, %v2551, %v2553
    %v2563 = vsel %vm2560, %v2555, %v2557
    %v2564 = vsel %vm2560, %v2557, %v2559
    %v2569 = vadd.f32 %v2501, %v2561
    %v2570 = vadd.f32 %v2502, %v2562
    %v2571 = vadd.f32 %v2503, %v2563
    %v2572 = vadd.f32 %v2504, %v2564
    %s2573 = sld [smem:[#allocation7 + $0x1c]]
    %v2574 = vstv %s2573
    %v2575 = vmul.f32 %v582, %v2574
    %v2576 = vmul.f32 %v574, %v2574
    %v2577 = vmul.f32 %v584, %v2574
    %v2578 = vmul.f32 %v583, %v2574
    %v2579 = vmul.f32 %v575, %v2574
    %v2580 = vmul.f32 %v585, %v2574
    %s2581 = sld [smem:[#allocation7 + $0x9c]]
    %v2582 = vstv %s2581
    %v2583 = vmul.f32 %v606, %v2582
    %v2584 = vmul.f32 %v598, %v2582
    %v2585 = vmul.f32 %v608, %v2582
    %v2586 = vmul.f32 %v607, %v2582
    %v2587 = vmul.f32 %v599, %v2582
    %v2588 = vmul.f32 %v609, %v2582
    %v2589 = vadd.f32 %v2575, %v2583
    %v2590 = vadd.f32 %v2576, %v2584
    %v2591 = vadd.f32 %v2577, %v2585
    %v2592 = vadd.f32 %v2578, %v2586
    %v2593 = vadd.f32 %v2579, %v2587
    %v2594 = vadd.f32 %v2580, %v2588
    %2595 = vrot.lane.b32.xlu0 %v645, 64
    %v2596 = vpop.permute.xlu0 %2595
    %2597 = vrot.lane.b32.xlu0 %v646, 64
    %v2598 = vpop.permute.xlu0 %2597
    %vm2599 = vcmask 523264
    %v2600 = vsel %vm2599, %v2596, %v2598
    %v2604 = vmul.f32 %v2589, %v2596
    %v2605 = vmul.f32 %v2590, %v2600
    %v2606 = vmul.f32 %v2591, %v2598
    %v2607 = vmul.f32 %v2592, %v2596
    %v2608 = vmul.f32 %v2593, %v2600
    %v2609 = vmul.f32 %v2594, %v2598
    %2616 = vrot.lane.b32.xlu0 %v2604, 64
    %v2617 = vpop.permute.xlu0 %2616
    %2618 = vrot.lane.b32.xlu0 %v2605, 64
    %v2619 = vpop.permute.xlu0 %2618
    %2620 = vrot.lane.b32.xlu0 %v2606, 64
    %v2621 = vpop.permute.xlu0 %2620
    %2622 = vrot.lane.b32.xlu0 %v2607, 64
    %v2623 = vpop.permute.xlu0 %2622
    %2624 = vrot.lane.b32.xlu0 %v2608, 64
    %v2625 = vpop.permute.xlu0 %2624
    %2626 = vrot.lane.b32.xlu0 %v2609, 64
    %v2627 = vpop.permute.xlu0 %2626
    %v2628 = vsel %vm2599, %v2617, %v2619
    %v2629 = vsel %vm2599, %v2619, %v2621
    %v2630 = vsel %vm2599, %v2623, %v2625
    %v2631 = vsel %vm2599, %v2625, %v2627
    %v2636 = vadd.f32 %v2569, %v2628
    %v2637 = vadd.f32 %v2570, %v2629
    %v2638 = vadd.f32 %v2571, %v2630
    %v2639 = vadd.f32 %v2572, %v2631
    %s2640 = sld [smem:[#allocation7 + $0x1d]]
    %v2641 = vstv %s2640
    %v2642 = vmul.f32 %v582, %v2641
    %v2643 = vmul.f32 %v574, %v2641
    %v2644 = vmul.f32 %v584, %v2641
    %v2645 = vmul.f32 %v583, %v2641
    %v2646 = vmul.f32 %v575, %v2641
    %v2647 = vmul.f32 %v585, %v2641
    %s2648 = sld [smem:[#allocation7 + $0x9d]]
    %v2649 = vstv %s2648
    %v2650 = vmul.f32 %v606, %v2649
    %v2651 = vmul.f32 %v598, %v2649
    %v2652 = vmul.f32 %v608, %v2649
    %v2653 = vmul.f32 %v607, %v2649
    %v2654 = vmul.f32 %v599, %v2649
    %v2655 = vmul.f32 %v609, %v2649
    %v2656 = vadd.f32 %v2642, %v2650
    %v2657 = vadd.f32 %v2643, %v2651
    %v2658 = vadd.f32 %v2644, %v2652
    %v2659 = vadd.f32 %v2645, %v2653
    %v2660 = vadd.f32 %v2646, %v2654
    %v2661 = vadd.f32 %v2647, %v2655
    %2662 = vrot.lane.b32.xlu0 %v655, 65
    %v2663 = vpop.permute.xlu0 %2662
    %2664 = vrot.lane.b32.xlu0 %v656, 65
    %v2665 = vpop.permute.xlu0 %2664
    %vm2666 = vcmask 531456
    %v2667 = vsel %vm2666, %v2663, %v2665
    %v2671 = vmul.f32 %v2656, %v2663
    %v2672 = vmul.f32 %v2657, %v2667
    %v2673 = vmul.f32 %v2658, %v2665
    %v2674 = vmul.f32 %v2659, %v2663
    %v2675 = vmul.f32 %v2660, %v2667
    %v2676 = vmul.f32 %v2661, %v2665
    %2683 = vrot.lane.b32.xlu0 %v2671, 63
    %v2684 = vpop.permute.xlu0 %2683
    %2685 = vrot.lane.b32.xlu0 %v2672, 63
    %v2686 = vpop.permute.xlu0 %2685
    %2687 = vrot.lane.b32.xlu0 %v2673, 63
    %v2688 = vpop.permute.xlu0 %2687
    %2689 = vrot.lane.b32.xlu0 %v2674, 63
    %v2690 = vpop.permute.xlu0 %2689
    %2691 = vrot.lane.b32.xlu0 %v2675, 63
    %v2692 = vpop.permute.xlu0 %2691
    %2693 = vrot.lane.b32.xlu0 %v2676, 63
    %v2694 = vpop.permute.xlu0 %2693
    %vm2695 = vcmask 515072
    %v2696 = vsel %vm2695, %v2684, %v2686
    %v2697 = vsel %vm2695, %v2686, %v2688
    %v2698 = vsel %vm2695, %v2690, %v2692
    %v2699 = vsel %vm2695, %v2692, %v2694
    %v2704 = vadd.f32 %v2636, %v2696
    %v2705 = vadd.f32 %v2637, %v2697
    %v2706 = vadd.f32 %v2638, %v2698
    %v2707 = vadd.f32 %v2639, %v2699
    %s2708 = sld [smem:[#allocation7 + $0x1e]]
    %v2709 = vstv %s2708
    %v2710 = vmul.f32 %v582, %v2709
    %v2711 = vmul.f32 %v574, %v2709
    %v2712 = vmul.f32 %v584, %v2709
    %v2713 = vmul.f32 %v583, %v2709
    %v2714 = vmul.f32 %v575, %v2709
    %v2715 = vmul.f32 %v585, %v2709
    %s2716 = sld [smem:[#allocation7 + $0x9e]]
    %v2717 = vstv %s2716
    %v2718 = vmul.f32 %v606, %v2717
    %v2719 = vmul.f32 %v598, %v2717
    %v2720 = vmul.f32 %v608, %v2717
    %v2721 = vmul.f32 %v607, %v2717
    %v2722 = vmul.f32 %v599, %v2717
    %v2723 = vmul.f32 %v609, %v2717
    %v2724 = vadd.f32 %v2710, %v2718
    %v2725 = vadd.f32 %v2711, %v2719
    %v2726 = vadd.f32 %v2712, %v2720
    %v2727 = vadd.f32 %v2713, %v2721
    %v2728 = vadd.f32 %v2714, %v2722
    %v2729 = vadd.f32 %v2715, %v2723
    %2730 = vrot.lane.b32.xlu0 %v665, 66
    %v2731 = vpop.permute.xlu0 %2730
    %2732 = vrot.lane.b32.xlu0 %v666, 66
    %v2733 = vpop.permute.xlu0 %2732
    %vm2734 = vcmask 539648
    %v2735 = vsel %vm2734, %v2731, %v2733
    %v2739 = vmul.f32 %v2724, %v2731
    %v2740 = vmul.f32 %v2725, %v2735
    %v2741 = vmul.f32 %v2726, %v2733
    %v2742 = vmul.f32 %v2727, %v2731
    %v2743 = vmul.f32 %v2728, %v2735
    %v2744 = vmul.f32 %v2729, %v2733
    %2751 = vrot.lane.b32.xlu0 %v2739, 62
    %v2752 = vpop.permute.xlu0 %2751
    %2753 = vrot.lane.b32.xlu0 %v2740, 62
    %v2754 = vpop.permute.xlu0 %2753
    %2755 = vrot.lane.b32.xlu0 %v2741, 62
    %v2756 = vpop.permute.xlu0 %2755
    %2757 = vrot.lane.b32.xlu0 %v2742, 62
    %v2758 = vpop.permute.xlu0 %2757
    %2759 = vrot.lane.b32.xlu0 %v2743, 62
    %v2760 = vpop.permute.xlu0 %2759
    %2761 = vrot.lane.b32.xlu0 %v2744, 62
    %v2762 = vpop.permute.xlu0 %2761
    %vm2763 = vcmask 506880
    %v2764 = vsel %vm2763, %v2752, %v2754
    %v2765 = vsel %vm2763, %v2754, %v2756
    %v2766 = vsel %vm2763, %v2758, %v2760
    %v2767 = vsel %vm2763, %v2760, %v2762
    %v2772 = vadd.f32 %v2704, %v2764
    %v2773 = vadd.f32 %v2705, %v2765
    %v2774 = vadd.f32 %v2706, %v2766
    %v2775 = vadd.f32 %v2707, %v2767
    %s2776 = sld [smem:[#allocation7 + $0x1f]]
    %v2777 = vstv %s2776
    %v2778 = vmul.f32 %v582, %v2777
    %v2779 = vmul.f32 %v574, %v2777
    %v2780 = vmul.f32 %v584, %v2777
    %v2781 = vmul.f32 %v583, %v2777
    %v2782 = vmul.f32 %v575, %v2777
    %v2783 = vmul.f32 %v585, %v2777
    %s2784 = sld [smem:[#allocation7 + $0x9f]]
    %v2785 = vstv %s2784
    %v2786 = vmul.f32 %v606, %v2785
    %v2787 = vmul.f32 %v598, %v2785
    %v2788 = vmul.f32 %v608, %v2785
    %v2789 = vmul.f32 %v607, %v2785
    %v2790 = vmul.f32 %v599, %v2785
    %v2791 = vmul.f32 %v609, %v2785
    %v2792 = vadd.f32 %v2778, %v2786
    %v2793 = vadd.f32 %v2779, %v2787
    %v2794 = vadd.f32 %v2780, %v2788
    %v2795 = vadd.f32 %v2781, %v2789
    %v2796 = vadd.f32 %v2782, %v2790
    %v2797 = vadd.f32 %v2783, %v2791
    %2798 = vrot.lane.b32.xlu0 %v673, 67
    %v2799 = vpop.permute.xlu0 %2798
    %2800 = vrot.lane.b32.xlu0 %v674, 67
    %v2801 = vpop.permute.xlu0 %2800
    %vm2802 = vcmask 547840
    %v2803 = vsel %vm2802, %v2799, %v2801
    %v2807 = vmul.f32 %v2792, %v2799
    %v2808 = vmul.f32 %v2793, %v2803
    %v2809 = vmul.f32 %v2794, %v2801
    %v2810 = vmul.f32 %v2795, %v2799
    %v2811 = vmul.f32 %v2796, %v2803
    %v2812 = vmul.f32 %v2797, %v2801
    %2819 = vrot.lane.b32.xlu0 %v2807, 61
    %v2820 = vpop.permute.xlu0 %2819
    %2821 = vrot.lane.b32.xlu0 %v2808, 61
    %v2822 = vpop.permute.xlu0 %2821
    %2823 = vrot.lane.b32.xlu0 %v2809, 61
    %v2824 = vpop.permute.xlu0 %2823
    %2825 = vrot.lane.b32.xlu0 %v2810, 61
    %v2826 = vpop.permute.xlu0 %2825
    %2827 = vrot.lane.b32.xlu0 %v2811, 61
    %v2828 = vpop.permute.xlu0 %2827
    %2829 = vrot.lane.b32.xlu0 %v2812, 61
    %v2830 = vpop.permute.xlu0 %2829
    %vm2831 = vcmask 498688
    %v2832 = vsel %vm2831, %v2820, %v2822
    %v2833 = vsel %vm2831, %v2822, %v2824
    %v2834 = vsel %vm2831, %v2826, %v2828
    %v2835 = vsel %vm2831, %v2828, %v2830
    %v2840 = vadd.f32 %v2772, %v2832
    %v2841 = vadd.f32 %v2773, %v2833
    %v2842 = vadd.f32 %v2774, %v2834
    %v2843 = vadd.f32 %v2775, %v2835
    %s2844 = sld [smem:[#allocation7 + $0x20]]
    %v2845 = vstv %s2844
    %v2846 = vmul.f32 %v582, %v2845
    %v2847 = vmul.f32 %v574, %v2845
    %v2848 = vmul.f32 %v584, %v2845
    %v2849 = vmul.f32 %v583, %v2845
    %v2850 = vmul.f32 %v575, %v2845
    %v2851 = vmul.f32 %v585, %v2845
    %s2852 = sld [smem:[#allocation7 + $0xa0]]
    %v2853 = vstv %s2852
    %v2854 = vmul.f32 %v606, %v2853
    %v2855 = vmul.f32 %v598, %v2853
    %v2856 = vmul.f32 %v608, %v2853
    %v2857 = vmul.f32 %v607, %v2853
    %v2858 = vmul.f32 %v599, %v2853
    %v2859 = vmul.f32 %v609, %v2853
    %v2860 = vadd.f32 %v2846, %v2854
    %v2861 = vadd.f32 %v2847, %v2855
    %v2862 = vadd.f32 %v2848, %v2856
    %v2863 = vadd.f32 %v2849, %v2857
    %v2864 = vadd.f32 %v2850, %v2858
    %v2865 = vadd.f32 %v2851, %v2859
    %2866 = vrot.lane.b32.xlu0 %v683, 68
    %v2867 = vpop.permute.xlu0 %2866
    %2868 = vrot.lane.b32.xlu0 %v684, 68
    %v2869 = vpop.permute.xlu0 %2868
    %vm2870 = vcmask 556032
    %v2871 = vsel %vm2870, %v2867, %v2869
    %v2875 = vmul.f32 %v2860, %v2867
    %v2876 = vmul.f32 %v2861, %v2871
    %v2877 = vmul.f32 %v2862, %v2869
    %v2878 = vmul.f32 %v2863, %v2867
    %v2879 = vmul.f32 %v2864, %v2871
    %v2880 = vmul.f32 %v2865, %v2869
    %2887 = vrot.lane.b32.xlu0 %v2875, 60
    %v2888 = vpop.permute.xlu0 %2887
    %2889 = vrot.lane.b32.xlu0 %v2876, 60
    %v2890 = vpop.permute.xlu0 %2889
    %2891 = vrot.lane.b32.xlu0 %v2877, 60
    %v2892 = vpop.permute.xlu0 %2891
    %2893 = vrot.lane.b32.xlu0 %v2878, 60
    %v2894 = vpop.permute.xlu0 %2893
    %2895 = vrot.lane.b32.xlu0 %v2879, 60
    %v2896 = vpop.permute.xlu0 %2895
    %2897 = vrot.lane.b32.xlu0 %v2880, 60
    %v2898 = vpop.permute.xlu0 %2897
    %vm2899 = vcmask 490496
    %v2900 = vsel %vm2899, %v2888, %v2890
    %v2901 = vsel %vm2899, %v2890, %v2892
    %v2902 = vsel %vm2899, %v2894, %v2896
    %v2903 = vsel %vm2899, %v2896, %v2898
    %v2908 = vadd.f32 %v2840, %v2900
    %v2909 = vadd.f32 %v2841, %v2901
    %v2910 = vadd.f32 %v2842, %v2902
    %v2911 = vadd.f32 %v2843, %v2903
    %s2912 = sld [smem:[#allocation7 + $0x21]]
    %v2913 = vstv %s2912
    %v2914 = vmul.f32 %v582, %v2913
    %v2915 = vmul.f32 %v574, %v2913
    %v2916 = vmul.f32 %v584, %v2913
    %v2917 = vmul.f32 %v583, %v2913
    %v2918 = vmul.f32 %v575, %v2913
    %v2919 = vmul.f32 %v585, %v2913
    %s2920 = sld [smem:[#allocation7 + $0xa1]]
    %v2921 = vstv %s2920
    %v2922 = vmul.f32 %v606, %v2921
    %v2923 = vmul.f32 %v598, %v2921
    %v2924 = vmul.f32 %v608, %v2921
    %v2925 = vmul.f32 %v607, %v2921
    %v2926 = vmul.f32 %v599, %v2921
    %v2927 = vmul.f32 %v609, %v2921
    %v2928 = vadd.f32 %v2914, %v2922
    %v2929 = vadd.f32 %v2915, %v2923
    %v2930 = vadd.f32 %v2916, %v2924
    %v2931 = vadd.f32 %v2917, %v2925
    %v2932 = vadd.f32 %v2918, %v2926
    %v2933 = vadd.f32 %v2919, %v2927
    %2934 = vrot.lane.b32.xlu0 %v693, 69
    %v2935 = vpop.permute.xlu0 %2934
    %2936 = vrot.lane.b32.xlu0 %v694, 69
    %v2937 = vpop.permute.xlu0 %2936
    %vm2938 = vcmask 564224
    %v2939 = vsel %vm2938, %v2935, %v2937
    %v2943 = vmul.f32 %v2928, %v2935
    %v2944 = vmul.f32 %v2929, %v2939
    %v2945 = vmul.f32 %v2930, %v2937
    %v2946 = vmul.f32 %v2931, %v2935
    %v2947 = vmul.f32 %v2932, %v2939
    %v2948 = vmul.f32 %v2933, %v2937
    %2955 = vrot.lane.b32.xlu0 %v2943, 59
    %v2956 = vpop.permute.xlu0 %2955
    %2957 = vrot.lane.b32.xlu0 %v2944, 59
    %v2958 = vpop.permute.xlu0 %2957
    %2959 = vrot.lane.b32.xlu0 %v2945, 59
    %v2960 = vpop.permute.xlu0 %2959
    %2961 = vrot.lane.b32.xlu0 %v2946, 59
    %v2962 = vpop.permute.xlu0 %2961
    %2963 = vrot.lane.b32.xlu0 %v2947, 59
    %v2964 = vpop.permute.xlu0 %2963
    %2965 = vrot.lane.b32.xlu0 %v2948, 59
    %v2966 = vpop.permute.xlu0 %2965
    %vm2967 = vcmask 482304
    %v2968 = vsel %vm2967, %v2956, %v2958
    %v2969 = vsel %vm2967, %v2958, %v2960
    %v2970 = vsel %vm2967, %v2962, %v2964
    %v2971 = vsel %vm2967, %v2964, %v2966
    %v2976 = vadd.f32 %v2908, %v2968
    %v2977 = vadd.f32 %v2909, %v2969
    %v2978 = vadd.f32 %v2910, %v2970
    %v2979 = vadd.f32 %v2911, %v2971
    %s2980 = sld [smem:[#allocation7 + $0x22]]
    %v2981 = vstv %s2980
    %v2982 = vmul.f32 %v582, %v2981
    %v2983 = vmul.f32 %v574, %v2981
    %v2984 = vmul.f32 %v584, %v2981
    %v2985 = vmul.f32 %v583, %v2981
    %v2986 = vmul.f32 %v575, %v2981
    %v2987 = vmul.f32 %v585, %v2981
    %s2988 = sld [smem:[#allocation7 + $0xa2]]
    %v2989 = vstv %s2988
    %v2990 = vmul.f32 %v606, %v2989
    %v2991 = vmul.f32 %v598, %v2989
    %v2992 = vmul.f32 %v608, %v2989
    %v2993 = vmul.f32 %v607, %v2989
    %v2994 = vmul.f32 %v599, %v2989
    %v2995 = vmul.f32 %v609, %v2989
    %v2996 = vadd.f32 %v2982, %v2990
    %v2997 = vadd.f32 %v2983, %v2991
    %v2998 = vadd.f32 %v2984, %v2992
    %v2999 = vadd.f32 %v2985, %v2993
    %v3000 = vadd.f32 %v2986, %v2994
    %v3001 = vadd.f32 %v2987, %v2995
    %3002 = vrot.lane.b32.xlu0 %v703, 70
    %v3003 = vpop.permute.xlu0 %3002
    %3004 = vrot.lane.b32.xlu0 %v704, 70
    %v3005 = vpop.permute.xlu0 %3004
    %vm3006 = vcmask 572416
    %v3007 = vsel %vm3006, %v3003, %v3005
    %v3011 = vmul.f32 %v2996, %v3003
    %v3012 = vmul.f32 %v2997, %v3007
    %v3013 = vmul.f32 %v2998, %v3005
    %v3014 = vmul.f32 %v2999, %v3003
    %v3015 = vmul.f32 %v3000, %v3007
    %v3016 = vmul.f32 %v3001, %v3005
    %3023 = vrot.lane.b32.xlu0 %v3011, 58
    %v3024 = vpop.permute.xlu0 %3023
    %3025 = vrot.lane.b32.xlu0 %v3012, 58
    %v3026 = vpop.permute.xlu0 %3025
    %3027 = vrot.lane.b32.xlu0 %v3013, 58
    %v3028 = vpop.permute.xlu0 %3027
    %3029 = vrot.lane.b32.xlu0 %v3014, 58
    %v3030 = vpop.permute.xlu0 %3029
    %3031 = vrot.lane.b32.xlu0 %v3015, 58
    %v3032 = vpop.permute.xlu0 %3031
    %3033 = vrot.lane.b32.xlu0 %v3016, 58
    %v3034 = vpop.permute.xlu0 %3033
    %vm3035 = vcmask 474112
    %v3036 = vsel %vm3035, %v3024, %v3026
    %v3037 = vsel %vm3035, %v3026, %v3028
    %v3038 = vsel %vm3035, %v3030, %v3032
    %v3039 = vsel %vm3035, %v3032, %v3034
    %v3044 = vadd.f32 %v2976, %v3036
    %v3045 = vadd.f32 %v2977, %v3037
    %v3046 = vadd.f32 %v2978, %v3038
    %v3047 = vadd.f32 %v2979, %v3039
    %s3048 = sld [smem:[#allocation7 + $0x23]]
    %v3049 = vstv %s3048
    %v3050 = vmul.f32 %v582, %v3049
    %v3051 = vmul.f32 %v574, %v3049
    %v3052 = vmul.f32 %v584, %v3049
    %v3053 = vmul.f32 %v583, %v3049
    %v3054 = vmul.f32 %v575, %v3049
    %v3055 = vmul.f32 %v585, %v3049
    %s3056 = sld [smem:[#allocation7 + $0xa3]]
    %v3057 = vstv %s3056
    %v3058 = vmul.f32 %v606, %v3057
    %v3059 = vmul.f32 %v598, %v3057
    %v3060 = vmul.f32 %v608, %v3057
    %v3061 = vmul.f32 %v607, %v3057
    %v3062 = vmul.f32 %v599, %v3057
    %v3063 = vmul.f32 %v609, %v3057
    %v3064 = vadd.f32 %v3050, %v3058
    %v3065 = vadd.f32 %v3051, %v3059
    %v3066 = vadd.f32 %v3052, %v3060
    %v3067 = vadd.f32 %v3053, %v3061
    %v3068 = vadd.f32 %v3054, %v3062
    %v3069 = vadd.f32 %v3055, %v3063
    %3070 = vrot.lane.b32.xlu0 %v645, 80
    %v3071 = vpop.permute.xlu0 %3070
    %3072 = vrot.lane.b32.xlu0 %v646, 80
    %v3073 = vpop.permute.xlu0 %3072
    %v3074 = vsel %vm2153, %v3071, %v3073
    %v3078 = vmul.f32 %v3064, %v3071
    %v3079 = vmul.f32 %v3065, %v3074
    %v3080 = vmul.f32 %v3066, %v3073
    %v3081 = vmul.f32 %v3067, %v3071
    %v3082 = vmul.f32 %v3068, %v3074
    %v3083 = vmul.f32 %v3069, %v3073
    %3090 = vrot.lane.b32.xlu0 %v3078, 48
    %v3091 = vpop.permute.xlu0 %3090
    %3092 = vrot.lane.b32.xlu0 %v3079, 48
    %v3093 = vpop.permute.xlu0 %3092
    %3094 = vrot.lane.b32.xlu0 %v3080, 48
    %v3095 = vpop.permute.xlu0 %3094
    %3096 = vrot.lane.b32.xlu0 %v3081, 48
    %v3097 = vpop.permute.xlu0 %3096
    %3098 = vrot.lane.b32.xlu0 %v3082, 48
    %v3099 = vpop.permute.xlu0 %3098
    %3100 = vrot.lane.b32.xlu0 %v3083, 48
    %v3101 = vpop.permute.xlu0 %3100
    %v3102 = vsel %vm2124, %v3091, %v3093
    %v3103 = vsel %vm2124, %v3093, %v3095
    %v3104 = vsel %vm2124, %v3097, %v3099
    %v3105 = vsel %vm2124, %v3099, %v3101
    %v3110 = vadd.f32 %v3044, %v3102
    %v3111 = vadd.f32 %v3045, %v3103
    %v3112 = vadd.f32 %v3046, %v3104
    %v3113 = vadd.f32 %v3047, %v3105
    %s3114 = sld [smem:[#allocation7 + $0x24]]
    %v3115 = vstv %s3114
    %v3116 = vmul.f32 %v582, %v3115
    %v3117 = vmul.f32 %v574, %v3115
    %v3118 = vmul.f32 %v584, %v3115
    %v3119 = vmul.f32 %v583, %v3115
    %v3120 = vmul.f32 %v575, %v3115
    %v3121 = vmul.f32 %v585, %v3115
    %s3122 = sld [smem:[#allocation7 + $0xa4]]
    %v3123 = vstv %s3122
    %v3124 = vmul.f32 %v606, %v3123
    %v3125 = vmul.f32 %v598, %v3123
    %v3126 = vmul.f32 %v608, %v3123
    %v3127 = vmul.f32 %v607, %v3123
    %v3128 = vmul.f32 %v599, %v3123
    %v3129 = vmul.f32 %v609, %v3123
    %v3130 = vadd.f32 %v3116, %v3124
    %v3131 = vadd.f32 %v3117, %v3125
    %v3132 = vadd.f32 %v3118, %v3126
    %v3133 = vadd.f32 %v3119, %v3127
    %v3134 = vadd.f32 %v3120, %v3128
    %v3135 = vadd.f32 %v3121, %v3129
    %3136 = vrot.lane.b32.xlu0 %v655, 81
    %v3137 = vpop.permute.xlu0 %3136
    %3138 = vrot.lane.b32.xlu0 %v656, 81
    %v3139 = vpop.permute.xlu0 %3138
    %vm3140 = vcmask 662528
    %v3141 = vsel %vm3140, %v3137, %v3139
    %v3145 = vmul.f32 %v3130, %v3137
    %v3146 = vmul.f32 %v3131, %v3141
    %v3147 = vmul.f32 %v3132, %v3139
    %v3148 = vmul.f32 %v3133, %v3137
    %v3149 = vmul.f32 %v3134, %v3141
    %v3150 = vmul.f32 %v3135, %v3139
    %3157 = vrot.lane.b32.xlu0 %v3145, 47
    %v3158 = vpop.permute.xlu0 %3157
    %3159 = vrot.lane.b32.xlu0 %v3146, 47
    %v3160 = vpop.permute.xlu0 %3159
    %3161 = vrot.lane.b32.xlu0 %v3147, 47
    %v3162 = vpop.permute.xlu0 %3161
    %3163 = vrot.lane.b32.xlu0 %v3148, 47
    %v3164 = vpop.permute.xlu0 %3163
    %3165 = vrot.lane.b32.xlu0 %v3149, 47
    %v3166 = vpop.permute.xlu0 %3165
    %3167 = vrot.lane.b32.xlu0 %v3150, 47
    %v3168 = vpop.permute.xlu0 %3167
    %vm3169 = vcmask 384000
    %v3170 = vsel %vm3169, %v3158, %v3160
    %v3171 = vsel %vm3169, %v3160, %v3162
    %v3172 = vsel %vm3169, %v3164, %v3166
    %v3173 = vsel %vm3169, %v3166, %v3168
    %v3178 = vadd.f32 %v3110, %v3170
    %v3179 = vadd.f32 %v3111, %v3171
    %v3180 = vadd.f32 %v3112, %v3172
    %v3181 = vadd.f32 %v3113, %v3173
    %s3182 = sld [smem:[#allocation7 + $0x25]]
    %v3183 = vstv %s3182
    %v3184 = vmul.f32 %v582, %v3183
    %v3185 = vmul.f32 %v574, %v3183
    %v3186 = vmul.f32 %v584, %v3183
    %v3187 = vmul.f32 %v583, %v3183
    %v3188 = vmul.f32 %v575, %v3183
    %v3189 = vmul.f32 %v585, %v3183
    %s3190 = sld [smem:[#allocation7 + $0xa5]]
    %v3191 = vstv %s3190
    %v3192 = vmul.f32 %v606, %v3191
    %v3193 = vmul.f32 %v598, %v3191
    %v3194 = vmul.f32 %v608, %v3191
    %v3195 = vmul.f32 %v607, %v3191
    %v3196 = vmul.f32 %v599, %v3191
    %v3197 = vmul.f32 %v609, %v3191
    %v3198 = vadd.f32 %v3184, %v3192
    %v3199 = vadd.f32 %v3185, %v3193
    %v3200 = vadd.f32 %v3186, %v3194
    %v3201 = vadd.f32 %v3187, %v3195
    %v3202 = vadd.f32 %v3188, %v3196
    %v3203 = vadd.f32 %v3189, %v3197
    %3204 = vrot.lane.b32.xlu0 %v665, 82
    %v3205 = vpop.permute.xlu0 %3204
    %3206 = vrot.lane.b32.xlu0 %v666, 82
    %v3207 = vpop.permute.xlu0 %3206
    %vm3208 = vcmask 670720
    %v3209 = vsel %vm3208, %v3205, %v3207
    %v3213 = vmul.f32 %v3198, %v3205
    %v3214 = vmul.f32 %v3199, %v3209
    %v3215 = vmul.f32 %v3200, %v3207
    %v3216 = vmul.f32 %v3201, %v3205
    %v3217 = vmul.f32 %v3202, %v3209
    %v3218 = vmul.f32 %v3203, %v3207
    %3225 = vrot.lane.b32.xlu0 %v3213, 46
    %v3226 = vpop.permute.xlu0 %3225
    %3227 = vrot.lane.b32.xlu0 %v3214, 46
    %v3228 = vpop.permute.xlu0 %3227
    %3229 = vrot.lane.b32.xlu0 %v3215, 46
    %v3230 = vpop.permute.xlu0 %3229
    %3231 = vrot.lane.b32.xlu0 %v3216, 46
    %v3232 = vpop.permute.xlu0 %3231
    %3233 = vrot.lane.b32.xlu0 %v3217, 46
    %v3234 = vpop.permute.xlu0 %3233
    %3235 = vrot.lane.b32.xlu0 %v3218, 46
    %v3236 = vpop.permute.xlu0 %3235
    %vm3237 = vcmask 375808
    %v3238 = vsel %vm3237, %v3226, %v3228
    %v3239 = vsel %vm3237, %v3228, %v3230
    %v3240 = vsel %vm3237, %v3232, %v3234
    %v3241 = vsel %vm3237, %v3234, %v3236
    %v3246 = vadd.f32 %v3178, %v3238
    %v3247 = vadd.f32 %v3179, %v3239
    %v3248 = vadd.f32 %v3180, %v3240
    %v3249 = vadd.f32 %v3181, %v3241
    %s3250 = sld [smem:[#allocation7 + $0x26]]
    %v3251 = vstv %s3250
    %v3252 = vmul.f32 %v582, %v3251
    %v3253 = vmul.f32 %v574, %v3251
    %v3254 = vmul.f32 %v584, %v3251
    %v3255 = vmul.f32 %v583, %v3251
    %v3256 = vmul.f32 %v575, %v3251
    %v3257 = vmul.f32 %v585, %v3251
    %s3258 = sld [smem:[#allocation7 + $0xa6]]
    %v3259 = vstv %s3258
    %v3260 = vmul.f32 %v606, %v3259
    %v3261 = vmul.f32 %v598, %v3259
    %v3262 = vmul.f32 %v608, %v3259
    %v3263 = vmul.f32 %v607, %v3259
    %v3264 = vmul.f32 %v599, %v3259
    %v3265 = vmul.f32 %v609, %v3259
    %v3266 = vadd.f32 %v3252, %v3260
    %v3267 = vadd.f32 %v3253, %v3261
    %v3268 = vadd.f32 %v3254, %v3262
    %v3269 = vadd.f32 %v3255, %v3263
    %v3270 = vadd.f32 %v3256, %v3264
    %v3271 = vadd.f32 %v3257, %v3265
    %3272 = vrot.lane.b32.xlu0 %v673, 83
    %v3273 = vpop.permute.xlu0 %3272
    %3274 = vrot.lane.b32.xlu0 %v674, 83
    %v3275 = vpop.permute.xlu0 %3274
    %vm3276 = vcmask 678912
    %v3277 = vsel %vm3276, %v3273, %v3275
    %v3281 = vmul.f32 %v3266, %v3273
    %v3282 = vmul.f32 %v3267, %v3277
    %v3283 = vmul.f32 %v3268, %v3275
    %v3284 = vmul.f32 %v3269, %v3273
    %v3285 = vmul.f32 %v3270, %v3277
    %v3286 = vmul.f32 %v3271, %v3275
    %3293 = vrot.lane.b32.xlu0 %v3281, 45
    %v3294 = vpop.permute.xlu0 %3293
    %3295 = vrot.lane.b32.xlu0 %v3282, 45
    %v3296 = vpop.permute.xlu0 %3295
    %3297 = vrot.lane.b32.xlu0 %v3283, 45
    %v3298 = vpop.permute.xlu0 %3297
    %3299 = vrot.lane.b32.xlu0 %v3284, 45
    %v3300 = vpop.permute.xlu0 %3299
    %3301 = vrot.lane.b32.xlu0 %v3285, 45
    %v3302 = vpop.permute.xlu0 %3301
    %3303 = vrot.lane.b32.xlu0 %v3286, 45
    %v3304 = vpop.permute.xlu0 %3303
    %vm3305 = vcmask 367616
    %v3306 = vsel %vm3305, %v3294, %v3296
    %v3307 = vsel %vm3305, %v3296, %v3298
    %v3308 = vsel %vm3305, %v3300, %v3302
    %v3309 = vsel %vm3305, %v3302, %v3304
    %v3314 = vadd.f32 %v3246, %v3306
    %v3315 = vadd.f32 %v3247, %v3307
    %v3316 = vadd.f32 %v3248, %v3308
    %v3317 = vadd.f32 %v3249, %v3309
    %s3318 = sld [smem:[#allocation7 + $0x27]]
    %v3319 = vstv %s3318
    %v3320 = vmul.f32 %v582, %v3319
    %v3321 = vmul.f32 %v574, %v3319
    %v3322 = vmul.f32 %v584, %v3319
    %v3323 = vmul.f32 %v583, %v3319
    %v3324 = vmul.f32 %v575, %v3319
    %v3325 = vmul.f32 %v585, %v3319
    %s3326 = sld [smem:[#allocation7 + $0xa7]]
    %v3327 = vstv %s3326
    %v3328 = vmul.f32 %v606, %v3327
    %v3329 = vmul.f32 %v598, %v3327
    %v3330 = vmul.f32 %v608, %v3327
    %v3331 = vmul.f32 %v607, %v3327
    %v3332 = vmul.f32 %v599, %v3327
    %v3333 = vmul.f32 %v609, %v3327
    %v3334 = vadd.f32 %v3320, %v3328
    %v3335 = vadd.f32 %v3321, %v3329
    %v3336 = vadd.f32 %v3322, %v3330
    %v3337 = vadd.f32 %v3323, %v3331
    %v3338 = vadd.f32 %v3324, %v3332
    %v3339 = vadd.f32 %v3325, %v3333
    %3340 = vrot.lane.b32.xlu0 %v683, 84
    %v3341 = vpop.permute.xlu0 %3340
    %3342 = vrot.lane.b32.xlu0 %v684, 84
    %v3343 = vpop.permute.xlu0 %3342
    %vm3344 = vcmask 687104
    %v3345 = vsel %vm3344, %v3341, %v3343
    %v3349 = vmul.f32 %v3334, %v3341
    %v3350 = vmul.f32 %v3335, %v3345
    %v3351 = vmul.f32 %v3336, %v3343
    %v3352 = vmul.f32 %v3337, %v3341
    %v3353 = vmul.f32 %v3338, %v3345
    %v3354 = vmul.f32 %v3339, %v3343
    %3361 = vrot.lane.b32.xlu0 %v3349, 44
    %v3362 = vpop.permute.xlu0 %3361
    %3363 = vrot.lane.b32.xlu0 %v3350, 44
    %v3364 = vpop.permute.xlu0 %3363
    %3365 = vrot.lane.b32.xlu0 %v3351, 44
    %v3366 = vpop.permute.xlu0 %3365
    %3367 = vrot.lane.b32.xlu0 %v3352, 44
    %v3368 = vpop.permute.xlu0 %3367
    %3369 = vrot.lane.b32.xlu0 %v3353, 44
    %v3370 = vpop.permute.xlu0 %3369
    %3371 = vrot.lane.b32.xlu0 %v3354, 44
    %v3372 = vpop.permute.xlu0 %3371
    %vm3373 = vcmask 359424
    %v3374 = vsel %vm3373, %v3362, %v3364
    %v3375 = vsel %vm3373, %v3364, %v3366
    %v3376 = vsel %vm3373, %v3368, %v3370
    %v3377 = vsel %vm3373, %v3370, %v3372
    %v3382 = vadd.f32 %v3314, %v3374
    %v3383 = vadd.f32 %v3315, %v3375
    %v3384 = vadd.f32 %v3316, %v3376
    %v3385 = vadd.f32 %v3317, %v3377
    %s3386 = sld [smem:[#allocation7 + $0x28]]
    %v3387 = vstv %s3386
    %v3388 = vmul.f32 %v582, %v3387
    %v3389 = vmul.f32 %v574, %v3387
    %v3390 = vmul.f32 %v584, %v3387
    %v3391 = vmul.f32 %v583, %v3387
    %v3392 = vmul.f32 %v575, %v3387
    %v3393 = vmul.f32 %v585, %v3387
    %s3394 = sld [smem:[#allocation7 + $0xa8]]
    %v3395 = vstv %s3394
    %v3396 = vmul.f32 %v606, %v3395
    %v3397 = vmul.f32 %v598, %v3395
    %v3398 = vmul.f32 %v608, %v3395
    %v3399 = vmul.f32 %v607, %v3395
    %v3400 = vmul.f32 %v599, %v3395
    %v3401 = vmul.f32 %v609, %v3395
    %v3402 = vadd.f32 %v3388, %v3396
    %v3403 = vadd.f32 %v3389, %v3397
    %v3404 = vadd.f32 %v3390, %v3398
    %v3405 = vadd.f32 %v3391, %v3399
    %v3406 = vadd.f32 %v3392, %v3400
    %v3407 = vadd.f32 %v3393, %v3401
    %3408 = vrot.lane.b32.xlu0 %v693, 85
    %v3409 = vpop.permute.xlu0 %3408
    %3410 = vrot.lane.b32.xlu0 %v694, 85
    %v3411 = vpop.permute.xlu0 %3410
    %vm3412 = vcmask 695296
    %v3413 = vsel %vm3412, %v3409, %v3411
    %v3417 = vmul.f32 %v3402, %v3409
    %v3418 = vmul.f32 %v3403, %v3413
    %v3419 = vmul.f32 %v3404, %v3411
    %v3420 = vmul.f32 %v3405, %v3409
    %v3421 = vmul.f32 %v3406, %v3413
    %v3422 = vmul.f32 %v3407, %v3411
    %3429 = vrot.lane.b32.xlu0 %v3417, 43
    %v3430 = vpop.permute.xlu0 %3429
    %3431 = vrot.lane.b32.xlu0 %v3418, 43
    %v3432 = vpop.permute.xlu0 %3431
    %3433 = vrot.lane.b32.xlu0 %v3419, 43
    %v3434 = vpop.permute.xlu0 %3433
    %3435 = vrot.lane.b32.xlu0 %v3420, 43
    %v3436 = vpop.permute.xlu0 %3435
    %3437 = vrot.lane.b32.xlu0 %v3421, 43
    %v3438 = vpop.permute.xlu0 %3437
    %3439 = vrot.lane.b32.xlu0 %v3422, 43
    %v3440 = vpop.permute.xlu0 %3439
    %vm3441 = vcmask 351232
    %v3442 = vsel %vm3441, %v3430, %v3432
    %v3443 = vsel %vm3441, %v3432, %v3434
    %v3444 = vsel %vm3441, %v3436, %v3438
    %v3445 = vsel %vm3441, %v3438, %v3440
    %v3450 = vadd.f32 %v3382, %v3442
    %v3451 = vadd.f32 %v3383, %v3443
    %v3452 = vadd.f32 %v3384, %v3444
    %v3453 = vadd.f32 %v3385, %v3445
    %s3454 = sld [smem:[#allocation7 + $0x29]]
    %v3455 = vstv %s3454
    %v3456 = vmul.f32 %v582, %v3455
    %v3457 = vmul.f32 %v574, %v3455
    %v3458 = vmul.f32 %v584, %v3455
    %v3459 = vmul.f32 %v583, %v3455
    %v3460 = vmul.f32 %v575, %v3455
    %v3461 = vmul.f32 %v585, %v3455
    %s3462 = sld [smem:[#allocation7 + $0xa9]]
    %v3463 = vstv %s3462
    %v3464 = vmul.f32 %v606, %v3463
    %v3465 = vmul.f32 %v598, %v3463
    %v3466 = vmul.f32 %v608, %v3463
    %v3467 = vmul.f32 %v607, %v3463
    %v3468 = vmul.f32 %v599, %v3463
    %v3469 = vmul.f32 %v609, %v3463
    %v3470 = vadd.f32 %v3456, %v3464
    %v3471 = vadd.f32 %v3457, %v3465
    %v3472 = vadd.f32 %v3458, %v3466
    %v3473 = vadd.f32 %v3459, %v3467
    %v3474 = vadd.f32 %v3460, %v3468
    %v3475 = vadd.f32 %v3461, %v3469
    %3476 = vrot.lane.b32.xlu0 %v703, 86
    %v3477 = vpop.permute.xlu0 %3476
    %3478 = vrot.lane.b32.xlu0 %v704, 86
    %v3479 = vpop.permute.xlu0 %3478
    %vm3480 = vcmask 703488
    %v3481 = vsel %vm3480, %v3477, %v3479
    %v3485 = vmul.f32 %v3470, %v3477
    %v3486 = vmul.f32 %v3471, %v3481
    %v3487 = vmul.f32 %v3472, %v3479
    %v3488 = vmul.f32 %v3473, %v3477
    %v3489 = vmul.f32 %v3474, %v3481
    %v3490 = vmul.f32 %v3475, %v3479
    %3497 = vrot.lane.b32.xlu0 %v3485, 42
    %v3498 = vpop.permute.xlu0 %3497
    %3499 = vrot.lane.b32.xlu0 %v3486, 42
    %v3500 = vpop.permute.xlu0 %3499
    %3501 = vrot.lane.b32.xlu0 %v3487, 42
    %v3502 = vpop.permute.xlu0 %3501
    %3503 = vrot.lane.b32.xlu0 %v3488, 42
    %v3504 = vpop.permute.xlu0 %3503
    %3505 = vrot.lane.b32.xlu0 %v3489, 42
    %v3506 = vpop.permute.xlu0 %3505
    %3507 = vrot.lane.b32.xlu0 %v3490, 42
    %v3508 = vpop.permute.xlu0 %3507
    %vm3509 = vcmask 343040
    %v3510 = vsel %vm3509, %v3498, %v3500
    %v3511 = vsel %vm3509, %v3500, %v3502
    %v3512 = vsel %vm3509, %v3504, %v3506
    %v3513 = vsel %vm3509, %v3506, %v3508
    %v3518 = vadd.f32 %v3450, %v3510
    %v3519 = vadd.f32 %v3451, %v3511
    %v3520 = vadd.f32 %v3452, %v3512
    %v3521 = vadd.f32 %v3453, %v3513
    %s3522 = sld [smem:[#allocation7 + $0x2a]]
    %v3523 = vstv %s3522
    %v3524 = vmul.f32 %v582, %v3523
    %v3525 = vmul.f32 %v574, %v3523
    %v3526 = vmul.f32 %v584, %v3523
    %v3527 = vmul.f32 %v583, %v3523
    %v3528 = vmul.f32 %v575, %v3523
    %v3529 = vmul.f32 %v585, %v3523
    %s3530 = sld [smem:[#allocation7 + $0xaa]]
    %v3531 = vstv %s3530
    %v3532 = vmul.f32 %v606, %v3531
    %v3533 = vmul.f32 %v598, %v3531
    %v3534 = vmul.f32 %v608, %v3531
    %v3535 = vmul.f32 %v607, %v3531
    %v3536 = vmul.f32 %v599, %v3531
    %v3537 = vmul.f32 %v609, %v3531
    %v3538 = vadd.f32 %v3524, %v3532
    %v3539 = vadd.f32 %v3525, %v3533
    %v3540 = vadd.f32 %v3526, %v3534
    %v3541 = vadd.f32 %v3527, %v3535
    %v3542 = vadd.f32 %v3528, %v3536
    %v3543 = vadd.f32 %v3529, %v3537
    %3544 = vrot.lane.b32.xlu0 %v645, 96
    %v3545 = vpop.permute.xlu0 %3544
    %3546 = vrot.lane.b32.xlu0 %v646, 96
    %v3547 = vpop.permute.xlu0 %3546
    %v3548 = vsel %vm1677, %v3545, %v3547
    %v3552 = vmul.f32 %v3538, %v3545
    %v3553 = vmul.f32 %v3539, %v3548
    %v3554 = vmul.f32 %v3540, %v3547
    %v3555 = vmul.f32 %v3541, %v3545
    %v3556 = vmul.f32 %v3542, %v3548
    %v3557 = vmul.f32 %v3543, %v3547
    %3564 = vrot.lane.b32.xlu0 %v3552, 32
    %v3565 = vpop.permute.xlu0 %3564
    %3566 = vrot.lane.b32.xlu0 %v3553, 32
    %v3567 = vpop.permute.xlu0 %3566
    %3568 = vrot.lane.b32.xlu0 %v3554, 32
    %v3569 = vpop.permute.xlu0 %3568
    %3570 = vrot.lane.b32.xlu0 %v3555, 32
    %v3571 = vpop.permute.xlu0 %3570
    %3572 = vrot.lane.b32.xlu0 %v3556, 32
    %v3573 = vpop.permute.xlu0 %3572
    %3574 = vrot.lane.b32.xlu0 %v3557, 32
    %v3575 = vpop.permute.xlu0 %3574
    %v3576 = vsel %vm1648, %v3565, %v3567
    %v3577 = vsel %vm1648, %v3567, %v3569
    %v3578 = vsel %vm1648, %v3571, %v3573
    %v3579 = vsel %vm1648, %v3573, %v3575
    %v3584 = vadd.f32 %v3518, %v3576
    %v3585 = vadd.f32 %v3519, %v3577
    %v3586 = vadd.f32 %v3520, %v3578
    %v3587 = vadd.f32 %v3521, %v3579
    %s3588 = sld [smem:[#allocation7 + $0x2b]]
    %v3589 = vstv %s3588
    %v3590 = vmul.f32 %v582, %v3589
    %v3591 = vmul.f32 %v574, %v3589
    %v3592 = vmul.f32 %v584, %v3589
    %v3593 = vmul.f32 %v583, %v3589
    %v3594 = vmul.f32 %v575, %v3589
    %v3595 = vmul.f32 %v585, %v3589
    %s3596 = sld [smem:[#allocation7 + $0xab]]
    %v3597 = vstv %s3596
    %v3598 = vmul.f32 %v606, %v3597
    %v3599 = vmul.f32 %v598, %v3597
    %v3600 = vmul.f32 %v608, %v3597
    %v3601 = vmul.f32 %v607, %v3597
    %v3602 = vmul.f32 %v599, %v3597
    %v3603 = vmul.f32 %v609, %v3597
    %v3604 = vadd.f32 %v3590, %v3598
    %v3605 = vadd.f32 %v3591, %v3599
    %v3606 = vadd.f32 %v3592, %v3600
    %v3607 = vadd.f32 %v3593, %v3601
    %v3608 = vadd.f32 %v3594, %v3602
    %v3609 = vadd.f32 %v3595, %v3603
    %3610 = vrot.lane.b32.xlu0 %v655, 97
    %v3611 = vpop.permute.xlu0 %3610
    %3612 = vrot.lane.b32.xlu0 %v656, 97
    %v3613 = vpop.permute.xlu0 %3612
    %vm3614 = vcmask 793600
    %v3615 = vsel %vm3614, %v3611, %v3613
    %v3619 = vmul.f32 %v3604, %v3611
    %v3620 = vmul.f32 %v3605, %v3615
    %v3621 = vmul.f32 %v3606, %v3613
    %v3622 = vmul.f32 %v3607, %v3611
    %v3623 = vmul.f32 %v3608, %v3615
    %v3624 = vmul.f32 %v3609, %v3613
    %3631 = vrot.lane.b32.xlu0 %v3619, 31
    %v3632 = vpop.permute.xlu0 %3631
    %3633 = vrot.lane.b32.xlu0 %v3620, 31
    %v3634 = vpop.permute.xlu0 %3633
    %3635 = vrot.lane.b32.xlu0 %v3621, 31
    %v3636 = vpop.permute.xlu0 %3635
    %3637 = vrot.lane.b32.xlu0 %v3622, 31
    %v3638 = vpop.permute.xlu0 %3637
    %3639 = vrot.lane.b32.xlu0 %v3623, 31
    %v3640 = vpop.permute.xlu0 %3639
    %3641 = vrot.lane.b32.xlu0 %v3624, 31
    %v3642 = vpop.permute.xlu0 %3641
    %vm3643 = vcmask 252928
    %v3644 = vsel %vm3643, %v3632, %v3634
    %v3645 = vsel %vm3643, %v3634, %v3636
    %v3646 = vsel %vm3643, %v3638, %v3640
    %v3647 = vsel %vm3643, %v3640, %v3642
    %v3652 = vadd.f32 %v3584, %v3644
    %v3653 = vadd.f32 %v3585, %v3645
    %v3654 = vadd.f32 %v3586, %v3646
    %v3655 = vadd.f32 %v3587, %v3647
    %s3656 = sld [smem:[#allocation7 + $0x2c]]
    %v3657 = vstv %s3656
    %v3658 = vmul.f32 %v582, %v3657
    %v3659 = vmul.f32 %v574, %v3657
    %v3660 = vmul.f32 %v584, %v3657
    %v3661 = vmul.f32 %v583, %v3657
    %v3662 = vmul.f32 %v575, %v3657
    %v3663 = vmul.f32 %v585, %v3657
    %s3664 = sld [smem:[#allocation7 + $0xac]]
    %v3665 = vstv %s3664
    %v3666 = vmul.f32 %v606, %v3665
    %v3667 = vmul.f32 %v598, %v3665
    %v3668 = vmul.f32 %v608, %v3665
    %v3669 = vmul.f32 %v607, %v3665
    %v3670 = vmul.f32 %v599, %v3665
    %v3671 = vmul.f32 %v609, %v3665
    %v3672 = vadd.f32 %v3658, %v3666
    %v3673 = vadd.f32 %v3659, %v3667
    %v3674 = vadd.f32 %v3660, %v3668
    %v3675 = vadd.f32 %v3661, %v3669
    %v3676 = vadd.f32 %v3662, %v3670
    %v3677 = vadd.f32 %v3663, %v3671
    %3678 = vrot.lane.b32.xlu0 %v665, 98
    %v3679 = vpop.permute.xlu0 %3678
    %3680 = vrot.lane.b32.xlu0 %v666, 98
    %v3681 = vpop.permute.xlu0 %3680
    %vm3682 = vcmask 801792
    %v3683 = vsel %vm3682, %v3679, %v3681
    %v3687 = vmul.f32 %v3672, %v3679
    %v3688 = vmul.f32 %v3673, %v3683
    %v3689 = vmul.f32 %v3674, %v3681
    %v3690 = vmul.f32 %v3675, %v3679
    %v3691 = vmul.f32 %v3676, %v3683
    %v3692 = vmul.f32 %v3677, %v3681
    %3699 = vrot.lane.b32.xlu0 %v3687, 30
    %v3700 = vpop.permute.xlu0 %3699
    %3701 = vrot.lane.b32.xlu0 %v3688, 30
    %v3702 = vpop.permute.xlu0 %3701
    %3703 = vrot.lane.b32.xlu0 %v3689, 30
    %v3704 = vpop.permute.xlu0 %3703
    %3705 = vrot.lane.b32.xlu0 %v3690, 30
    %v3706 = vpop.permute.xlu0 %3705
    %3707 = vrot.lane.b32.xlu0 %v3691, 30
    %v3708 = vpop.permute.xlu0 %3707
    %3709 = vrot.lane.b32.xlu0 %v3692, 30
    %v3710 = vpop.permute.xlu0 %3709
    %vm3711 = vcmask 244736
    %v3712 = vsel %vm3711, %v3700, %v3702
    %v3713 = vsel %vm3711, %v3702, %v3704
    %v3714 = vsel %vm3711, %v3706, %v3708
    %v3715 = vsel %vm3711, %v3708, %v3710
    %v3720 = vadd.f32 %v3652, %v3712
    %v3721 = vadd.f32 %v3653, %v3713
    %v3722 = vadd.f32 %v3654, %v3714
    %v3723 = vadd.f32 %v3655, %v3715
    %s3724 = sld [smem:[#allocation7 + $0x2d]]
    %v3725 = vstv %s3724
    %v3726 = vmul.f32 %v582, %v3725
    %v3727 = vmul.f32 %v574, %v3725
    %v3728 = vmul.f32 %v584, %v3725
    %v3729 = vmul.f32 %v583, %v3725
    %v3730 = vmul.f32 %v575, %v3725
    %v3731 = vmul.f32 %v585, %v3725
    %s3732 = sld [smem:[#allocation7 + $0xad]]
    %v3733 = vstv %s3732
    %v3734 = vmul.f32 %v606, %v3733
    %v3735 = vmul.f32 %v598, %v3733
    %v3736 = vmul.f32 %v608, %v3733
    %v3737 = vmul.f32 %v607, %v3733
    %v3738 = vmul.f32 %v599, %v3733
    %v3739 = vmul.f32 %v609, %v3733
    %v3740 = vadd.f32 %v3726, %v3734
    %v3741 = vadd.f32 %v3727, %v3735
    %v3742 = vadd.f32 %v3728, %v3736
    %v3743 = vadd.f32 %v3729, %v3737
    %v3744 = vadd.f32 %v3730, %v3738
    %v3745 = vadd.f32 %v3731, %v3739
    %3746 = vrot.lane.b32.xlu0 %v673, 99
    %v3747 = vpop.permute.xlu0 %3746
    %3748 = vrot.lane.b32.xlu0 %v674, 99
    %v3749 = vpop.permute.xlu0 %3748
    %vm3750 = vcmask 809984
    %v3751 = vsel %vm3750, %v3747, %v3749
    %v3755 = vmul.f32 %v3740, %v3747
    %v3756 = vmul.f32 %v3741, %v3751
    %v3757 = vmul.f32 %v3742, %v3749
    %v3758 = vmul.f32 %v3743, %v3747
    %v3759 = vmul.f32 %v3744, %v3751
    %v3760 = vmul.f32 %v3745, %v3749
    %3767 = vrot.lane.b32.xlu0 %v3755, 29
    %v3768 = vpop.permute.xlu0 %3767
    %3769 = vrot.lane.b32.xlu0 %v3756, 29
    %v3770 = vpop.permute.xlu0 %3769
    %3771 = vrot.lane.b32.xlu0 %v3757, 29
    %v3772 = vpop.permute.xlu0 %3771
    %3773 = vrot.lane.b32.xlu0 %v3758, 29
    %v3774 = vpop.permute.xlu0 %3773
    %3775 = vrot.lane.b32.xlu0 %v3759, 29
    %v3776 = vpop.permute.xlu0 %3775
    %3777 = vrot.lane.b32.xlu0 %v3760, 29
    %v3778 = vpop.permute.xlu0 %3777
    %vm3779 = vcmask 236544
    %v3780 = vsel %vm3779, %v3768, %v3770
    %v3781 = vsel %vm3779, %v3770, %v3772
    %v3782 = vsel %vm3779, %v3774, %v3776
    %v3783 = vsel %vm3779, %v3776, %v3778
    %v3788 = vadd.f32 %v3720, %v3780
    %v3789 = vadd.f32 %v3721, %v3781
    %v3790 = vadd.f32 %v3722, %v3782
    %v3791 = vadd.f32 %v3723, %v3783
    %s3792 = sld [smem:[#allocation7 + $0x2e]]
    %v3793 = vstv %s3792
    %v3794 = vmul.f32 %v582, %v3793
    %v3795 = vmul.f32 %v574, %v3793
    %v3796 = vmul.f32 %v584, %v3793
    %v3797 = vmul.f32 %v583, %v3793
    %v3798 = vmul.f32 %v575, %v3793
    %v3799 = vmul.f32 %v585, %v3793
    %s3800 = sld [smem:[#allocation7 + $0xae]]
    %v3801 = vstv %s3800
    %v3802 = vmul.f32 %v606, %v3801
    %v3803 = vmul.f32 %v598, %v3801
    %v3804 = vmul.f32 %v608, %v3801
    %v3805 = vmul.f32 %v607, %v3801
    %v3806 = vmul.f32 %v599, %v3801
    %v3807 = vmul.f32 %v609, %v3801
    %v3808 = vadd.f32 %v3794, %v3802
    %v3809 = vadd.f32 %v3795, %v3803
    %v3810 = vadd.f32 %v3796, %v3804
    %v3811 = vadd.f32 %v3797, %v3805
    %v3812 = vadd.f32 %v3798, %v3806
    %v3813 = vadd.f32 %v3799, %v3807
    %3814 = vrot.lane.b32.xlu0 %v683, 100
    %v3815 = vpop.permute.xlu0 %3814
    %3816 = vrot.lane.b32.xlu0 %v684, 100
    %v3817 = vpop.permute.xlu0 %3816
    %vm3818 = vcmask 818176
    %v3819 = vsel %vm3818, %v3815, %v3817
    %v3823 = vmul.f32 %v3808, %v3815
    %v3824 = vmul.f32 %v3809, %v3819
    %v3825 = vmul.f32 %v3810, %v3817
    %v3826 = vmul.f32 %v3811, %v3815
    %v3827 = vmul.f32 %v3812, %v3819
    %v3828 = vmul.f32 %v3813, %v3817
    %3835 = vrot.lane.b32.xlu0 %v3823, 28
    %v3836 = vpop.permute.xlu0 %3835
    %3837 = vrot.lane.b32.xlu0 %v3824, 28
    %v3838 = vpop.permute.xlu0 %3837
    %3839 = vrot.lane.b32.xlu0 %v3825, 28
    %v3840 = vpop.permute.xlu0 %3839
    %3841 = vrot.lane.b32.xlu0 %v3826, 28
    %v3842 = vpop.permute.xlu0 %3841
    %3843 = vrot.lane.b32.xlu0 %v3827, 28
    %v3844 = vpop.permute.xlu0 %3843
    %3845 = vrot.lane.b32.xlu0 %v3828, 28
    %v3846 = vpop.permute.xlu0 %3845
    %vm3847 = vcmask 228352
    %v3848 = vsel %vm3847, %v3836, %v3838
    %v3849 = vsel %vm3847, %v3838, %v3840
    %v3850 = vsel %vm3847, %v3842, %v3844
    %v3851 = vsel %vm3847, %v3844, %v3846
    %v3856 = vadd.f32 %v3788, %v3848
    %v3857 = vadd.f32 %v3789, %v3849
    %v3858 = vadd.f32 %v3790, %v3850
    %v3859 = vadd.f32 %v3791, %v3851
    %s3860 = sld [smem:[#allocation7 + $0x2f]]
    %v3861 = vstv %s3860
    %v3862 = vmul.f32 %v582, %v3861
    %v3863 = vmul.f32 %v574, %v3861
    %v3864 = vmul.f32 %v584, %v3861
    %v3865 = vmul.f32 %v583, %v3861
    %v3866 = vmul.f32 %v575, %v3861
    %v3867 = vmul.f32 %v585, %v3861
    %s3868 = sld [smem:[#allocation7 + $0xaf]]
    %v3869 = vstv %s3868
    %v3870 = vmul.f32 %v606, %v3869
    %v3871 = vmul.f32 %v598, %v3869
    %v3872 = vmul.f32 %v608, %v3869
    %v3873 = vmul.f32 %v607, %v3869
    %v3874 = vmul.f32 %v599, %v3869
    %v3875 = vmul.f32 %v609, %v3869
    %v3876 = vadd.f32 %v3862, %v3870
    %v3877 = vadd.f32 %v3863, %v3871
    %v3878 = vadd.f32 %v3864, %v3872
    %v3879 = vadd.f32 %v3865, %v3873
    %v3880 = vadd.f32 %v3866, %v3874
    %v3881 = vadd.f32 %v3867, %v3875
    %3882 = vrot.lane.b32.xlu0 %v693, 101
    %v3883 = vpop.permute.xlu0 %3882
    %3884 = vrot.lane.b32.xlu0 %v694, 101
    %v3885 = vpop.permute.xlu0 %3884
    %vm3886 = vcmask 826368
    %v3887 = vsel %vm3886, %v3883, %v3885
    %v3891 = vmul.f32 %v3876, %v3883
    %v3892 = vmul.f32 %v3877, %v3887
    %v3893 = vmul.f32 %v3878, %v3885
    %v3894 = vmul.f32 %v3879, %v3883
    %v3895 = vmul.f32 %v3880, %v3887
    %v3896 = vmul.f32 %v3881, %v3885
    %3903 = vrot.lane.b32.xlu0 %v3891, 27
    %v3904 = vpop.permute.xlu0 %3903
    %3905 = vrot.lane.b32.xlu0 %v3892, 27
    %v3906 = vpop.permute.xlu0 %3905
    %3907 = vrot.lane.b32.xlu0 %v3893, 27
    %v3908 = vpop.permute.xlu0 %3907
    %3909 = vrot.lane.b32.xlu0 %v3894, 27
    %v3910 = vpop.permute.xlu0 %3909
    %3911 = vrot.lane.b32.xlu0 %v3895, 27
    %v3912 = vpop.permute.xlu0 %3911
    %3913 = vrot.lane.b32.xlu0 %v3896, 27
    %v3914 = vpop.permute.xlu0 %3913
    %vm3915 = vcmask 220160
    %v3916 = vsel %vm3915, %v3904, %v3906
    %v3917 = vsel %vm3915, %v3906, %v3908
    %v3918 = vsel %vm3915, %v3910, %v3912
    %v3919 = vsel %vm3915, %v3912, %v3914
    %v3924 = vadd.f32 %v3856, %v3916
    %v3925 = vadd.f32 %v3857, %v3917
    %v3926 = vadd.f32 %v3858, %v3918
    %v3927 = vadd.f32 %v3859, %v3919
    %s3928 = sld [smem:[#allocation7 + $0x30]]
    %v3929 = vstv %s3928
    %v3930 = vmul.f32 %v582, %v3929
    %v3931 = vmul.f32 %v574, %v3929
    %v3932 = vmul.f32 %v584, %v3929
    %v3933 = vmul.f32 %v583, %v3929
    %v3934 = vmul.f32 %v575, %v3929
    %v3935 = vmul.f32 %v585, %v3929
    %s3936 = sld [smem:[#allocation7 + $0xb0]]
    %v3937 = vstv %s3936
    %v3938 = vmul.f32 %v606, %v3937
    %v3939 = vmul.f32 %v598, %v3937
    %v3940 = vmul.f32 %v608, %v3937
    %v3941 = vmul.f32 %v607, %v3937
    %v3942 = vmul.f32 %v599, %v3937
    %v3943 = vmul.f32 %v609, %v3937
    %v3944 = vadd.f32 %v3930, %v3938
    %v3945 = vadd.f32 %v3931, %v3939
    %v3946 = vadd.f32 %v3932, %v3940
    %v3947 = vadd.f32 %v3933, %v3941
    %v3948 = vadd.f32 %v3934, %v3942
    %v3949 = vadd.f32 %v3935, %v3943
    %3950 = vrot.lane.b32.xlu0 %v703, 102
    %v3951 = vpop.permute.xlu0 %3950
    %3952 = vrot.lane.b32.xlu0 %v704, 102
    %v3953 = vpop.permute.xlu0 %3952
    %vm3954 = vcmask 834560
    %v3955 = vsel %vm3954, %v3951, %v3953
    %v3959 = vmul.f32 %v3944, %v3951
    %v3960 = vmul.f32 %v3945, %v3955
    %v3961 = vmul.f32 %v3946, %v3953
    %v3962 = vmul.f32 %v3947, %v3951
    %v3963 = vmul.f32 %v3948, %v3955
    %v3964 = vmul.f32 %v3949, %v3953
    %3971 = vrot.lane.b32.xlu0 %v3959, 26
    %v3972 = vpop.permute.xlu0 %3971
    %3973 = vrot.lane.b32.xlu0 %v3960, 26
    %v3974 = vpop.permute.xlu0 %3973
    %3975 = vrot.lane.b32.xlu0 %v3961, 26
    %v3976 = vpop.permute.xlu0 %3975
    %3977 = vrot.lane.b32.xlu0 %v3962, 26
    %v3978 = vpop.permute.xlu0 %3977
    %3979 = vrot.lane.b32.xlu0 %v3963, 26
    %v3980 = vpop.permute.xlu0 %3979
    %3981 = vrot.lane.b32.xlu0 %v3964, 26
    %v3982 = vpop.permute.xlu0 %3981
    %vm3983 = vcmask 211968
    %v3984 = vsel %vm3983, %v3972, %v3974
    %v3985 = vsel %vm3983, %v3974, %v3976
    %v3986 = vsel %vm3983, %v3978, %v3980
    %v3987 = vsel %vm3983, %v3980, %v3982
    %v3992 = vadd.f32 %v3924, %v3984
    %v3993 = vadd.f32 %v3925, %v3985
    %v3994 = vadd.f32 %v3926, %v3986
    %v3995 = vadd.f32 %v3927, %v3987
    %s3996 = sld [smem:[#allocation2]]
    %v3997 = vstv %s3996
    %v3998 = vadd.f32 %v3992, %v3997
    %v3999 = vadd.f32 %v3993, %v3997
    %v4000 = vadd.f32 %v3994, %v3997
    %v4001 = vadd.f32 %v3995, %v3997
    %v4002 = vsub.f32 0.0, %v3998
    %v4003 = vsub.f32 0.0, %v3999
    %v4004 = vsub.f32 0.0, %v4000
    %v4005 = vsub.f32 0.0, %v4001
    %v4006 = vmul.f32 %v4002, 1.442695
    %v4007 = vpow.pop %v4006
    %v4008 = vmul.f32 %v4003, 1.442695
    %v4009 = vpow.pop %v4008
    %v4010 = vmul.f32 %v4004, 1.442695
    %v4011 = vpow.pop %v4010
    %v4012 = vmul.f32 %v4005, 1.442695
    %v4013 = vpow.pop %v4012
    %v4014 = vadd.f32 %v4007, 1.0
    %v4015 = vadd.f32 %v4009, 1.0
    %v4016 = vadd.f32 %v4011, 1.0
    %v4017 = vadd.f32 %v4013, 1.0
    %v4018 = vrcp.pop %v4014
    %v4019 = vmul.f32 1.0, %v4018
    %v4020 = vrcp.pop %v4015
    %v4021 = vmul.f32 1.0, %v4020
    %v4022 = vrcp.pop %v4016
    %v4023 = vmul.f32 1.0, %v4022
    %v4024 = vrcp.pop %v4017
    %v4025 = vmul.f32 1.0, %v4024
    %v4026 = vlaneseq
    %v4027 = vshrl.u32 %v4026, 7
    %v4028 = vsub.s32 0, %v4027
    %v4029 = vrot.slane %v4019, %v4028
    %v4030 = vlaneseq
    %v4031 = vshrl.u32 %v4030, 7
    %v4032 = vsub.s32 0, %v4031
    %v4033 = vrot.slane %v4021, %v4032
    %v4034 = vlaneseq
    %v4035 = vshrl.u32 %v4034, 7
    %v4036 = vsub.s32 0, %v4035
    %v4037 = vrot.slane %v4023, %v4036
    %v4038 = vlaneseq
    %v4039 = vshrl.u32 %v4038, 7
    %v4040 = vsub.s32 0, %v4039
    %v4041 = vrot.slane %v4025, %v4040
    %v4042 = vmul.f32 %v468, %v4029
    %v4043 = vmul.f32 %v469, %v4033
    %v4044 = vmul.f32 %v470, %v4029
    %v4045 = vmul.f32 %v471, %v4033
    %v4046 = vmul.f32 %v472, %v4029
    %v4047 = vmul.f32 %v473, %v4033
    %v4048 = vmul.f32 %v474, %v4029
    %v4049 = vmul.f32 %v475, %v4033
    %v4050 = vmul.f32 %v476, %v4037
    %v4051 = vmul.f32 %v477, %v4041
    %v4052 = vmul.f32 %v478, %v4037
    %v4053 = vmul.f32 %v479, %v4041
    %v4054 = vmul.f32 %v480, %v4037
    %v4055 = vmul.f32 %v481, %v4041
    %v4056 = vmul.f32 %v482, %v4037
    %v4057 = vmul.f32 %v483, %v4041
    %4058 = vst [vmem:[#allocation8] sm:$0xff] %v4042
    %4059 = vst [vmem:[#allocation8 + $0x8] sm:$0xff] %v4043
    %4060 = vst [vmem:[#allocation8 + $0x10] sm:$0xff] %v4044
    %4061 = vst [vmem:[#allocation8 + $0x18] sm:$0xff] %v4045
    %4062 = vst [vmem:[#allocation8 + $0x20] sm:$0xff] %v4046
    %4063 = vst [vmem:[#allocation8 + $0x28] sm:$0xff] %v4047
    %4064 = vst [vmem:[#allocation8 + $0x30] sm:$0xff] %v4048
    %4065 = vst [vmem:[#allocation8 + $0x38] sm:$0xff] %v4049
    %4066 = vst [vmem:[#allocation8 + $0x40] sm:$0xff] %v4050
    %4067 = vst [vmem:[#allocation8 + $0x48] sm:$0xff] %v4051
    %4068 = vst [vmem:[#allocation8 + $0x50] sm:$0xff] %v4052
    %4069 = vst [vmem:[#allocation8 + $0x58] sm:$0xff] %v4053
    %4070 = vst [vmem:[#allocation8 + $0x60] sm:$0xff] %v4054
    %4071 = vst [vmem:[#allocation8 + $0x68] sm:$0xff] %v4055
    %4072 = vst [vmem:[#allocation8 + $0x70] sm:$0xff] %v4056
    %4073 = vst [vmem:[#allocation8 + $0x78] sm:$0xff] %v4057
    // Predicated region
    $region30: #{tpu_custom_call.1} parent=1 // pred_check
      _
    $region31: #{tpu_custom_call.1} parent=1 // pred_check_branch
      %4075 = sbr.rel (0) target = $region33
    $region32: #{tpu_custom_call.1} parent=1 // pred_region
      %s4077 = ssub.s32 2048, 2048
      %4078 = vsyncadd [#allocation5], %s4077
      %s4079 = sshll.u32 [#allocation8], 4
      %s4080 = int_to_ptr.vmem [resolvable:$true] %s4079
      %4085 = dma.vmem_to_hbm [thread:$0]  %s4080, 2048, %s5, [#allocation5], 256, 256, 16
    $region33: #{tpu_custom_call.1} parent=1 // pred_fallthru
      _
    // Predicated region
    $region34: #{tpu_custom_call.1} parent=1 // pred_check
      _
    $region35: #{tpu_custom_call.1} parent=1 // pred_check_branch
      %4087 = sbr.rel (0) target = $region37
    $region36: #{tpu_custom_call.1} parent=1 // pred_region
      %4088 = dma.done [#allocation5], 2048
    $region37: #{tpu_custom_call.1} parent=1 // pred_fallthru
      _
    %4089 = vsyncpa [#allocation4], 1
    %4090 = vsyncpa [#allocation5], 1
    %4091 = vsyncpa [#allocation6], 1

</llo_original>
